<compile_context>
chip_gen: v5e
topology: v5e:2x2
jax: 0.10.0
libtpu: 0.0.40
codegen_flags: <defaults>
</compile_context>

<pallas_src>
import functools

import numpy as np
import jax
import jax.numpy as jnp
from jax.experimental import pallas as pl
from jax.experimental.pallas import tpu as pltpu

LANES = 128      # lane width used by every canvas / weight matrix
CIN0_PAD = 8     # pad the 3 input channels to 8 lanes per column (zeros, exact)

# (cin, cout, k, stride, pad, bn+relu)
LAYER_CFG = [
    (3,  8,  3, 1, 1, True),    # conv0
    (8,  8,  3, 1, 1, True),    # conv1
    (8,  16, 5, 2, 2, True),    # conv2
    (16, 16, 3, 1, 1, True),    # conv3
    (16, 16, 3, 1, 1, True),    # conv4
    (16, 32, 5, 2, 2, True),    # conv5
    (32, 32, 3, 1, 1, True),    # conv6
    (32, 32, 3, 1, 1, False),   # conv7: plain Conv2d (bias, no BN, no ReLU)
]


def _geometry(H, W):
    """Per-layer heights/widths and the row border of the canvas feeding layer l."""
    hs, ws = [H], [W]
    for (_, _, _, s, _, _) in LAYER_CFG:
        hs.append(hs[-1] // s)
        ws.append(ws[-1] // s)
    borders_in = [cfg[4] for cfg in LAYER_CFG]   # = pad of the consuming layer
    return hs, ws, borders_in


# ---------------------------------------------------------------------------
# Fused Pallas kernel: all 8 layers for B images per grid step.
# ---------------------------------------------------------------------------
def _fused_kernel(H, W, B, *refs):
    L = len(LAYER_CFG)
    hs, _, binr = _geometry(H, W)
    hc = [hs[l] + 2 * binr[l] for l in range(L)]      # per-image canvas heights

    in_ref = refs[0]
    w_refs = refs[1:1 + L]                            # [k, 128, 128] bf16 per layer
    s_refs = refs[1 + L:1 + 2 * L]                    # [1, 128] f32 per layer
    out_ref = refs[1 + 2 * L]                         # [B*Ho, 128] f32
    act_refs = refs[2 + 2 * L:]                       # 7 VMEM canvases (feed layers 1..7)
    canvases = [in_ref] + list(act_refs)

    # (1) Re-zero only the tiny top/bottom border strips of each activation
    #     canvas (they are the conv row padding).  Frame rows are fully
    #     rewritten below; re-zeroing every step keeps the kernel correct when
    #     the parallel grid axis is split across TensorCores.
    for l in range(1, L):
        bd = binr[l]
        zrow = jnp.zeros((bd, LANES), canvases[l].dtype)
        for n in range(B):
            canvases[l][pl.ds(n * hc[l], bd), :] = zrow
            canvases[l][pl.ds(n * hc[l] + bd + hs[l], bd), :] = zrow

    # (2) The 8 conv layers.  Each layer = k row-tap matmuls [rows,128]x[128,128];
    #     the 128-lane axis packs (column, channel), so column taps, column
    #     padding and the column stride live inside the block-banded weights.
    for l, (_, _, k, s, p, relu) in enumerate(LAYER_CFG):
        cur = canvases[l]
        rows = hs[l]                 # stride-2 layers computed at every input row
        h_out = hs[l + 1]
        shift = s_refs[l][...]                               # [1, 128] f32
        # image loop outer -> only one f32 accumulator live at a time
        for n in range(B):
            acc = None
            for a in range(k):                               # k row taps
                start = n * hc[l] + binr[l] + a - p
                lhs = cur[pl.ds(start, rows), :]             # contiguous bf16 window
                part = jnp.dot(lhs, w_refs[l][a],
                               preferred_element_type=jnp.float32)
                acc = part if acc is None else acc + part
            y = acc + shift
            if relu:
                y = jnp.maximum(y, 0.0)
            if l == L - 1:
                out_ref[pl.ds(n * h_out, h_out), :] = y      # true outputs only
            else:
                nxt = canvases[l + 1]
                dst = n * hc[l + 1] + binr[l + 1]
                if s == 1:
                    nxt[pl.ds(dst, h_out), :] = y.astype(nxt.dtype)
                else:
                    # keep every 2nd row (true stride-2 outputs); downstream
                    # layers then run at the reduced resolution.
                    for i in range(h_out):
                        nxt[pl.ds(dst + i, 1), :] = (
                            y[2 * i:2 * i + 1, :].astype(nxt.dtype))


# ---------------------------------------------------------------------------
# Wrapper: NCHW in / NCHW out.
# ---------------------------------------------------------------------------
def feature_extractor_small(x_nchw, params, images_per_step=None):
    N, C, H, W = x_nchw.shape
    L = len(LAYER_CFG)
    hs, ws, binr = _geometry(H, W)
    assert C == 3 and H % 4 == 0 and W % 4 == 0
    assert W * CIN0_PAD <= LANES and all(
        ws[l + 1] * LAYER_CFG[l][1] <= LANES for l in range(L)), \
        "lane-packed layout requires W <= 16"
    hc = [hs[l] + 2 * binr[l] for l in range(L)]
    Ho, Wo = hs[-1], ws[-1]

    if images_per_step is None:       # batch per step, keep >=2 parallel steps
        B = max(1, N // 2) if N % 2 == 0 else 1
        B = min(B, 8)
    else:
        B = images_per_step
    assert N % B == 0
    G = N // B

    # Lane-packed, row-bordered layer-0 canvas: [G, B*hc0, 128] bf16.
    x = jnp.transpose(x_nchw, (0, 2, 3, 1)).astype(jnp.bfloat16)        # [N,H,W,3]
    x = jnp.pad(x, ((0, 0), (0, 0), (0, 0), (0, CIN0_PAD - 3)))         # [N,H,W,8]
    x = x.reshape(N, H, W * CIN0_PAD)
    if W * CIN0_PAD < LANES:
        x = jnp.pad(x, ((0, 0), (0, 0), (0, LANES - W * CIN0_PAD)))
    b0 = binr[0]
    x = jnp.pad(x, ((0, 0), (b0, b0), (0, 0)))                          # row border
    canvas0 = x.reshape(G, B * hc[0], LANES)

    in_specs = [pl.BlockSpec((None, B * hc[0], LANES), lambda g: (g, 0, 0))]
    for lp in params:
        in_specs.append(pl.BlockSpec(lp["w"].shape, lambda g: (0, 0, 0)))
    for lp in params:
        in_specs.append(pl.BlockSpec((1, LANES), lambda g: (0, 0)))

    scratch = [pltpu.VMEM((B * hc[l], LANES), jnp.bfloat16) for l in range(1, L)]

    out = pl.pallas_call(
        functools.partial(_fused_kernel, H, W, B),
        out_shape=jax.ShapeDtypeStruct((G, B * Ho, LANES), jnp.float32),
        grid=(G,),
        in_specs=in_specs,
        out_specs=pl.BlockSpec((None, B * Ho, LANES), lambda g: (g, 0, 0)),
        scratch_shapes=scratch,
        compiler_params=pltpu.CompilerParams(
            dimension_semantics=("parallel",),
            vmem_limit_bytes=32 * 1024 * 1024),
    )(canvas0, *[lp["w"] for lp in params], *[lp["shift"] for lp in params])

    out = out.reshape(N, Ho, LANES)[:, :, :Wo * 32].reshape(N, Ho, Wo, 32)
    return jnp.transpose(out, (0, 3, 1, 2))                             # NCHW


# ---------------------------------------------------------------------------
# Parameters: fold eval BN + bias, then build per-row-tap [128,128] lane matrices.
# ---------------------------------------------------------------------------
def init_params(key, W):
    ws = [W]
    for (_, _, _, s, _, _) in LAYER_CFG:
        ws.append(ws[-1] // s)

    params, ref_params = [], []
    for l, (cin, cout, k, s, p, bn) in enumerate(LAYER_CFG):
        key, kw, kb, kg, kbt, km, kv = jax.random.split(key, 7)
        w = jax.random.normal(kw, (cout, cin, k, k), jnp.float32) * 0.1
        bias = jax.random.normal(kb, (cout,), jnp.float32) * 0.01
        if bn:
            gamma = 1.0 + 0.1 * jax.random.normal(kg, (cout,), jnp.float32)
            beta = 0.1 * jax.random.normal(kbt, (cout,), jnp.float32)
            mean = 0.1 * jax.random.normal(km, (cout,), jnp.float32)
            var = jax.random.uniform(kv, (cout,), jnp.float32, 0.5, 1.5)
            scale = gamma / jnp.sqrt(var + 1e-5)
            shift = beta - mean * scale + bias * scale      # BN(conv(x)+b) folded
        else:
            scale = jnp.ones((cout,), jnp.float32)
            shift = bias
        w_scaled = w * scale[:, None, None, None]

        # Block-banded lane matrix per row tap a:
        #   Wmat[a, in_col*cin_lanes + ci, out_col*cout + co] = w[co, ci, a, b]
        #   with b = in_col - s*out_col + p (column tap, padding & stride folded).
        w_np = np.asarray(w_scaled)
        shift_np = np.asarray(shift)
        cin_lanes = CIN0_PAD if l == 0 else cin
        w_in, w_out = ws[l], ws[l + 1]
        wmat = np.zeros((k, LANES, LANES), np.float32)
        for a in range(k):
            for j in range(w_out):
                for bt in range(k):
                    ic = s * j + bt - p
                    if 0 <= ic < w_in:
                        wmat[a,
                             ic * cin_lanes: ic * cin_lanes + cin,
                             j * cout: (j + 1) * cout] = w_np[:, :, a, bt].T
        sl = np.zeros((1, LANES), np.float32)
        for j in range(w_out):
            sl[0, j * cout:(j + 1) * cout] = shift_np

        params.append(dict(w=jnp.asarray(wmat, jnp.bfloat16),
                           shift=jnp.asarray(sl, jnp.float32)))
        ref_params.append(dict(w=w_scaled, shift=shift, stride=s, pad=p, relu=bn))
    return params, ref_params


def reference_forward(x_nchw, ref_params):
    """Pure-JAX f32 reference (same folded params) used only for validation."""
    x = x_nchw
    for rp in ref_params:
        x = jax.lax.conv_general_dilated(
            x, rp["w"], window_strides=(rp["stride"], rp["stride"]),
            padding=[(rp["pad"], rp["pad"])] * 2,
            dimension_numbers=("NCHW", "OIHW", "NCHW"),
            precision=jax.lax.Precision.HIGHEST)
        x = x + rp["shift"][None, :, None, None]
        if rp["relu"]:
            x = jnp.maximum(x, 0.0)
    return x


if __name__ == "__main__":
    key = jax.random.PRNGKey(0)
    kx, kp = jax.random.split(key)
    x = jax.random.normal(kx, (2, 3, 16, 16), jnp.float32)   # NCHW, like PyTorch
    params, ref_params = init_params(kp, W=16)

    fwd = jax.jit(lambda xx: feature_extractor_small(xx, params))
    out = jax.block_until_ready(fwd(x))
    assert out.shape == (2, 32, 4, 4), out.shape             # 16 -> /2 -> /2, 32 ch

    ref = jax.block_until_ready(reference_forward(x, ref_params))
    rel_err = float(jnp.mean(jnp.abs(out - ref)) / (jnp.mean(jnp.abs(ref)) + 1e-6))
    assert rel_err < 0.1, f"relative error too large: {rel_err}"   # bf16 tolerance
    print("KERNEL_OK")
</pallas_src>

<mosaic_0001>
module attributes {stable_mosaic.version = 11 : i64} {
  func.func @_fused_kernel(%arg0: i32, %arg1: memref<1x18x128xbf16, #tpu.memory_space<vmem>>, %arg2: memref<3x128x128xbf16, #tpu.memory_space<vmem>>, %arg3: memref<3x128x128xbf16, #tpu.memory_space<vmem>>, %arg4: memref<5x128x128xbf16, #tpu.memory_space<vmem>>, %arg5: memref<3x128x128xbf16, #tpu.memory_space<vmem>>, %arg6: memref<3x128x128xbf16, #tpu.memory_space<vmem>>, %arg7: memref<5x128x128xbf16, #tpu.memory_space<vmem>>, %arg8: memref<3x128x128xbf16, #tpu.memory_space<vmem>>, %arg9: memref<3x128x128xbf16, #tpu.memory_space<vmem>>, %arg10: memref<1x128xf32, #tpu.memory_space<vmem>>, %arg11: memref<1x128xf32, #tpu.memory_space<vmem>>, %arg12: memref<1x128xf32, #tpu.memory_space<vmem>>, %arg13: memref<1x128xf32, #tpu.memory_space<vmem>>, %arg14: memref<1x128xf32, #tpu.memory_space<vmem>>, %arg15: memref<1x128xf32, #tpu.memory_space<vmem>>, %arg16: memref<1x128xf32, #tpu.memory_space<vmem>>, %arg17: memref<1x128xf32, #tpu.memory_space<vmem>>, %arg18: memref<1x4x128xf32, #tpu.memory_space<vmem>>, %arg19: memref<18x128xbf16, #tpu.memory_space<vmem>>, %arg20: memref<20x128xbf16, #tpu.memory_space<vmem>>, %arg21: memref<10x128xbf16, #tpu.memory_space<vmem>>, %arg22: memref<10x128xbf16, #tpu.memory_space<vmem>>, %arg23: memref<12x128xbf16, #tpu.memory_space<vmem>>, %arg24: memref<6x128xbf16, #tpu.memory_space<vmem>>, %arg25: memref<6x128xbf16, #tpu.memory_space<vmem>>) attributes {dimension_semantics = [#tpu.dimension_semantics<parallel>], iteration_bounds = array<i64: 2>, scalar_prefetch = 0 : i64, scratch_operands = 7 : i64, tpu.core_type = #tpu.core_type<tc>, window_params = [{transform_indices = @transform_0, window_bounds = array<i64: 1, 18, 128>}, {pipeline_mode = #tpu.pipeline_mode<synchronous>, transform_indices = @transform_1, window_bounds = array<i64: 3, 128, 128>}, {pipeline_mode = #tpu.pipeline_mode<synchronous>, transform_indices = @transform_2, window_bounds = array<i64: 3, 128, 128>}, {pipeline_mode = #tpu.pipeline_mode<synchronous>, transform_indices = @transform_3, window_bounds = array<i64: 5, 128, 128>}, {pipeline_mode = #tpu.pipeline_mode<synchronous>, transform_indices = @transform_4, window_bounds = array<i64: 3, 128, 128>}, {pipeline_mode = #tpu.pipeline_mode<synchronous>, transform_indices = @transform_5, window_bounds = array<i64: 3, 128, 128>}, {pipeline_mode = #tpu.pipeline_mode<synchronous>, transform_indices = @transform_6, window_bounds = array<i64: 5, 128, 128>}, {pipeline_mode = #tpu.pipeline_mode<synchronous>, transform_indices = @transform_7, window_bounds = array<i64: 3, 128, 128>}, {pipeline_mode = #tpu.pipeline_mode<synchronous>, transform_indices = @transform_8, window_bounds = array<i64: 3, 128, 128>}, {pipeline_mode = #tpu.pipeline_mode<synchronous>, transform_indices = @transform_9, window_bounds = array<i64: 1, 128>}, {pipeline_mode = #tpu.pipeline_mode<synchronous>, transform_indices = @transform_10, window_bounds = array<i64: 1, 128>}, {pipeline_mode = #tpu.pipeline_mode<synchronous>, transform_indices = @transform_11, window_bounds = array<i64: 1, 128>}, {pipeline_mode = #tpu.pipeline_mode<synchronous>, transform_indices = @transform_12, window_bounds = array<i64: 1, 128>}, {pipeline_mode = #tpu.pipeline_mode<synchronous>, transform_indices = @transform_13, window_bounds = array<i64: 1, 128>}, {pipeline_mode = #tpu.pipeline_mode<synchronous>, transform_indices = @transform_14, window_bounds = array<i64: 1, 128>}, {pipeline_mode = #tpu.pipeline_mode<synchronous>, transform_indices = @transform_15, window_bounds = array<i64: 1, 128>}, {pipeline_mode = #tpu.pipeline_mode<synchronous>, transform_indices = @transform_16, window_bounds = array<i64: 1, 128>}, {transform_indices = @transform_17, window_bounds = array<i64: 1, 4, 128>}]} {
    %cst = arith.constant 0.000000e+00 : bf16
    %0 = vector.broadcast %cst : bf16 to vector<1x128xbf16>
    %c0 = arith.constant 0 : index
    %c0_0 = arith.constant 0 : index
    %1 = vector.load %arg19[%c0, %c0_0] : memref<18x128xbf16, #tpu.memory_space<vmem>>, vector<1x128xbf16>
    tpu.vector_store %arg19[%c0, %c0_0], %0 {strides = array<i32>} : memref<18x128xbf16, #tpu.memory_space<vmem>>, vector<1x128xbf16>,
    %c17 = arith.constant 17 : index
    %c0_1 = arith.constant 0 : index
    %2 = vector.load %arg19[%c17, %c0_1] : memref<18x128xbf16, #tpu.memory_space<vmem>>, vector<1x128xbf16>
    tpu.vector_store %arg19[%c17, %c0_1], %0 {strides = array<i32>} : memref<18x128xbf16, #tpu.memory_space<vmem>>, vector<1x128xbf16>,
    %cst_2 = arith.constant 0.000000e+00 : bf16
    %3 = vector.broadcast %cst_2 : bf16 to vector<2x128xbf16>
    %c0_3 = arith.constant 0 : index
    %c0_4 = arith.constant 0 : index
    %4 = vector.load %arg20[%c0_3, %c0_4] : memref<20x128xbf16, #tpu.memory_space<vmem>>, vector<2x128xbf16>
    tpu.vector_store %arg20[%c0_3, %c0_4], %3 {strides = array<i32>} : memref<20x128xbf16, #tpu.memory_space<vmem>>, vector<2x128xbf16>,
    %c18 = arith.constant 18 : index
    %c0_5 = arith.constant 0 : index
    %5 = vector.load %arg20[%c18, %c0_5] : memref<20x128xbf16, #tpu.memory_space<vmem>>, vector<2x128xbf16>
    tpu.vector_store %arg20[%c18, %c0_5], %3 {strides = array<i32>} : memref<20x128xbf16, #tpu.memory_space<vmem>>, vector<2x128xbf16>,
    %cst_6 = arith.constant 0.000000e+00 : bf16
    %6 = vector.broadcast %cst_6 : bf16 to vector<1x128xbf16>
    %c0_7 = arith.constant 0 : index
    %c0_8 = arith.constant 0 : index
    %7 = vector.load %arg21[%c0_7, %c0_8] : memref<10x128xbf16, #tpu.memory_space<vmem>>, vector<1x128xbf16>
    tpu.vector_store %arg21[%c0_7, %c0_8], %6 {strides = array<i32>} : memref<10x128xbf16, #tpu.memory_space<vmem>>, vector<1x128xbf16>,
    %c9 = arith.constant 9 : index
    %c0_9 = arith.constant 0 : index
    %8 = vector.load %arg21[%c9, %c0_9] : memref<10x128xbf16, #tpu.memory_space<vmem>>, vector<1x128xbf16>
    tpu.vector_store %arg21[%c9, %c0_9], %6 {strides = array<i32>} : memref<10x128xbf16, #tpu.memory_space<vmem>>, vector<1x128xbf16>,
    %cst_10 = arith.constant 0.000000e+00 : bf16
    %9 = vector.broadcast %cst_10 : bf16 to vector<1x128xbf16>
    %c0_11 = arith.constant 0 : index
    %c0_12 = arith.constant 0 : index
    %10 = vector.load %arg22[%c0_11, %c0_12] : memref<10x128xbf16, #tpu.memory_space<vmem>>, vector<1x128xbf16>
    tpu.vector_store %arg22[%c0_11, %c0_12], %9 {strides = array<i32>} : memref<10x128xbf16, #tpu.memory_space<vmem>>, vector<1x128xbf16>,
    %c9_13 = arith.constant 9 : index
    %c0_14 = arith.constant 0 : index
    %11 = vector.load %arg22[%c9_13, %c0_14] : memref<10x128xbf16, #tpu.memory_space<vmem>>, vector<1x128xbf16>
    tpu.vector_store %arg22[%c9_13, %c0_14], %9 {strides = array<i32>} : memref<10x128xbf16, #tpu.memory_space<vmem>>, vector<1x128xbf16>,
    %cst_15 = arith.constant 0.000000e+00 : bf16
    %12 = vector.broadcast %cst_15 : bf16 to vector<2x128xbf16>
    %c0_16 = arith.constant 0 : index
    %c0_17 = arith.constant 0 : index
    %13 = vector.load %arg23[%c0_16, %c0_17] : memref<12x128xbf16, #tpu.memory_space<vmem>>, vector<2x128xbf16>
    tpu.vector_store %arg23[%c0_16, %c0_17], %12 {strides = array<i32>} : memref<12x128xbf16, #tpu.memory_space<vmem>>, vector<2x128xbf16>,
    %c10 = arith.constant 10 : index
    %c0_18 = arith.constant 0 : index
    %14 = vector.load %arg23[%c10, %c0_18] : memref<12x128xbf16, #tpu.memory_space<vmem>>, vector<2x128xbf16>
    tpu.vector_store %arg23[%c10, %c0_18], %12 {strides = array<i32>} : memref<12x128xbf16, #tpu.memory_space<vmem>>, vector<2x128xbf16>,
    %cst_19 = arith.constant 0.000000e+00 : bf16
    %15 = vector.broadcast %cst_19 : bf16 to vector<1x128xbf16>
    %c0_20 = arith.constant 0 : index
    %c0_21 = arith.constant 0 : index
    %16 = vector.load %arg24[%c0_20, %c0_21] : memref<6x128xbf16, #tpu.memory_space<vmem>>, vector<1x128xbf16>
    tpu.vector_store %arg24[%c0_20, %c0_21], %15 {strides = array<i32>} : memref<6x128xbf16, #tpu.memory_space<vmem>>, vector<1x128xbf16>,
    %c5 = arith.constant 5 : index
    %c0_22 = arith.constant 0 : index
    %17 = vector.load %arg24[%c5, %c0_22] : memref<6x128xbf16, #tpu.memory_space<vmem>>, vector<1x128xbf16>
    tpu.vector_store %arg24[%c5, %c0_22], %15 {strides = array<i32>} : memref<6x128xbf16, #tpu.memory_space<vmem>>, vector<1x128xbf16>,
    %cst_23 = arith.constant 0.000000e+00 : bf16
    %18 = vector.broadcast %cst_23 : bf16 to vector<1x128xbf16>
    %c0_24 = arith.constant 0 : index
    %c0_25 = arith.constant 0 : index
    %19 = vector.load %arg25[%c0_24, %c0_25] : memref<6x128xbf16, #tpu.memory_space<vmem>>, vector<1x128xbf16>
    tpu.vector_store %arg25[%c0_24, %c0_25], %18 {strides = array<i32>} : memref<6x128xbf16, #tpu.memory_space<vmem>>, vector<1x128xbf16>,
    %c5_26 = arith.constant 5 : index
    %c0_27 = arith.constant 0 : index
    %20 = vector.load %arg25[%c5_26, %c0_27] : memref<6x128xbf16, #tpu.memory_space<vmem>>, vector<1x128xbf16>
    tpu.vector_store %arg25[%c5_26, %c0_27], %18 {strides = array<i32>} : memref<6x128xbf16, #tpu.memory_space<vmem>>, vector<1x128xbf16>,
    %c0_28 = arith.constant 0 : index
    %c0_29 = arith.constant 0 : index
    %21 = vector.load %arg10[%c0_28, %c0_29] : memref<1x128xf32, #tpu.memory_space<vmem>>, vector<1x128xf32>
    %c0_30 = arith.constant 0 : index
    %c0_31 = arith.constant 0 : index
    %c0_32 = arith.constant 0 : index
    %22 = vector.load %arg1[%c0_30, %c0_31, %c0_32] : memref<1x18x128xbf16, #tpu.memory_space<vmem>>, vector<1x16x128xbf16>
    %23 = vector.shape_cast %22 : vector<1x16x128xbf16> to vector<16x128xbf16>
    %c0_33 = arith.constant 0 : index
    %c0_34 = arith.constant 0 : index
    %c0_35 = arith.constant 0 : index
    %24 = vector.load %arg2[%c0_33, %c0_34, %c0_35] : memref<3x128x128xbf16, #tpu.memory_space<vmem>>, vector<1x128x128xbf16>
    %25 = vector.shape_cast %24 : vector<1x128x128xbf16> to vector<128x128xbf16>
    %cst_36 = arith.constant dense<0.000000e+00> : vector<16x128xf32>
    %26 = tpu.matmul %23, %25, %cst_36 {dimension_numbers = #tpu.dot_dimension_numbers<[1], [0], [0], [1], [0, 0, 1, 1], [], []>} : vector<16x128xbf16>, vector<128x128xbf16>, vector<16x128xf32> -> vector<16x128xf32>
    %c0_37 = arith.constant 0 : index
    %c1 = arith.constant 1 : index
    %c0_38 = arith.constant 0 : index
    %27 = vector.load %arg1[%c0_37, %c1, %c0_38] : memref<1x18x128xbf16, #tpu.memory_space<vmem>>, vector<1x16x128xbf16>
    %28 = vector.shape_cast %27 : vector<1x16x128xbf16> to vector<16x128xbf16>
    %c1_39 = arith.constant 1 : index
    %c0_40 = arith.constant 0 : index
    %c0_41 = arith.constant 0 : index
    %29 = vector.load %arg2[%c1_39, %c0_40, %c0_41] : memref<3x128x128xbf16, #tpu.memory_space<vmem>>, vector<1x128x128xbf16>
    %30 = vector.shape_cast %29 : vector<1x128x128xbf16> to vector<128x128xbf16>
    %cst_42 = arith.constant dense<0.000000e+00> : vector<16x128xf32>
    %31 = tpu.matmul %28, %30, %cst_42 {dimension_numbers = #tpu.dot_dimension_numbers<[1], [0], [0], [1], [0, 0, 1, 1], [], []>} : vector<16x128xbf16>, vector<128x128xbf16>, vector<16x128xf32> -> vector<16x128xf32>
    %32 = arith.addf %26, %31 : vector<16x128xf32>
    %c0_43 = arith.constant 0 : index
    %c2 = arith.constant 2 : index
    %c0_44 = arith.constant 0 : index
    %33 = vector.load %arg1[%c0_43, %c2, %c0_44] : memref<1x18x128xbf16, #tpu.memory_space<vmem>>, vector<1x16x128xbf16>
    %34 = vector.shape_cast %33 : vector<1x16x128xbf16> to vector<16x128xbf16>
    %c2_45 = arith.constant 2 : index
    %c0_46 = arith.constant 0 : index
    %c0_47 = arith.constant 0 : index
    %35 = vector.load %arg2[%c2_45, %c0_46, %c0_47] : memref<3x128x128xbf16, #tpu.memory_space<vmem>>, vector<1x128x128xbf16>
    %36 = vector.shape_cast %35 : vector<1x128x128xbf16> to vector<128x128xbf16>
    %cst_48 = arith.constant dense<0.000000e+00> : vector<16x128xf32>
    %37 = tpu.matmul %34, %36, %cst_48 {dimension_numbers = #tpu.dot_dimension_numbers<[1], [0], [0], [1], [0, 0, 1, 1], [], []>} : vector<16x128xbf16>, vector<128x128xbf16>, vector<16x128xf32> -> vector<16x128xf32>
    %38 = arith.addf %32, %37 : vector<16x128xf32>
    %39 = vector.broadcast %21 : vector<1x128xf32> to vector<16x128xf32>
    %40 = arith.addf %38, %39 : vector<16x128xf32>
    %cst_49 = arith.constant 0.000000e+00 : f32
    %41 = vector.broadcast %cst_49 : f32 to vector<16x128xf32>
    %42 = arith.maximumf %40, %41 : vector<16x128xf32>
    %43 = arith.truncf %42 : vector<16x128xf32> to vector<16x128xbf16>
    %c1_50 = arith.constant 1 : index
    %c0_51 = arith.constant 0 : index
    %44 = vector.load %arg19[%c1_50, %c0_51] : memref<18x128xbf16, #tpu.memory_space<vmem>>, vector<16x128xbf16>
    tpu.vector_store %arg19[%c1_50, %c0_51], %43 {strides = array<i32>} : memref<18x128xbf16, #tpu.memory_space<vmem>>, vector<16x128xbf16>,
    %c0_52 = arith.constant 0 : index
    %c0_53 = arith.constant 0 : index
    %45 = vector.load %arg11[%c0_52, %c0_53] : memref<1x128xf32, #tpu.memory_space<vmem>>, vector<1x128xf32>
    %c0_54 = arith.constant 0 : index
    %c0_55 = arith.constant 0 : index
    %46 = vector.load %arg19[%c0_54, %c0_55] : memref<18x128xbf16, #tpu.memory_space<vmem>>, vector<16x128xbf16>
    %c0_56 = arith.constant 0 : index
    %c0_57 = arith.constant 0 : index
    %c0_58 = arith.constant 0 : index
    %47 = vector.load %arg3[%c0_56, %c0_57, %c0_58] : memref<3x128x128xbf16, #tpu.memory_space<vmem>>, vector<1x128x128xbf16>
    %48 = vector.shape_cast %47 : vector<1x128x128xbf16> to vector<128x128xbf16>
    %cst_59 = arith.constant dense<0.000000e+00> : vector<16x128xf32>
    %49 = tpu.matmul %46, %48, %cst_59 {dimension_numbers = #tpu.dot_dimension_numbers<[1], [0], [0], [1], [0, 0, 1, 1], [], []>} : vector<16x128xbf16>, vector<128x128xbf16>, vector<16x128xf32> -> vector<16x128xf32>
    %c1_60 = arith.constant 1 : index
    %c0_61 = arith.constant 0 : index
    %50 = vector.load %arg19[%c1_60, %c0_61] : memref<18x128xbf16, #tpu.memory_space<vmem>>, vector<16x128xbf16>
    %c1_62 = arith.constant 1 : index
    %c0_63 = arith.constant 0 : index
    %c0_64 = arith.constant 0 : index
    %51 = vector.load %arg3[%c1_62, %c0_63, %c0_64] : memref<3x128x128xbf16, #tpu.memory_space<vmem>>, vector<1x128x128xbf16>
    %52 = vector.shape_cast %51 : vector<1x128x128xbf16> to vector<128x128xbf16>
    %cst_65 = arith.constant dense<0.000000e+00> : vector<16x128xf32>
    %53 = tpu.matmul %50, %52, %cst_65 {dimension_numbers = #tpu.dot_dimension_numbers<[1], [0], [0], [1], [0, 0, 1, 1], [], []>} : vector<16x128xbf16>, vector<128x128xbf16>, vector<16x128xf32> -> vector<16x128xf32>
    %54 = arith.addf %49, %53 : vector<16x128xf32>
    %c2_66 = arith.constant 2 : index
    %c0_67 = arith.constant 0 : index
    %55 = vector.load %arg19[%c2_66, %c0_67] : memref<18x128xbf16, #tpu.memory_space<vmem>>, vector<16x128xbf16>
    %c2_68 = arith.constant 2 : index
    %c0_69 = arith.constant 0 : index
    %c0_70 = arith.constant 0 : index
    %56 = vector.load %arg3[%c2_68, %c0_69, %c0_70] : memref<3x128x128xbf16, #tpu.memory_space<vmem>>, vector<1x128x128xbf16>
    %57 = vector.shape_cast %56 : vector<1x128x128xbf16> to vector<128x128xbf16>
    %cst_71 = arith.constant dense<0.000000e+00> : vector<16x128xf32>
    %58 = tpu.matmul %55, %57, %cst_71 {dimension_numbers = #tpu.dot_dimension_numbers<[1], [0], [0], [1], [0, 0, 1, 1], [], []>} : vector<16x128xbf16>, vector<128x128xbf16>, vector<16x128xf32> -> vector<16x128xf32>
    %59 = arith.addf %54, %58 : vector<16x128xf32>
    %60 = vector.broadcast %45 : vector<1x128xf32> to vector<16x128xf32>
    %61 = arith.addf %59, %60 : vector<16x128xf32>
    %cst_72 = arith.constant 0.000000e+00 : f32
    %62 = vector.broadcast %cst_72 : f32 to vector<16x128xf32>
    %63 = arith.maximumf %61, %62 : vector<16x128xf32>
    %64 = arith.truncf %63 : vector<16x128xf32> to vector<16x128xbf16>
    %c2_73 = arith.constant 2 : index
    %c0_74 = arith.constant 0 : index
    %65 = vector.load %arg20[%c2_73, %c0_74] : memref<20x128xbf16, #tpu.memory_space<vmem>>, vector<16x128xbf16>
    tpu.vector_store %arg20[%c2_73, %c0_74], %64 {strides = array<i32>} : memref<20x128xbf16, #tpu.memory_space<vmem>>, vector<16x128xbf16>,
    %c0_75 = arith.constant 0 : index
    %c0_76 = arith.constant 0 : index
    %66 = vector.load %arg12[%c0_75, %c0_76] : memref<1x128xf32, #tpu.memory_space<vmem>>, vector<1x128xf32>
    %c0_77 = arith.constant 0 : index
    %c0_78 = arith.constant 0 : index
    %67 = vector.load %arg20[%c0_77, %c0_78] : memref<20x128xbf16, #tpu.memory_space<vmem>>, vector<16x128xbf16>
    %c0_79 = arith.constant 0 : index
    %c0_80 = arith.constant 0 : index
    %c0_81 = arith.constant 0 : index
    %68 = vector.load %arg4[%c0_79, %c0_80, %c0_81] : memref<5x128x128xbf16, #tpu.memory_space<vmem>>, vector<1x128x128xbf16>
    %69 = vector.shape_cast %68 : vector<1x128x128xbf16> to vector<128x128xbf16>
    %cst_82 = arith.constant dense<0.000000e+00> : vector<16x128xf32>
    %70 = tpu.matmul %67, %69, %cst_82 {dimension_numbers = #tpu.dot_dimension_numbers<[1], [0], [0], [1], [0, 0, 1, 1], [], []>} : vector<16x128xbf16>, vector<128x128xbf16>, vector<16x128xf32> -> vector<16x128xf32>
    %c1_83 = arith.constant 1 : index
    %c0_84 = arith.constant 0 : index
    %71 = vector.load %arg20[%c1_83, %c0_84] : memref<20x128xbf16, #tpu.memory_space<vmem>>, vector<16x128xbf16>
    %c1_85 = arith.constant 1 : index
    %c0_86 = arith.constant 0 : index
    %c0_87 = arith.constant 0 : index
    %72 = vector.load %arg4[%c1_85, %c0_86, %c0_87] : memref<5x128x128xbf16, #tpu.memory_space<vmem>>, vector<1x128x128xbf16>
    %73 = vector.shape_cast %72 : vector<1x128x128xbf16> to vector<128x128xbf16>
    %cst_88 = arith.constant dense<0.000000e+00> : vector<16x128xf32>
    %74 = tpu.matmul %71, %73, %cst_88 {dimension_numbers = #tpu.dot_dimension_numbers<[1], [0], [0], [1], [0, 0, 1, 1], [], []>} : vector<16x128xbf16>, vector<128x128xbf16>, vector<16x128xf32> -> vector<16x128xf32>
    %75 = arith.addf %70, %74 : vector<16x128xf32>
    %c2_89 = arith.constant 2 : index
    %c0_90 = arith.constant 0 : index
    %76 = vector.load %arg20[%c2_89, %c0_90] : memref<20x128xbf16, #tpu.memory_space<vmem>>, vector<16x128xbf16>
    %c2_91 = arith.constant 2 : index
    %c0_92 = arith.constant 0 : index
    %c0_93 = arith.constant 0 : index
    %77 = vector.load %arg4[%c2_91, %c0_92, %c0_93] : memref<5x128x128xbf16, #tpu.memory_space<vmem>>, vector<1x128x128xbf16>
    %78 = vector.shape_cast %77 : vector<1x128x128xbf16> to vector<128x128xbf16>
    %cst_94 = arith.constant dense<0.000000e+00> : vector<16x128xf32>
    %79 = tpu.matmul %76, %78, %cst_94 {dimension_numbers = #tpu.dot_dimension_numbers<[1], [0], [0], [1], [0, 0, 1, 1], [], []>} : vector<16x128xbf16>, vector<128x128xbf16>, vector<16x128xf32> -> vector<16x128xf32>
    %80 = arith.addf %75, %79 : vector<16x128xf32>
    %c3 = arith.constant 3 : index
    %c0_95 = arith.constant 0 : index
    %81 = vector.load %arg20[%c3, %c0_95] : memref<20x128xbf16, #tpu.memory_space<vmem>>, vector<16x128xbf16>
    %c3_96 = arith.constant 3 : index
    %c0_97 = arith.constant 0 : index
    %c0_98 = arith.constant 0 : index
    %82 = vector.load %arg4[%c3_96, %c0_97, %c0_98] : memref<5x128x128xbf16, #tpu.memory_space<vmem>>, vector<1x128x128xbf16>
    %83 = vector.shape_cast %82 : vector<1x128x128xbf16> to vector<128x128xbf16>
    %cst_99 = arith.constant dense<0.000000e+00> : vector<16x128xf32>
    %84 = tpu.matmul %81, %83, %cst_99 {dimension_numbers = #tpu.dot_dimension_numbers<[1], [0], [0], [1], [0, 0, 1, 1], [], []>} : vector<16x128xbf16>, vector<128x128xbf16>, vector<16x128xf32> -> vector<16x128xf32>
    %85 = arith.addf %80, %84 : vector<16x128xf32>
    %c4 = arith.constant 4 : index
    %c0_100 = arith.constant 0 : index
    %86 = vector.load %arg20[%c4, %c0_100] : memref<20x128xbf16, #tpu.memory_space<vmem>>, vector<16x128xbf16>
    %c4_101 = arith.constant 4 : index
    %c0_102 = arith.constant 0 : index
    %c0_103 = arith.constant 0 : index
    %87 = vector.load %arg4[%c4_101, %c0_102, %c0_103] : memref<5x128x128xbf16, #tpu.memory_space<vmem>>, vector<1x128x128xbf16>
    %88 = vector.shape_cast %87 : vector<1x128x128xbf16> to vector<128x128xbf16>
    %cst_104 = arith.constant dense<0.000000e+00> : vector<16x128xf32>
    %89 = tpu.matmul %86, %88, %cst_104 {dimension_numbers = #tpu.dot_dimension_numbers<[1], [0], [0], [1], [0, 0, 1, 1], [], []>} : vector<16x128xbf16>, vector<128x128xbf16>, vector<16x128xf32> -> vector<16x128xf32>
    %90 = arith.addf %85, %89 : vector<16x128xf32>
    %91 = vector.broadcast %66 : vector<1x128xf32> to vector<16x128xf32>
    %92 = arith.addf %90, %91 : vector<16x128xf32>
    %cst_105 = arith.constant 0.000000e+00 : f32
    %93 = vector.broadcast %cst_105 : f32 to vector<16x128xf32>
    %94 = arith.maximumf %92, %93 : vector<16x128xf32>
    %95 = vector.extract_strided_slice %94 {offsets = [0, 0], sizes = [1, 128], strides = [1, 1]} : vector<16x128xf32> to vector<1x128xf32>
    %96 = arith.truncf %95 : vector<1x128xf32> to vector<1x128xbf16>
    %c1_106 = arith.constant 1 : index
    %c0_107 = arith.constant 0 : index
    %97 = vector.load %arg21[%c1_106, %c0_107] : memref<10x128xbf16, #tpu.memory_space<vmem>>, vector<1x128xbf16>
    tpu.vector_store %arg21[%c1_106, %c0_107], %96 {strides = array<i32>} : memref<10x128xbf16, #tpu.memory_space<vmem>>, vector<1x128xbf16>,
    %98 = vector.extract_strided_slice %94 {offsets = [2, 0], sizes = [1, 128], strides = [1, 1]} : vector<16x128xf32> to vector<1x128xf32>
    %99 = arith.truncf %98 : vector<1x128xf32> to vector<1x128xbf16>
    %c2_108 = arith.constant 2 : index
    %c0_109 = arith.constant 0 : index
    %100 = vector.load %arg21[%c2_108, %c0_109] : memref<10x128xbf16, #tpu.memory_space<vmem>>, vector<1x128xbf16>
    tpu.vector_store %arg21[%c2_108, %c0_109], %99 {strides = array<i32>} : memref<10x128xbf16, #tpu.memory_space<vmem>>, vector<1x128xbf16>,
    %101 = vector.extract_strided_slice %94 {offsets = [4, 0], sizes = [1, 128], strides = [1, 1]} : vector<16x128xf32> to vector<1x128xf32>
    %102 = arith.truncf %101 : vector<1x128xf32> to vector<1x128xbf16>
    %c3_110 = arith.constant 3 : index
    %c0_111 = arith.constant 0 : index
    %103 = vector.load %arg21[%c3_110, %c0_111] : memref<10x128xbf16, #tpu.memory_space<vmem>>, vector<1x128xbf16>
    tpu.vector_store %arg21[%c3_110, %c0_111], %102 {strides = array<i32>} : memref<10x128xbf16, #tpu.memory_space<vmem>>, vector<1x128xbf16>,
    %104 = vector.extract_strided_slice %94 {offsets = [6, 0], sizes = [1, 128], strides = [1, 1]} : vector<16x128xf32> to vector<1x128xf32>
    %105 = arith.truncf %104 : vector<1x128xf32> to vector<1x128xbf16>
    %c4_112 = arith.constant 4 : index
    %c0_113 = arith.constant 0 : index
    %106 = vector.load %arg21[%c4_112, %c0_113] : memref<10x128xbf16, #tpu.memory_space<vmem>>, vector<1x128xbf16>
    tpu.vector_store %arg21[%c4_112, %c0_113], %105 {strides = array<i32>} : memref<10x128xbf16, #tpu.memory_space<vmem>>, vector<1x128xbf16>,
    %107 = vector.extract_strided_slice %94 {offsets = [8, 0], sizes = [1, 128], strides = [1, 1]} : vector<16x128xf32> to vector<1x128xf32>
    %108 = arith.truncf %107 : vector<1x128xf32> to vector<1x128xbf16>
    %c5_114 = arith.constant 5 : index
    %c0_115 = arith.constant 0 : index
    %109 = vector.load %arg21[%c5_114, %c0_115] : memref<10x128xbf16, #tpu.memory_space<vmem>>, vector<1x128xbf16>
    tpu.vector_store %arg21[%c5_114, %c0_115], %108 {strides = array<i32>} : memref<10x128xbf16, #tpu.memory_space<vmem>>, vector<1x128xbf16>,
    %110 = vector.extract_strided_slice %94 {offsets = [10, 0], sizes = [1, 128], strides = [1, 1]} : vector<16x128xf32> to vector<1x128xf32>
    %111 = arith.truncf %110 : vector<1x128xf32> to vector<1x128xbf16>
    %c6 = arith.constant 6 : index
    %c0_116 = arith.constant 0 : index
    %112 = vector.load %arg21[%c6, %c0_116] : memref<10x128xbf16, #tpu.memory_space<vmem>>, vector<1x128xbf16>
    tpu.vector_store %arg21[%c6, %c0_116], %111 {strides = array<i32>} : memref<10x128xbf16, #tpu.memory_space<vmem>>, vector<1x128xbf16>,
    %113 = vector.extract_strided_slice %94 {offsets = [12, 0], sizes = [1, 128], strides = [1, 1]} : vector<16x128xf32> to vector<1x128xf32>
    %114 = arith.truncf %113 : vector<1x128xf32> to vector<1x128xbf16>
    %c7 = arith.constant 7 : index
    %c0_117 = arith.constant 0 : index
    %115 = vector.load %arg21[%c7, %c0_117] : memref<10x128xbf16, #tpu.memory_space<vmem>>, vector<1x128xbf16>
    tpu.vector_store %arg21[%c7, %c0_117], %114 {strides = array<i32>} : memref<10x128xbf16, #tpu.memory_space<vmem>>, vector<1x128xbf16>,
    %116 = vector.extract_strided_slice %94 {offsets = [14, 0], sizes = [1, 128], strides = [1, 1]} : vector<16x128xf32> to vector<1x128xf32>
    %117 = arith.truncf %116 : vector<1x128xf32> to vector<1x128xbf16>
    %c8 = arith.constant 8 : index
    %c0_118 = arith.constant 0 : index
    %118 = vector.load %arg21[%c8, %c0_118] : memref<10x128xbf16, #tpu.memory_space<vmem>>, vector<1x128xbf16>
    tpu.vector_store %arg21[%c8, %c0_118], %117 {strides = array<i32>} : memref<10x128xbf16, #tpu.memory_space<vmem>>, vector<1x128xbf16>,
    %c0_119 = arith.constant 0 : index
    %c0_120 = arith.constant 0 : index
    %119 = vector.load %arg13[%c0_119, %c0_120] : memref<1x128xf32, #tpu.memory_space<vmem>>, vector<1x128xf32>
    %c0_121 = arith.constant 0 : index
    %c0_122 = arith.constant 0 : index
    %120 = vector.load %arg21[%c0_121, %c0_122] : memref<10x128xbf16, #tpu.memory_space<vmem>>, vector<8x128xbf16>
    %c0_123 = arith.constant 0 : index
    %c0_124 = arith.constant 0 : index
    %c0_125 = arith.constant 0 : index
    %121 = vector.load %arg5[%c0_123, %c0_124, %c0_125] : memref<3x128x128xbf16, #tpu.memory_space<vmem>>, vector<1x128x128xbf16>
    %122 = vector.shape_cast %121 : vector<1x128x128xbf16> to vector<128x128xbf16>
    %cst_126 = arith.constant dense<0.000000e+00> : vector<8x128xf32>
    %123 = tpu.matmul %120, %122, %cst_126 {dimension_numbers = #tpu.dot_dimension_numbers<[1], [0], [0], [1], [0, 0, 1, 1], [], []>} : vector<8x128xbf16>, vector<128x128xbf16>, vector<8x128xf32> -> vector<8x128xf32>
    %c1_127 = arith.constant 1 : index
    %c0_128 = arith.constant 0 : index
    %124 = vector.load %arg21[%c1_127, %c0_128] : memref<10x128xbf16, #tpu.memory_space<vmem>>, vector<8x128xbf16>
    %c1_129 = arith.constant 1 : index
    %c0_130 = arith.constant 0 : index
    %c0_131 = arith.constant 0 : index
    %125 = vector.load %arg5[%c1_129, %c0_130, %c0_131] : memref<3x128x128xbf16, #tpu.memory_space<vmem>>, vector<1x128x128xbf16>
    %126 = vector.shape_cast %125 : vector<1x128x128xbf16> to vector<128x128xbf16>
    %cst_132 = arith.constant dense<0.000000e+00> : vector<8x128xf32>
    %127 = tpu.matmul %124, %126, %cst_132 {dimension_numbers = #tpu.dot_dimension_numbers<[1], [0], [0], [1], [0, 0, 1, 1], [], []>} : vector<8x128xbf16>, vector<128x128xbf16>, vector<8x128xf32> -> vector<8x128xf32>
    %128 = arith.addf %123, %127 : vector<8x128xf32>
    %c2_133 = arith.constant 2 : index
    %c0_134 = arith.constant 0 : index
    %129 = vector.load %arg21[%c2_133, %c0_134] : memref<10x128xbf16, #tpu.memory_space<vmem>>, vector<8x128xbf16>
    %c2_135 = arith.constant 2 : index
    %c0_136 = arith.constant 0 : index
    %c0_137 = arith.constant 0 : index
    %130 = vector.load %arg5[%c2_135, %c0_136, %c0_137] : memref<3x128x128xbf16, #tpu.memory_space<vmem>>, vector<1x128x128xbf16>
    %131 = vector.shape_cast %130 : vector<1x128x128xbf16> to vector<128x128xbf16>
    %cst_138 = arith.constant dense<0.000000e+00> : vector<8x128xf32>
    %132 = tpu.matmul %129, %131, %cst_138 {dimension_numbers = #tpu.dot_dimension_numbers<[1], [0], [0], [1], [0, 0, 1, 1], [], []>} : vector<8x128xbf16>, vector<128x128xbf16>, vector<8x128xf32> -> vector<8x128xf32>
    %133 = arith.addf %128, %132 : vector<8x128xf32>
    %134 = vector.broadcast %119 : vector<1x128xf32> to vector<8x128xf32>
    %135 = arith.addf %133, %134 : vector<8x128xf32>
    %cst_139 = arith.constant 0.000000e+00 : f32
    %136 = vector.broadcast %cst_139 : f32 to vector<8x128xf32>
    %137 = arith.maximumf %135, %136 : vector<8x128xf32>
    %138 = arith.truncf %137 : vector<8x128xf32> to vector<8x128xbf16>
    %c1_140 = arith.constant 1 : index
    %c0_141 = arith.constant 0 : index
    %139 = vector.load %arg22[%c1_140, %c0_141] : memref<10x128xbf16, #tpu.memory_space<vmem>>, vector<8x128xbf16>
    tpu.vector_store %arg22[%c1_140, %c0_141], %138 {strides = array<i32>} : memref<10x128xbf16, #tpu.memory_space<vmem>>, vector<8x128xbf16>,
    %c0_142 = arith.constant 0 : index
    %c0_143 = arith.constant 0 : index
    %140 = vector.load %arg14[%c0_142, %c0_143] : memref<1x128xf32, #tpu.memory_space<vmem>>, vector<1x128xf32>
    %c0_144 = arith.constant 0 : index
    %c0_145 = arith.constant 0 : index
    %141 = vector.load %arg22[%c0_144, %c0_145] : memref<10x128xbf16, #tpu.memory_space<vmem>>, vector<8x128xbf16>
    %c0_146 = arith.constant 0 : index
    %c0_147 = arith.constant 0 : index
    %c0_148 = arith.constant 0 : index
    %142 = vector.load %arg6[%c0_146, %c0_147, %c0_148] : memref<3x128x128xbf16, #tpu.memory_space<vmem>>, vector<1x128x128xbf16>
    %143 = vector.shape_cast %142 : vector<1x128x128xbf16> to vector<128x128xbf16>
    %cst_149 = arith.constant dense<0.000000e+00> : vector<8x128xf32>
    %144 = tpu.matmul %141, %143, %cst_149 {dimension_numbers = #tpu.dot_dimension_numbers<[1], [0], [0], [1], [0, 0, 1, 1], [], []>} : vector<8x128xbf16>, vector<128x128xbf16>, vector<8x128xf32> -> vector<8x128xf32>
    %c1_150 = arith.constant 1 : index
    %c0_151 = arith.constant 0 : index
    %145 = vector.load %arg22[%c1_150, %c0_151] : memref<10x128xbf16, #tpu.memory_space<vmem>>, vector<8x128xbf16>
    %c1_152 = arith.constant 1 : index
    %c0_153 = arith.constant 0 : index
    %c0_154 = arith.constant 0 : index
    %146 = vector.load %arg6[%c1_152, %c0_153, %c0_154] : memref<3x128x128xbf16, #tpu.memory_space<vmem>>, vector<1x128x128xbf16>
    %147 = vector.shape_cast %146 : vector<1x128x128xbf16> to vector<128x128xbf16>
    %cst_155 = arith.constant dense<0.000000e+00> : vector<8x128xf32>
    %148 = tpu.matmul %145, %147, %cst_155 {dimension_numbers = #tpu.dot_dimension_numbers<[1], [0], [0], [1], [0, 0, 1, 1], [], []>} : vector<8x128xbf16>, vector<128x128xbf16>, vector<8x128xf32> -> vector<8x128xf32>
    %149 = arith.addf %144, %148 : vector<8x128xf32>
    %c2_156 = arith.constant 2 : index
    %c0_157 = arith.constant 0 : index
    %150 = vector.load %arg22[%c2_156, %c0_157] : memref<10x128xbf16, #tpu.memory_space<vmem>>, vector<8x128xbf16>
    %c2_158 = arith.constant 2 : index
    %c0_159 = arith.constant 0 : index
    %c0_160 = arith.constant 0 : index
    %151 = vector.load %arg6[%c2_158, %c0_159, %c0_160] : memref<3x128x128xbf16, #tpu.memory_space<vmem>>, vector<1x128x128xbf16>
    %152 = vector.shape_cast %151 : vector<1x128x128xbf16> to vector<128x128xbf16>
    %cst_161 = arith.constant dense<0.000000e+00> : vector<8x128xf32>
    %153 = tpu.matmul %150, %152, %cst_161 {dimension_numbers = #tpu.dot_dimension_numbers<[1], [0], [0], [1], [0, 0, 1, 1], [], []>} : vector<8x128xbf16>, vector<128x128xbf16>, vector<8x128xf32> -> vector<8x128xf32>
    %154 = arith.addf %149, %153 : vector<8x128xf32>
    %155 = vector.broadcast %140 : vector<1x128xf32> to vector<8x128xf32>
    %156 = arith.addf %154, %155 : vector<8x128xf32>
    %cst_162 = arith.constant 0.000000e+00 : f32
    %157 = vector.broadcast %cst_162 : f32 to vector<8x128xf32>
    %158 = arith.maximumf %156, %157 : vector<8x128xf32>
    %159 = arith.truncf %158 : vector<8x128xf32> to vector<8x128xbf16>
    %c2_163 = arith.constant 2 : index
    %c0_164 = arith.constant 0 : index
    %160 = vector.load %arg23[%c2_163, %c0_164] : memref<12x128xbf16, #tpu.memory_space<vmem>>, vector<8x128xbf16>
    tpu.vector_store %arg23[%c2_163, %c0_164], %159 {strides = array<i32>} : memref<12x128xbf16, #tpu.memory_space<vmem>>, vector<8x128xbf16>,
    %c0_165 = arith.constant 0 : index
    %c0_166 = arith.constant 0 : index
    %161 = vector.load %arg15[%c0_165, %c0_166] : memref<1x128xf32, #tpu.memory_space<vmem>>, vector<1x128xf32>
    %c0_167 = arith.constant 0 : index
    %c0_168 = arith.constant 0 : index
    %162 = vector.load %arg23[%c0_167, %c0_168] : memref<12x128xbf16, #tpu.memory_space<vmem>>, vector<8x128xbf16>
    %c0_169 = arith.constant 0 : index
    %c0_170 = arith.constant 0 : index
    %c0_171 = arith.constant 0 : index
    %163 = vector.load %arg7[%c0_169, %c0_170, %c0_171] : memref<5x128x128xbf16, #tpu.memory_space<vmem>>, vector<1x128x128xbf16>
    %164 = vector.shape_cast %163 : vector<1x128x128xbf16> to vector<128x128xbf16>
    %cst_172 = arith.constant dense<0.000000e+00> : vector<8x128xf32>
    %165 = tpu.matmul %162, %164, %cst_172 {dimension_numbers = #tpu.dot_dimension_numbers<[1], [0], [0], [1], [0, 0, 1, 1], [], []>} : vector<8x128xbf16>, vector<128x128xbf16>, vector<8x128xf32> -> vector<8x128xf32>
    %c1_173 = arith.constant 1 : index
    %c0_174 = arith.constant 0 : index
    %166 = vector.load %arg23[%c1_173, %c0_174] : memref<12x128xbf16, #tpu.memory_space<vmem>>, vector<8x128xbf16>
    %c1_175 = arith.constant 1 : index
    %c0_176 = arith.constant 0 : index
    %c0_177 = arith.constant 0 : index
    %167 = vector.load %arg7[%c1_175, %c0_176, %c0_177] : memref<5x128x128xbf16, #tpu.memory_space<vmem>>, vector<1x128x128xbf16>
    %168 = vector.shape_cast %167 : vector<1x128x128xbf16> to vector<128x128xbf16>
    %cst_178 = arith.constant dense<0.000000e+00> : vector<8x128xf32>
    %169 = tpu.matmul %166, %168, %cst_178 {dimension_numbers = #tpu.dot_dimension_numbers<[1], [0], [0], [1], [0, 0, 1, 1], [], []>} : vector<8x128xbf16>, vector<128x128xbf16>, vector<8x128xf32> -> vector<8x128xf32>
    %170 = arith.addf %165, %169 : vector<8x128xf32>
    %c2_179 = arith.constant 2 : index
    %c0_180 = arith.constant 0 : index
    %171 = vector.load %arg23[%c2_179, %c0_180] : memref<12x128xbf16, #tpu.memory_space<vmem>>, vector<8x128xbf16>
    %c2_181 = arith.constant 2 : index
    %c0_182 = arith.constant 0 : index
    %c0_183 = arith.constant 0 : index
    %172 = vector.load %arg7[%c2_181, %c0_182, %c0_183] : memref<5x128x128xbf16, #tpu.memory_space<vmem>>, vector<1x128x128xbf16>
    %173 = vector.shape_cast %172 : vector<1x128x128xbf16> to vector<128x128xbf16>
    %cst_184 = arith.constant dense<0.000000e+00> : vector<8x128xf32>
    %174 = tpu.matmul %171, %173, %cst_184 {dimension_numbers = #tpu.dot_dimension_numbers<[1], [0], [0], [1], [0, 0, 1, 1], [], []>} : vector<8x128xbf16>, vector<128x128xbf16>, vector<8x128xf32> -> vector<8x128xf32>
    %175 = arith.addf %170, %174 : vector<8x128xf32>
    %c3_185 = arith.constant 3 : index
    %c0_186 = arith.constant 0 : index
    %176 = vector.load %arg23[%c3_185, %c0_186] : memref<12x128xbf16, #tpu.memory_space<vmem>>, vector<8x128xbf16>
    %c3_187 = arith.constant 3 : index
    %c0_188 = arith.constant 0 : index
    %c0_189 = arith.constant 0 : index
    %177 = vector.load %arg7[%c3_187, %c0_188, %c0_189] : memref<5x128x128xbf16, #tpu.memory_space<vmem>>, vector<1x128x128xbf16>
    %178 = vector.shape_cast %177 : vector<1x128x128xbf16> to vector<128x128xbf16>
    %cst_190 = arith.constant dense<0.000000e+00> : vector<8x128xf32>
    %179 = tpu.matmul %176, %178, %cst_190 {dimension_numbers = #tpu.dot_dimension_numbers<[1], [0], [0], [1], [0, 0, 1, 1], [], []>} : vector<8x128xbf16>, vector<128x128xbf16>, vector<8x128xf32> -> vector<8x128xf32>
    %180 = arith.addf %175, %179 : vector<8x128xf32>
    %c4_191 = arith.constant 4 : index
    %c0_192 = arith.constant 0 : index
    %181 = vector.load %arg23[%c4_191, %c0_192] : memref<12x128xbf16, #tpu.memory_space<vmem>>, vector<8x128xbf16>
    %c4_193 = arith.constant 4 : index
    %c0_194 = arith.constant 0 : index
    %c0_195 = arith.constant 0 : index
    %182 = vector.load %arg7[%c4_193, %c0_194, %c0_195] : memref<5x128x128xbf16, #tpu.memory_space<vmem>>, vector<1x128x128xbf16>
    %183 = vector.shape_cast %182 : vector<1x128x128xbf16> to vector<128x128xbf16>
    %cst_196 = arith.constant dense<0.000000e+00> : vector<8x128xf32>
    %184 = tpu.matmul %181, %183, %cst_196 {dimension_numbers = #tpu.dot_dimension_numbers<[1], [0], [0], [1], [0, 0, 1, 1], [], []>} : vector<8x128xbf16>, vector<128x128xbf16>, vector<8x128xf32> -> vector<8x128xf32>
    %185 = arith.addf %180, %184 : vector<8x128xf32>
    %186 = vector.broadcast %161 : vector<1x128xf32> to vector<8x128xf32>
    %187 = arith.addf %185, %186 : vector<8x128xf32>
    %cst_197 = arith.constant 0.000000e+00 : f32
    %188 = vector.broadcast %cst_197 : f32 to vector<8x128xf32>
    %189 = arith.maximumf %187, %188 : vector<8x128xf32>
    %190 = vector.extract_strided_slice %189 {offsets = [0, 0], sizes = [1, 128], strides = [1, 1]} : vector<8x128xf32> to vector<1x128xf32>
    %191 = arith.truncf %190 : vector<1x128xf32> to vector<1x128xbf16>
    %c1_198 = arith.constant 1 : index
    %c0_199 = arith.constant 0 : index
    %192 = vector.load %arg24[%c1_198, %c0_199] : memref<6x128xbf16, #tpu.memory_space<vmem>>, vector<1x128xbf16>
    tpu.vector_store %arg24[%c1_198, %c0_199], %191 {strides = array<i32>} : memref<6x128xbf16, #tpu.memory_space<vmem>>, vector<1x128xbf16>,
    %193 = vector.extract_strided_slice %189 {offsets = [2, 0], sizes = [1, 128], strides = [1, 1]} : vector<8x128xf32> to vector<1x128xf32>
    %194 = arith.truncf %193 : vector<1x128xf32> to vector<1x128xbf16>
    %c2_200 = arith.constant 2 : index
    %c0_201 = arith.constant 0 : index
    %195 = vector.load %arg24[%c2_200, %c0_201] : memref<6x128xbf16, #tpu.memory_space<vmem>>, vector<1x128xbf16>
    tpu.vector_store %arg24[%c2_200, %c0_201], %194 {strides = array<i32>} : memref<6x128xbf16, #tpu.memory_space<vmem>>, vector<1x128xbf16>,
    %196 = vector.extract_strided_slice %189 {offsets = [4, 0], sizes = [1, 128], strides = [1, 1]} : vector<8x128xf32> to vector<1x128xf32>
    %197 = arith.truncf %196 : vector<1x128xf32> to vector<1x128xbf16>
    %c3_202 = arith.constant 3 : index
    %c0_203 = arith.constant 0 : index
    %198 = vector.load %arg24[%c3_202, %c0_203] : memref<6x128xbf16, #tpu.memory_space<vmem>>, vector<1x128xbf16>
    tpu.vector_store %arg24[%c3_202, %c0_203], %197 {strides = array<i32>} : memref<6x128xbf16, #tpu.memory_space<vmem>>, vector<1x128xbf16>,
    %199 = vector.extract_strided_slice %189 {offsets = [6, 0], sizes = [1, 128], strides = [1, 1]} : vector<8x128xf32> to vector<1x128xf32>
    %200 = arith.truncf %199 : vector<1x128xf32> to vector<1x128xbf16>
    %c4_204 = arith.constant 4 : index
    %c0_205 = arith.constant 0 : index
    %201 = vector.load %arg24[%c4_204, %c0_205] : memref<6x128xbf16, #tpu.memory_space<vmem>>, vector<1x128xbf16>
    tpu.vector_store %arg24[%c4_204, %c0_205], %200 {strides = array<i32>} : memref<6x128xbf16, #tpu.memory_space<vmem>>, vector<1x128xbf16>,
    %c0_206 = arith.constant 0 : index
    %c0_207 = arith.constant 0 : index
    %202 = vector.load %arg16[%c0_206, %c0_207] : memref<1x128xf32, #tpu.memory_space<vmem>>, vector<1x128xf32>
    %c0_208 = arith.constant 0 : index
    %c0_209 = arith.constant 0 : index
    %203 = vector.load %arg24[%c0_208, %c0_209] : memref<6x128xbf16, #tpu.memory_space<vmem>>, vector<4x128xbf16>
    %c0_210 = arith.constant 0 : index
    %c0_211 = arith.constant 0 : index
    %c0_212 = arith.constant 0 : index
    %204 = vector.load %arg8[%c0_210, %c0_211, %c0_212] : memref<3x128x128xbf16, #tpu.memory_space<vmem>>, vector<1x128x128xbf16>
    %205 = vector.shape_cast %204 : vector<1x128x128xbf16> to vector<128x128xbf16>
    %cst_213 = arith.constant dense<0.000000e+00> : vector<4x128xf32>
    %206 = tpu.matmul %203, %205, %cst_213 {dimension_numbers = #tpu.dot_dimension_numbers<[1], [0], [0], [1], [0, 0, 1, 1], [], []>} : vector<4x128xbf16>, vector<128x128xbf16>, vector<4x128xf32> -> vector<4x128xf32>
    %c1_214 = arith.constant 1 : index
    %c0_215 = arith.constant 0 : index
    %207 = vector.load %arg24[%c1_214, %c0_215] : memref<6x128xbf16, #tpu.memory_space<vmem>>, vector<4x128xbf16>
    %c1_216 = arith.constant 1 : index
    %c0_217 = arith.constant 0 : index
    %c0_218 = arith.constant 0 : index
    %208 = vector.load %arg8[%c1_216, %c0_217, %c0_218] : memref<3x128x128xbf16, #tpu.memory_space<vmem>>, vector<1x128x128xbf16>
    %209 = vector.shape_cast %208 : vector<1x128x128xbf16> to vector<128x128xbf16>
    %cst_219 = arith.constant dense<0.000000e+00> : vector<4x128xf32>
    %210 = tpu.matmul %207, %209, %cst_219 {dimension_numbers = #tpu.dot_dimension_numbers<[1], [0], [0], [1], [0, 0, 1, 1], [], []>} : vector<4x128xbf16>, vector<128x128xbf16>, vector<4x128xf32> -> vector<4x128xf32>
    %211 = arith.addf %206, %210 : vector<4x128xf32>
    %c2_220 = arith.constant 2 : index
    %c0_221 = arith.constant 0 : index
    %212 = vector.load %arg24[%c2_220, %c0_221] : memref<6x128xbf16, #tpu.memory_space<vmem>>, vector<4x128xbf16>
    %c2_222 = arith.constant 2 : index
    %c0_223 = arith.constant 0 : index
    %c0_224 = arith.constant 0 : index
    %213 = vector.load %arg8[%c2_222, %c0_223, %c0_224] : memref<3x128x128xbf16, #tpu.memory_space<vmem>>, vector<1x128x128xbf16>
    %214 = vector.shape_cast %213 : vector<1x128x128xbf16> to vector<128x128xbf16>
    %cst_225 = arith.constant dense<0.000000e+00> : vector<4x128xf32>
    %215 = tpu.matmul %212, %214, %cst_225 {dimension_numbers = #tpu.dot_dimension_numbers<[1], [0], [0], [1], [0, 0, 1, 1], [], []>} : vector<4x128xbf16>, vector<128x128xbf16>, vector<4x128xf32> -> vector<4x128xf32>
    %216 = arith.addf %211, %215 : vector<4x128xf32>
    %217 = vector.broadcast %202 : vector<1x128xf32> to vector<4x128xf32>
    %218 = arith.addf %216, %217 : vector<4x128xf32>
    %cst_226 = arith.constant 0.000000e+00 : f32
    %219 = vector.broadcast %cst_226 : f32 to vector<4x128xf32>
    %220 = arith.maximumf %218, %219 : vector<4x128xf32>
    %221 = arith.truncf %220 : vector<4x128xf32> to vector<4x128xbf16>
    %c1_227 = arith.constant 1 : index
    %c0_228 = arith.constant 0 : index
    %222 = vector.load %arg25[%c1_227, %c0_228] : memref<6x128xbf16, #tpu.memory_space<vmem>>, vector<4x128xbf16>
    tpu.vector_store %arg25[%c1_227, %c0_228], %221 {strides = array<i32>} : memref<6x128xbf16, #tpu.memory_space<vmem>>, vector<4x128xbf16>,
    %c0_229 = arith.constant 0 : index
    %c0_230 = arith.constant 0 : index
    %223 = vector.load %arg17[%c0_229, %c0_230] : memref<1x128xf32, #tpu.memory_space<vmem>>, vector<1x128xf32>
    %c0_231 = arith.constant 0 : index
    %c0_232 = arith.constant 0 : index
    %224 = vector.load %arg25[%c0_231, %c0_232] : memref<6x128xbf16, #tpu.memory_space<vmem>>, vector<4x128xbf16>
    %c0_233 = arith.constant 0 : index
    %c0_234 = arith.constant 0 : index
    %c0_235 = arith.constant 0 : index
    %225 = vector.load %arg9[%c0_233, %c0_234, %c0_235] : memref<3x128x128xbf16, #tpu.memory_space<vmem>>, vector<1x128x128xbf16>
    %226 = vector.shape_cast %225 : vector<1x128x128xbf16> to vector<128x128xbf16>
    %cst_236 = arith.constant dense<0.000000e+00> : vector<4x128xf32>
    %227 = tpu.matmul %224, %226, %cst_236 {dimension_numbers = #tpu.dot_dimension_numbers<[1], [0], [0], [1], [0, 0, 1, 1], [], []>} : vector<4x128xbf16>, vector<128x128xbf16>, vector<4x128xf32> -> vector<4x128xf32>
    %c1_237 = arith.constant 1 : index
    %c0_238 = arith.constant 0 : index
    %228 = vector.load %arg25[%c1_237, %c0_238] : memref<6x128xbf16, #tpu.memory_space<vmem>>, vector<4x128xbf16>
    %c1_239 = arith.constant 1 : index
    %c0_240 = arith.constant 0 : index
    %c0_241 = arith.constant 0 : index
    %229 = vector.load %arg9[%c1_239, %c0_240, %c0_241] : memref<3x128x128xbf16, #tpu.memory_space<vmem>>, vector<1x128x128xbf16>
    %230 = vector.shape_cast %229 : vector<1x128x128xbf16> to vector<128x128xbf16>
    %cst_242 = arith.constant dense<0.000000e+00> : vector<4x128xf32>
    %231 = tpu.matmul %228, %230, %cst_242 {dimension_numbers = #tpu.dot_dimension_numbers<[1], [0], [0], [1], [0, 0, 1, 1], [], []>} : vector<4x128xbf16>, vector<128x128xbf16>, vector<4x128xf32> -> vector<4x128xf32>
    %232 = arith.addf %227, %231 : vector<4x128xf32>
    %c2_243 = arith.constant 2 : index
    %c0_244 = arith.constant 0 : index
    %233 = vector.load %arg25[%c2_243, %c0_244] : memref<6x128xbf16, #tpu.memory_space<vmem>>, vector<4x128xbf16>
    %c2_245 = arith.constant 2 : index
    %c0_246 = arith.constant 0 : index
    %c0_247 = arith.constant 0 : index
    %234 = vector.load %arg9[%c2_245, %c0_246, %c0_247] : memref<3x128x128xbf16, #tpu.memory_space<vmem>>, vector<1x128x128xbf16>
    %235 = vector.shape_cast %234 : vector<1x128x128xbf16> to vector<128x128xbf16>
    %cst_248 = arith.constant dense<0.000000e+00> : vector<4x128xf32>
    %236 = tpu.matmul %233, %235, %cst_248 {dimension_numbers = #tpu.dot_dimension_numbers<[1], [0], [0], [1], [0, 0, 1, 1], [], []>} : vector<4x128xbf16>, vector<128x128xbf16>, vector<4x128xf32> -> vector<4x128xf32>
    %237 = arith.addf %232, %236 : vector<4x128xf32>
    %238 = vector.broadcast %223 : vector<1x128xf32> to vector<4x128xf32>
    %239 = arith.addf %237, %238 : vector<4x128xf32>
    %c0_249 = arith.constant 0 : index
    %c0_250 = arith.constant 0 : index
    %c0_251 = arith.constant 0 : index
    %240 = vector.load %arg18[%c0_249, %c0_250, %c0_251] : memref<1x4x128xf32, #tpu.memory_space<vmem>>, vector<1x4x128xf32>
    %241 = vector.shape_cast %240 : vector<1x4x128xf32> to vector<4x128xf32>
    %242 = vector.shape_cast %239 : vector<4x128xf32> to vector<1x4x128xf32>
    tpu.vector_store %arg18[%c0_249, %c0_250, %c0_251], %242 {strides = array<i32>} : memref<1x4x128xf32, #tpu.memory_space<vmem>>, vector<1x4x128xf32>,
    return
  }
  func.func @transform_0(%arg0: i32) -> (i32, i32, i32) {
    %c0_i32 = arith.constant 0 : i32
    %c0_i32_0 = arith.constant 0 : i32
    %c0_i32_1 = arith.constant 0 : i32
    return %arg0, %c0_i32, %c0_i32_0 : i32, i32, i32
  }
  func.func @transform_1(%arg0: i32) -> (i32, i32, i32) {
    %c0_i32 = arith.constant 0 : i32
    %c0_i32_0 = arith.constant 0 : i32
    %c0_i32_1 = arith.constant 0 : i32
    %c0_i32_2 = arith.constant 0 : i32
    return %c0_i32, %c0_i32_0, %c0_i32_1 : i32, i32, i32
  }
  func.func @transform_2(%arg0: i32) -> (i32, i32, i32) {
    %c0_i32 = arith.constant 0 : i32
    %c0_i32_0 = arith.constant 0 : i32
    %c0_i32_1 = arith.constant 0 : i32
    %c0_i32_2 = arith.constant 0 : i32
    return %c0_i32, %c0_i32_0, %c0_i32_1 : i32, i32, i32
  }
  func.func @transform_3(%arg0: i32) -> (i32, i32, i32) {
    %c0_i32 = arith.constant 0 : i32
    %c0_i32_0 = arith.constant 0 : i32
    %c0_i32_1 = arith.constant 0 : i32
    %c0_i32_2 = arith.constant 0 : i32
    return %c0_i32, %c0_i32_0, %c0_i32_1 : i32, i32, i32
  }
  func.func @transform_4(%arg0: i32) -> (i32, i32, i32) {
    %c0_i32 = arith.constant 0 : i32
    %c0_i32_0 = arith.constant 0 : i32
    %c0_i32_1 = arith.constant 0 : i32
    %c0_i32_2 = arith.constant 0 : i32
    return %c0_i32, %c0_i32_0, %c0_i32_1 : i32, i32, i32
  }
  func.func @transform_5(%arg0: i32) -> (i32, i32, i32) {
    %c0_i32 = arith.constant 0 : i32
    %c0_i32_0 = arith.constant 0 : i32
    %c0_i32_1 = arith.constant 0 : i32
    %c0_i32_2 = arith.constant 0 : i32
    return %c0_i32, %c0_i32_0, %c0_i32_1 : i32, i32, i32
  }
  func.func @transform_6(%arg0: i32) -> (i32, i32, i32) {
    %c0_i32 = arith.constant 0 : i32
    %c0_i32_0 = arith.constant 0 : i32
    %c0_i32_1 = arith.constant 0 : i32
    %c0_i32_2 = arith.constant 0 : i32
    return %c0_i32, %c0_i32_0, %c0_i32_1 : i32, i32, i32
  }
  func.func @transform_7(%arg0: i32) -> (i32, i32, i32) {
    %c0_i32 = arith.constant 0 : i32
    %c0_i32_0 = arith.constant 0 : i32
    %c0_i32_1 = arith.constant 0 : i32
    %c0_i32_2 = arith.constant 0 : i32
    return %c0_i32, %c0_i32_0, %c0_i32_1 : i32, i32, i32
  }
  func.func @transform_8(%arg0: i32) -> (i32, i32, i32) {
    %c0_i32 = arith.constant 0 : i32
    %c0_i32_0 = arith.constant 0 : i32
    %c0_i32_1 = arith.constant 0 : i32
    %c0_i32_2 = arith.constant 0 : i32
    return %c0_i32, %c0_i32_0, %c0_i32_1 : i32, i32, i32
  }
  func.func @transform_9(%arg0: i32) -> (i32, i32) {
    %c0_i32 = arith.constant 0 : i32
    %c0_i32_0 = arith.constant 0 : i32
    %c0_i32_1 = arith.constant 0 : i32
    return %c0_i32, %c0_i32_0 : i32, i32
  }
  func.func @transform_10(%arg0: i32) -> (i32, i32) {
    %c0_i32 = arith.constant 0 : i32
    %c0_i32_0 = arith.constant 0 : i32
    %c0_i32_1 = arith.constant 0 : i32
    return %c0_i32, %c0_i32_0 : i32, i32
  }
  func.func @transform_11(%arg0: i32) -> (i32, i32) {
    %c0_i32 = arith.constant 0 : i32
    %c0_i32_0 = arith.constant 0 : i32
    %c0_i32_1 = arith.constant 0 : i32
    return %c0_i32, %c0_i32_0 : i32, i32
  }
  func.func @transform_12(%arg0: i32) -> (i32, i32) {
    %c0_i32 = arith.constant 0 : i32
    %c0_i32_0 = arith.constant 0 : i32
    %c0_i32_1 = arith.constant 0 : i32
    return %c0_i32, %c0_i32_0 : i32, i32
  }
  func.func @transform_13(%arg0: i32) -> (i32, i32) {
    %c0_i32 = arith.constant 0 : i32
    %c0_i32_0 = arith.constant 0 : i32
    %c0_i32_1 = arith.constant 0 : i32
    return %c0_i32, %c0_i32_0 : i32, i32
  }
  func.func @transform_14(%arg0: i32) -> (i32, i32) {
    %c0_i32 = arith.constant 0 : i32
    %c0_i32_0 = arith.constant 0 : i32
    %c0_i32_1 = arith.constant 0 : i32
    return %c0_i32, %c0_i32_0 : i32, i32
  }
  func.func @transform_15(%arg0: i32) -> (i32, i32) {
    %c0_i32 = arith.constant 0 : i32
    %c0_i32_0 = arith.constant 0 : i32
    %c0_i32_1 = arith.constant 0 : i32
    return %c0_i32, %c0_i32_0 : i32, i32
  }
  func.func @transform_16(%arg0: i32) -> (i32, i32) {
    %c0_i32 = arith.constant 0 : i32
    %c0_i32_0 = arith.constant 0 : i32
    %c0_i32_1 = arith.constant 0 : i32
    return %c0_i32, %c0_i32_0 : i32, i32
  }
  func.func @transform_17(%arg0: i32) -> (i32, i32, i32) {
    %c0_i32 = arith.constant 0 : i32
    %c0_i32_0 = arith.constant 0 : i32
    %c0_i32_1 = arith.constant 0 : i32
    return %arg0, %c0_i32, %c0_i32_0 : i32, i32, i32
  }
}

</mosaic_0001>

<llo_original>
// kernel: _lambda_.1
$region0: #{_lambda_.1}
  #allocation0 [shape = 'u32[]', space=smem, size = 0x4, offset = 0x4, fixed_abs, tag = 'smem constant byte address 0x4 - core index']
  #allocation1 [shape = 'u32[72,128]{1,0:T(1,128)}', space=vmem, size = 0x9000, scoped, tag = 'internal scratch']
  #allocation2 [shape = 'bf16[18,128]{1,0:T(8,128)(2,1)}', space=vmem, size = 0x1800, scoped, tag = 'scratch operand']
  #allocation3 [shape = 'bf16[20,128]{1,0:T(8,128)(2,1)}', space=vmem, size = 0x1800, scoped, tag = 'scratch operand']
  #allocation4 [shape = 'bf16[10,128]{1,0:T(8,128)(2,1)}', space=vmem, size = 0x1000, scoped, tag = 'scratch operand']
  #allocation5 [shape = 'bf16[10,128]{1,0:T(8,128)(2,1)}', space=vmem, size = 0x1000, scoped, tag = 'scratch operand']
  #allocation6 [shape = 'bf16[12,128]{1,0:T(8,128)(2,1)}', space=vmem, size = 0x1000, scoped, tag = 'scratch operand']
  #allocation7 [shape = 'bf16[6,128]{1,0:T(8,128)(2,1)}', space=vmem, size = 0x800, scoped, tag = 'scratch operand']
  #allocation8 [shape = 'bf16[6,128]{1,0:T(8,128)(2,1)}', space=vmem, size = 0x800, scoped, tag = 'scratch operand']
  %s0 = inlined_call_operand.vmem [shape: bf16[2,18,128], index: 0, kind: input, shape index: {}]
  %s1 = inlined_call_operand.hbm [shape: bf16[3,128,128], index: 1, kind: input, shape index: {}]
  %s2 = inlined_call_operand.hbm [shape: bf16[3,128,128], index: 2, kind: input, shape index: {}]
  %s3 = inlined_call_operand.hbm [shape: bf16[5,128,128], index: 3, kind: input, shape index: {}]
  %s4 = inlined_call_operand.hbm [shape: bf16[3,128,128], index: 4, kind: input, shape index: {}]
  %s5 = inlined_call_operand.hbm [shape: bf16[3,128,128], index: 5, kind: input, shape index: {}]
  %s6 = inlined_call_operand.vmem [shape: bf16[5,128,128], index: 6, kind: input, shape index: {}]
  %s7 = inlined_call_operand.hbm [shape: bf16[3,128,128], index: 7, kind: input, shape index: {}]
  %s8 = inlined_call_operand.vmem [shape: bf16[3,128,128], index: 8, kind: input, shape index: {}]
  %s9 = inlined_call_operand.vmem [shape: f32[1,128], index: 9, kind: input, shape index: {}]
  %s10 = inlined_call_operand.vmem [shape: f32[1,128], index: 10, kind: input, shape index: {}]
  %s11 = inlined_call_operand.vmem [shape: f32[1,128], index: 11, kind: input, shape index: {}]
  %s12 = inlined_call_operand.vmem [shape: f32[1,128], index: 12, kind: input, shape index: {}]
  %s13 = inlined_call_operand.vmem [shape: f32[1,128], index: 13, kind: input, shape index: {}]
  %s14 = inlined_call_operand.vmem [shape: f32[1,128], index: 14, kind: input, shape index: {}]
  %s15 = inlined_call_operand.vmem [shape: f32[1,128], index: 15, kind: input, shape index: {}]
  %s16 = inlined_call_operand.vmem [shape: f32[1,128], index: 16, kind: input, shape index: {}]
  %s17 = inlined_call_operand.vmem [shape: f32[2,4,128], index: 17, kind: output, shape index: {}]
  %s18 = sld [smem:[#allocation0]]
  $region125: #{_lambda_.1} parent=0
    _
  %s20 = ssub.s32 1, %s18
  %s21 = scalar_select 0, %s20, %s18
  $region1: #{_lambda_.1} parent=0
    #allocation9 [shape = 'u8[98304]{0}', space=vmem, size = 0x18000, scoped, tag = 'input window, operand 1, single buffered']
    #allocation10 [shape = 's32[2]{0}', space=sflag, size = 0x8, scoped, tag = 'scoped memory for _lambda_.1']
    #allocation11 [shape = 'u8[98304]{0}', space=vmem, size = 0x18000, scoped, tag = 'input window, operand 2, single buffered']
    #allocation12 [shape = 's32[1]{0}', space=sflag, size = 0x4, scoped, tag = 'scoped memory for _lambda_.1']
    #allocation13 [shape = 'u8[163840]{0}', space=vmem, size = 0x28000, scoped, tag = 'input window, operand 3, single buffered']
    #allocation14 [shape = 'u8[98304]{0}', space=vmem, size = 0x18000, scoped, tag = 'input window, operand 4, single buffered']
    #allocation15 [shape = 's32[1]{0}', space=sflag, size = 0x4, scoped, tag = 'scoped memory for _lambda_.1']
    #allocation16 [shape = 'u8[98304]{0}', space=vmem, size = 0x18000, scoped, tag = 'input window, operand 5, single buffered']
    #allocation17 [shape = 'u8[98304]{0}', space=vmem, size = 0x18000, scoped, tag = 'input window, operand 7, single buffered']
    #allocation18 [shape = 's32[1]{0}', space=sflag, size = 0x4, scoped, tag = 'scoped memory for _lambda_.1']
    %22 = vsyncpa [#allocation10], 0
    %23 = vsyncpa [#allocation12], 0
    %24 = vsyncpa [#allocation15], 0
    %25 = vsyncpa [#allocation18], 0
    loop: start=0, step=1, limit=4
    $region2: #{_lambda_.1} parent=1 // loop_pre_header
      _
    $region3: #{_lambda_.1} parent=1 // loop_header
      %s27 = sphi 0, %s31
      %p28 = scmp.ge.s32.totalorder %s27, 4
      %s37 = sphi 0, %s39
      %s40 = sphi 0, %s37
      %s41 = sphi 0, %s40
      %s57 = sphi 0, %s41
      %s61 = sphi 0, %s61
      %s63 = sphi 0, %s61
      %s64 = sphi 0, %s63
      %s78 = sphi 0, %s64
      %s82 = sphi 0, %s82
      %s84 = sphi 0, %s82
      %s85 = sphi 0, %s84
      %s99 = sphi 0, %s85
      %s103 = sphi 0, %s103
      %s105 = sphi 0, %s103
      %s106 = sphi 0, %s105
      %s120 = sphi 0, %s106
      %s124 = sphi 0, %s124
      %s126 = sphi 0, %s124
      %s127 = sphi 0, %s126
      %s141 = sphi 0, %s127
      %s145 = sphi 0, %s145
      %s147 = sphi 0, %s145
      %s148 = sphi 0, %s147
      %s162 = sphi 0, %s148
      %s166 = sphi 0, %s166
      %s168 = sphi 0, %s166
      %s169 = sphi 0, %s168
      %s183 = sphi 0, %s169
      %s187 = sphi 0, %s187
      %s189 = sphi 0, %s187
      %s190 = sphi 0, %s189
      %s204 = sphi 0, %s190
      %s208 = sphi 0, %s208
      %s210 = sphi 0, %s208
      %s211 = sphi 0, %s210
      %s225 = sphi 0, %s211
      %s229 = sphi 0, %s229
      %s231 = sphi 0, %s229
      %s232 = sphi 0, %s231
      %s246 = sphi 0, %s232
      %s250 = sphi 0, %s250
      %s252 = sphi 0, %s250
      %s253 = sphi 0, %s252
      %s267 = sphi 0, %s253
      %s271 = sphi 0, %s271
      %s273 = sphi 0, %s271
      %s274 = sphi 0, %s273
      %s288 = sphi 0, %s274
      %s292 = sphi 0, %s292
      %s294 = sphi 0, %s292
      %s295 = sphi 0, %s294
      %s309 = sphi 0, %s295
      %s313 = sphi 0, %s313
      %s315 = sphi 0, %s313
      %s316 = sphi 0, %s315
      %s330 = sphi 0, %s316
      %s334 = sphi 0, %s334
      %s336 = sphi 0, %s334
      %s337 = sphi 0, %s336
      %s351 = sphi 0, %s337
      %s355 = sphi 0, %s355
      %s357 = sphi 0, %s355
      %s358 = sphi 0, %s357
      %s372 = sphi 0, %s358
      %s376 = sphi 0, %s376
      %s378 = sphi 0, %s376
      %s379 = sphi 0, %s378
      %s393 = sphi 0, %s379
      %s399 = sphi 0, %s401
      %s402 = sphi 0, %s399
      %s403 = sphi 0, %s402
      %s419 = sphi 0, %s403
    $region4: #{_lambda_.1} parent=1 // loop_header_branch
      %30 = sbr.rel (%p28) target = $region8
    $region5: #{_lambda_.1} parent=1 // loop_body
      %s32 = ssub.s32 %s27, 1
      %s33 = ssub.s32 %s27, 2
      %s34 = sadd.s32 %s27, 1
      %s35 = ssub.s32 %s27, %s34
      %p36 = scmp.eq.s32.totalorder %s35, 0
      %s38 = sadd.s32 %s37, 1
      %s39 = scalar_select %p36, %s37, %s38
      %p42 = pneg %p36
      %p43 = scmp.eq.s32.totalorder %s27, 1
      %p44 = por %p42, %p43
      %p45 = scmp.ne.s32.totalorder %s37, %s40
      %p46 = scmp.eq.s32.totalorder %s27, 0
      %p47 = por %p45, %p46
      %p48 = scmp.ne.s32.totalorder %s37, %s40
      %p49 = scmp.eq.s32.totalorder %s32, 1
      %p50 = por %p48, %p49
      %p51 = scmp.ne.s32.totalorder %s40, %s41
      %p52 = scmp.eq.s32.totalorder %s32, 0
      %p53 = por %p51, %p52
      %p54 = scmp.ne.s32.totalorder %s40, %s41
      %p55 = scmp.eq.s32.totalorder %s33, 1
      %p56 = por %p54, %p55
      %p58 = scmp.ne.s32.totalorder %s41, %s57
      %p59 = scmp.eq.s32.totalorder %s33, 0
      %p60 = por %p58, %p59
      %s62 = sadd.s32 %s61, 1
      %p65 = scmp.eq.s32.totalorder %s27, 1
      %p66 = scmp.ne.s32.totalorder %s61, %s63
      %p67 = scmp.eq.s32.totalorder %s27, 0
      %p68 = por %p66, %p67
      %p69 = scmp.ne.s32.totalorder %s61, %s63
      %p70 = scmp.eq.s32.totalorder %s32, 1
      %p71 = por %p69, %p70
      %p72 = scmp.ne.s32.totalorder %s63, %s64
      %p73 = scmp.eq.s32.totalorder %s32, 0
      %p74 = por %p72, %p73
      %p75 = scmp.ne.s32.totalorder %s63, %s64
      %p76 = scmp.eq.s32.totalorder %s33, 1
      %p77 = por %p75, %p76
      %p79 = scmp.ne.s32.totalorder %s64, %s78
      %p80 = scmp.eq.s32.totalorder %s33, 0
      %p81 = por %p79, %p80
      %s83 = sadd.s32 %s82, 1
      %p86 = scmp.eq.s32.totalorder %s27, 1
      %p87 = scmp.ne.s32.totalorder %s82, %s84
      %p88 = scmp.eq.s32.totalorder %s27, 0
      %p89 = por %p87, %p88
      %p90 = scmp.ne.s32.totalorder %s82, %s84
      %p91 = scmp.eq.s32.totalorder %s32, 1
      %p92 = por %p90, %p91
      %p93 = scmp.ne.s32.totalorder %s84, %s85
      %p94 = scmp.eq.s32.totalorder %s32, 0
      %p95 = por %p93, %p94
      %p96 = scmp.ne.s32.totalorder %s84, %s85
      %p97 = scmp.eq.s32.totalorder %s33, 1
      %p98 = por %p96, %p97
      %p100 = scmp.ne.s32.totalorder %s85, %s99
      %p101 = scmp.eq.s32.totalorder %s33, 0
      %p102 = por %p100, %p101
      %s104 = sadd.s32 %s103, 1
      %p107 = scmp.eq.s32.totalorder %s27, 1
      %p108 = scmp.ne.s32.totalorder %s103, %s105
      %p109 = scmp.eq.s32.totalorder %s27, 0
      %p110 = por %p108, %p109
      %p111 = scmp.ne.s32.totalorder %s103, %s105
      %p112 = scmp.eq.s32.totalorder %s32, 1
      %p113 = por %p111, %p112
      %p114 = scmp.ne.s32.totalorder %s105, %s106
      %p115 = scmp.eq.s32.totalorder %s32, 0
      %p116 = por %p114, %p115
      %p117 = scmp.ne.s32.totalorder %s105, %s106
      %p118 = scmp.eq.s32.totalorder %s33, 1
      %p119 = por %p117, %p118
      %p121 = scmp.ne.s32.totalorder %s106, %s120
      %p122 = scmp.eq.s32.totalorder %s33, 0
      %p123 = por %p121, %p122
      %s125 = sadd.s32 %s124, 1
      %p128 = scmp.eq.s32.totalorder %s27, 1
      %p129 = scmp.ne.s32.totalorder %s124, %s126
      %p130 = scmp.eq.s32.totalorder %s27, 0
      %p131 = por %p129, %p130
      %p132 = scmp.ne.s32.totalorder %s124, %s126
      %p133 = scmp.eq.s32.totalorder %s32, 1
      %p134 = por %p132, %p133
      %p135 = scmp.ne.s32.totalorder %s126, %s127
      %p136 = scmp.eq.s32.totalorder %s32, 0
      %p137 = por %p135, %p136
      %p138 = scmp.ne.s32.totalorder %s126, %s127
      %p139 = scmp.eq.s32.totalorder %s33, 1
      %p140 = por %p138, %p139
      %p142 = scmp.ne.s32.totalorder %s127, %s141
      %p143 = scmp.eq.s32.totalorder %s33, 0
      %p144 = por %p142, %p143
      %s146 = sadd.s32 %s145, 1
      %p149 = scmp.eq.s32.totalorder %s27, 1
      %p150 = scmp.ne.s32.totalorder %s145, %s147
      %p151 = scmp.eq.s32.totalorder %s27, 0
      %p152 = por %p150, %p151
      %p153 = scmp.ne.s32.totalorder %s145, %s147
      %p154 = scmp.eq.s32.totalorder %s32, 1
      %p155 = por %p153, %p154
      %p156 = scmp.ne.s32.totalorder %s147, %s148
      %p157 = scmp.eq.s32.totalorder %s32, 0
      %p158 = por %p156, %p157
      %p159 = scmp.ne.s32.totalorder %s147, %s148
      %p160 = scmp.eq.s32.totalorder %s33, 1
      %p161 = por %p159, %p160
      %p163 = scmp.ne.s32.totalorder %s148, %s162
      %p164 = scmp.eq.s32.totalorder %s33, 0
      %p165 = por %p163, %p164
      %s167 = sadd.s32 %s166, 1
      %p170 = scmp.eq.s32.totalorder %s27, 1
      %p171 = scmp.ne.s32.totalorder %s166, %s168
      %p172 = scmp.eq.s32.totalorder %s27, 0
      %p173 = por %p171, %p172
      %p174 = scmp.ne.s32.totalorder %s166, %s168
      %p175 = scmp.eq.s32.totalorder %s32, 1
      %p176 = por %p174, %p175
      %p177 = scmp.ne.s32.totalorder %s168, %s169
      %p178 = scmp.eq.s32.totalorder %s32, 0
      %p179 = por %p177, %p178
      %p180 = scmp.ne.s32.totalorder %s168, %s169
      %p181 = scmp.eq.s32.totalorder %s33, 1
      %p182 = por %p180, %p181
      %p184 = scmp.ne.s32.totalorder %s169, %s183
      %p185 = scmp.eq.s32.totalorder %s33, 0
      %p186 = por %p184, %p185
      %s188 = sadd.s32 %s187, 1
      %p191 = scmp.eq.s32.totalorder %s27, 1
      %p192 = scmp.ne.s32.totalorder %s187, %s189
      %p193 = scmp.eq.s32.totalorder %s27, 0
      %p194 = por %p192, %p193
      %p195 = scmp.ne.s32.totalorder %s187, %s189
      %p196 = scmp.eq.s32.totalorder %s32, 1
      %p197 = por %p195, %p196
      %p198 = scmp.ne.s32.totalorder %s189, %s190
      %p199 = scmp.eq.s32.totalorder %s32, 0
      %p200 = por %p198, %p199
      %p201 = scmp.ne.s32.totalorder %s189, %s190
      %p202 = scmp.eq.s32.totalorder %s33, 1
      %p203 = por %p201, %p202
      %p205 = scmp.ne.s32.totalorder %s190, %s204
      %p206 = scmp.eq.s32.totalorder %s33, 0
      %p207 = por %p205, %p206
      %s209 = sadd.s32 %s208, 1
      %p212 = scmp.eq.s32.totalorder %s27, 1
      %p213 = scmp.ne.s32.totalorder %s208, %s210
      %p214 = scmp.eq.s32.totalorder %s27, 0
      %p215 = por %p213, %p214
      %p216 = scmp.ne.s32.totalorder %s208, %s210
      %p217 = scmp.eq.s32.totalorder %s32, 1
      %p218 = por %p216, %p217
      %p219 = scmp.ne.s32.totalorder %s210, %s211
      %p220 = scmp.eq.s32.totalorder %s32, 0
      %p221 = por %p219, %p220
      %p222 = scmp.ne.s32.totalorder %s210, %s211
      %p223 = scmp.eq.s32.totalorder %s33, 1
      %p224 = por %p222, %p223
      %p226 = scmp.ne.s32.totalorder %s211, %s225
      %p227 = scmp.eq.s32.totalorder %s33, 0
      %p228 = por %p226, %p227
      %s230 = sadd.s32 %s229, 1
      %p233 = scmp.eq.s32.totalorder %s27, 1
      %p234 = scmp.ne.s32.totalorder %s229, %s231
      %p235 = scmp.eq.s32.totalorder %s27, 0
      %p236 = por %p234, %p235
      %p237 = scmp.ne.s32.totalorder %s229, %s231
      %p238 = scmp.eq.s32.totalorder %s32, 1
      %p239 = por %p237, %p238
      %p240 = scmp.ne.s32.totalorder %s231, %s232
      %p241 = scmp.eq.s32.totalorder %s32, 0
      %p242 = por %p240, %p241
      %p243 = scmp.ne.s32.totalorder %s231, %s232
      %p244 = scmp.eq.s32.totalorder %s33, 1
      %p245 = por %p243, %p244
      %p247 = scmp.ne.s32.totalorder %s232, %s246
      %p248 = scmp.eq.s32.totalorder %s33, 0
      %p249 = por %p247, %p248
      %s251 = sadd.s32 %s250, 1
      %p254 = scmp.eq.s32.totalorder %s27, 1
      %p255 = scmp.ne.s32.totalorder %s250, %s252
      %p256 = scmp.eq.s32.totalorder %s27, 0
      %p257 = por %p255, %p256
      %p258 = scmp.ne.s32.totalorder %s250, %s252
      %p259 = scmp.eq.s32.totalorder %s32, 1
      %p260 = por %p258, %p259
      %p261 = scmp.ne.s32.totalorder %s252, %s253
      %p262 = scmp.eq.s32.totalorder %s32, 0
      %p263 = por %p261, %p262
      %p264 = scmp.ne.s32.totalorder %s252, %s253
      %p265 = scmp.eq.s32.totalorder %s33, 1
      %p266 = por %p264, %p265
      %p268 = scmp.ne.s32.totalorder %s253, %s267
      %p269 = scmp.eq.s32.totalorder %s33, 0
      %p270 = por %p268, %p269
      %s272 = sadd.s32 %s271, 1
      %p275 = scmp.eq.s32.totalorder %s27, 1
      %p276 = scmp.ne.s32.totalorder %s271, %s273
      %p277 = scmp.eq.s32.totalorder %s27, 0
      %p278 = por %p276, %p277
      %p279 = scmp.ne.s32.totalorder %s271, %s273
      %p280 = scmp.eq.s32.totalorder %s32, 1
      %p281 = por %p279, %p280
      %p282 = scmp.ne.s32.totalorder %s273, %s274
      %p283 = scmp.eq.s32.totalorder %s32, 0
      %p284 = por %p282, %p283
      %p285 = scmp.ne.s32.totalorder %s273, %s274
      %p286 = scmp.eq.s32.totalorder %s33, 1
      %p287 = por %p285, %p286
      %p289 = scmp.ne.s32.totalorder %s274, %s288
      %p290 = scmp.eq.s32.totalorder %s33, 0
      %p291 = por %p289, %p290
      %s293 = sadd.s32 %s292, 1
      %p296 = scmp.eq.s32.totalorder %s27, 1
      %p297 = scmp.ne.s32.totalorder %s292, %s294
      %p298 = scmp.eq.s32.totalorder %s27, 0
      %p299 = por %p297, %p298
      %p300 = scmp.ne.s32.totalorder %s292, %s294
      %p301 = scmp.eq.s32.totalorder %s32, 1
      %p302 = por %p300, %p301
      %p303 = scmp.ne.s32.totalorder %s294, %s295
      %p304 = scmp.eq.s32.totalorder %s32, 0
      %p305 = por %p303, %p304
      %p306 = scmp.ne.s32.totalorder %s294, %s295
      %p307 = scmp.eq.s32.totalorder %s33, 1
      %p308 = por %p306, %p307
      %p310 = scmp.ne.s32.totalorder %s295, %s309
      %p311 = scmp.eq.s32.totalorder %s33, 0
      %p312 = por %p310, %p311
      %s314 = sadd.s32 %s313, 1
      %p317 = scmp.eq.s32.totalorder %s27, 1
      %p318 = scmp.ne.s32.totalorder %s313, %s315
      %p319 = scmp.eq.s32.totalorder %s27, 0
      %p320 = por %p318, %p319
      %p321 = scmp.ne.s32.totalorder %s313, %s315
      %p322 = scmp.eq.s32.totalorder %s32, 1
      %p323 = por %p321, %p322
      %p324 = scmp.ne.s32.totalorder %s315, %s316
      %p325 = scmp.eq.s32.totalorder %s32, 0
      %p326 = por %p324, %p325
      %p327 = scmp.ne.s32.totalorder %s315, %s316
      %p328 = scmp.eq.s32.totalorder %s33, 1
      %p329 = por %p327, %p328
      %p331 = scmp.ne.s32.totalorder %s316, %s330
      %p332 = scmp.eq.s32.totalorder %s33, 0
      %p333 = por %p331, %p332
      %s335 = sadd.s32 %s334, 1
      %p338 = scmp.eq.s32.totalorder %s27, 1
      %p339 = scmp.ne.s32.totalorder %s334, %s336
      %p340 = scmp.eq.s32.totalorder %s27, 0
      %p341 = por %p339, %p340
      %p342 = scmp.ne.s32.totalorder %s334, %s336
      %p343 = scmp.eq.s32.totalorder %s32, 1
      %p344 = por %p342, %p343
      %p345 = scmp.ne.s32.totalorder %s336, %s337
      %p346 = scmp.eq.s32.totalorder %s32, 0
      %p347 = por %p345, %p346
      %p348 = scmp.ne.s32.totalorder %s336, %s337
      %p349 = scmp.eq.s32.totalorder %s33, 1
      %p350 = por %p348, %p349
      %p352 = scmp.ne.s32.totalorder %s337, %s351
      %p353 = scmp.eq.s32.totalorder %s33, 0
      %p354 = por %p352, %p353
      %s356 = sadd.s32 %s355, 1
      %p359 = scmp.eq.s32.totalorder %s27, 1
      %p360 = scmp.ne.s32.totalorder %s355, %s357
      %p361 = scmp.eq.s32.totalorder %s27, 0
      %p362 = por %p360, %p361
      %p363 = scmp.ne.s32.totalorder %s355, %s357
      %p364 = scmp.eq.s32.totalorder %s32, 1
      %p365 = por %p363, %p364
      %p366 = scmp.ne.s32.totalorder %s357, %s358
      %p367 = scmp.eq.s32.totalorder %s32, 0
      %p368 = por %p366, %p367
      %p369 = scmp.ne.s32.totalorder %s357, %s358
      %p370 = scmp.eq.s32.totalorder %s33, 1
      %p371 = por %p369, %p370
      %p373 = scmp.ne.s32.totalorder %s358, %s372
      %p374 = scmp.eq.s32.totalorder %s33, 0
      %p375 = por %p373, %p374
      %s377 = sadd.s32 %s376, 1
      %p380 = scmp.eq.s32.totalorder %s27, 1
      %p381 = scmp.ne.s32.totalorder %s376, %s378
      %p382 = scmp.eq.s32.totalorder %s27, 0
      %p383 = por %p381, %p382
      %p384 = scmp.ne.s32.totalorder %s376, %s378
      %p385 = scmp.eq.s32.totalorder %s32, 1
      %p386 = por %p384, %p385
      %p387 = scmp.ne.s32.totalorder %s378, %s379
      %p388 = scmp.eq.s32.totalorder %s32, 0
      %p389 = por %p387, %p388
      %p390 = scmp.ne.s32.totalorder %s378, %s379
      %p391 = scmp.eq.s32.totalorder %s33, 1
      %p392 = por %p390, %p391
      %p394 = scmp.ne.s32.totalorder %s379, %s393
      %p395 = scmp.eq.s32.totalorder %s33, 0
      %p396 = por %p394, %p395
      %s397 = ssub.s32 %s27, %s34
      %p398 = scmp.eq.s32.totalorder %s397, 0
      %s400 = sadd.s32 %s399, 1
      %s401 = scalar_select %p398, %s399, %s400
      %p404 = pneg %p398
      %p405 = scmp.eq.s32.totalorder %s27, 1
      %p406 = por %p404, %p405
      %p407 = scmp.ne.s32.totalorder %s399, %s402
      %p408 = scmp.eq.s32.totalorder %s27, 0
      %p409 = por %p407, %p408
      %p410 = scmp.ne.s32.totalorder %s399, %s402
      %p411 = scmp.eq.s32.totalorder %s32, 1
      %p412 = por %p410, %p411
      %p413 = scmp.ne.s32.totalorder %s402, %s403
      %p414 = scmp.eq.s32.totalorder %s32, 0
      %p415 = por %p413, %p414
      %p416 = scmp.ne.s32.totalorder %s402, %s403
      %p417 = scmp.eq.s32.totalorder %s33, 1
      %p418 = por %p416, %p417
      %p420 = scmp.ne.s32.totalorder %s403, %s419
      %p421 = scmp.eq.s32.totalorder %s33, 0
      %p422 = por %p420, %p421
      %p423 = scmp.le.s32.totalorder 1, %s27
      %p424 = scmp.lt.s32.totalorder %s27, 3
      %p425 = pnand %p423, %p424
      %p426 = pneg %p425
      // Predicated region
      $region9: #{_lambda_.1} parent=5 // pred_check
        _
      $region10: #{_lambda_.1} parent=5 // pred_check_branch
        %428 = sbr.rel (%p425) target = $region12
      $region11: #{_lambda_.1} parent=5 // pred_region
        %s429 = ssub.s32 %s27, 1
        // Predicated region
        $region13: #{_lambda_.1} parent=11 // pred_check
          %p430 = pneg %p74
        $region14: #{_lambda_.1} parent=11 // pred_check_branch
          %432 = sbr.rel (%p430) target = $region16
        $region15: #{_lambda_.1} parent=11 // pred_region
          %434 = vsyncadd [#allocation10], 0
          %s435 = sshll.u32 %s1, 4
          %s436 = int_to_ptr.hbm [resolvable:$true] %s435
          %s437 = sshll.u32 [#allocation9], 4
          %s438 = int_to_ptr.vmem [resolvable:$true] %s437
          %443 = dma.hbm_to_vmem [thread:$0]  %s436, 3072, %s438, [#allocation10], 64, 64, 4
        $region16: #{_lambda_.1} parent=11 // pred_fallthru
          _
        // Predicated region
        $region17: #{_lambda_.1} parent=11 // pred_check
          %p444 = pneg %p95
        $region18: #{_lambda_.1} parent=11 // pred_check_branch
          %446 = sbr.rel (%p444) target = $region20
        $region19: #{_lambda_.1} parent=11 // pred_region
          %448 = vsyncadd [#allocation12], 0
          %s449 = sshll.u32 %s2, 4
          %s450 = int_to_ptr.hbm [resolvable:$true] %s449
          %s451 = sshll.u32 [#allocation11], 4
          %s452 = int_to_ptr.vmem [resolvable:$true] %s451
          %457 = dma.hbm_to_vmem [thread:$0]  %s450, 3072, %s452, [#allocation12], 64, 64, 4
        $region20: #{_lambda_.1} parent=11 // pred_fallthru
          _
        // Predicated region
        $region21: #{_lambda_.1} parent=11 // pred_check
          %p458 = pneg %p116
        $region22: #{_lambda_.1} parent=11 // pred_check_branch
          %460 = sbr.rel (%p458) target = $region24
        $region23: #{_lambda_.1} parent=11 // pred_region
          %462 = vsyncadd [#allocation12], 0
          %s463 = sshll.u32 %s3, 4
          %s464 = int_to_ptr.hbm [resolvable:$true] %s463
          %s465 = sshll.u32 [#allocation13], 4
          %s466 = int_to_ptr.vmem [resolvable:$true] %s465
          %471 = dma.hbm_to_vmem [thread:$0]  %s464, 5120, %s466, [#allocation12], 64, 64, 4
        $region24: #{_lambda_.1} parent=11 // pred_fallthru
          _
        // Predicated region
        $region25: #{_lambda_.1} parent=11 // pred_check
          %p472 = pneg %p137
        $region26: #{_lambda_.1} parent=11 // pred_check_branch
          %474 = sbr.rel (%p472) target = $region28
        $region27: #{_lambda_.1} parent=11 // pred_region
          %476 = vsyncadd [#allocation15], 0
          %s477 = sshll.u32 %s4, 4
          %s478 = int_to_ptr.hbm [resolvable:$true] %s477
          %s479 = sshll.u32 [#allocation14], 4
          %s480 = int_to_ptr.vmem [resolvable:$true] %s479
          %485 = dma.hbm_to_vmem [thread:$0]  %s478, 3072, %s480, [#allocation15], 64, 64, 4
        $region28: #{_lambda_.1} parent=11 // pred_fallthru
          _
        // Predicated region
        $region29: #{_lambda_.1} parent=11 // pred_check
          %p486 = pneg %p158
        $region30: #{_lambda_.1} parent=11 // pred_check_branch
          %488 = sbr.rel (%p486) target = $region32
        $region31: #{_lambda_.1} parent=11 // pred_region
          %490 = vsyncadd [#allocation15], 0
          %s491 = sshll.u32 %s5, 4
          %s492 = int_to_ptr.hbm [resolvable:$true] %s491
          %s493 = sshll.u32 [#allocation16], 4
          %s494 = int_to_ptr.vmem [resolvable:$true] %s493
          %499 = dma.hbm_to_vmem [thread:$0]  %s492, 3072, %s494, [#allocation15], 64, 64, 4
        $region32: #{_lambda_.1} parent=11 // pred_fallthru
          _
        // Predicated region
        $region33: #{_lambda_.1} parent=11 // pred_check
          %p500 = pneg %p179
        $region34: #{_lambda_.1} parent=11 // pred_check_branch
          %502 = sbr.rel (%p500) target = $region36
        $region35: #{_lambda_.1} parent=11 // pred_region
          _
        $region36: #{_lambda_.1} parent=11 // pred_fallthru
          _
        // Predicated region
        $region37: #{_lambda_.1} parent=11 // pred_check
          %p503 = pneg %p200
        $region38: #{_lambda_.1} parent=11 // pred_check_branch
          %505 = sbr.rel (%p503) target = $region40
        $region39: #{_lambda_.1} parent=11 // pred_region
          %507 = vsyncadd [#allocation18], 0
          %s508 = sshll.u32 %s7, 4
          %s509 = int_to_ptr.hbm [resolvable:$true] %s508
          %s510 = sshll.u32 [#allocation17], 4
          %s511 = int_to_ptr.vmem [resolvable:$true] %s510
          %516 = dma.hbm_to_vmem [thread:$0]  %s509, 3072, %s511, [#allocation18], 64, 64, 4
        $region40: #{_lambda_.1} parent=11 // pred_fallthru
          _
        // Predicated region
        $region41: #{_lambda_.1} parent=11 // pred_check
          %p517 = pneg %p221
        $region42: #{_lambda_.1} parent=11 // pred_check_branch
          %519 = sbr.rel (%p517) target = $region44
        $region43: #{_lambda_.1} parent=11 // pred_region
          _
        $region44: #{_lambda_.1} parent=11 // pred_fallthru
          _
        // Predicated region
        $region45: #{_lambda_.1} parent=11 // pred_check
          %p520 = pneg %p242
        $region46: #{_lambda_.1} parent=11 // pred_check_branch
          %522 = sbr.rel (%p520) target = $region48
        $region47: #{_lambda_.1} parent=11 // pred_region
          _
        $region48: #{_lambda_.1} parent=11 // pred_fallthru
          _
        // Predicated region
        $region49: #{_lambda_.1} parent=11 // pred_check
          %p523 = pneg %p263
        $region50: #{_lambda_.1} parent=11 // pred_check_branch
          %525 = sbr.rel (%p523) target = $region52
        $region51: #{_lambda_.1} parent=11 // pred_region
          _
        $region52: #{_lambda_.1} parent=11 // pred_fallthru
          _
        // Predicated region
        $region53: #{_lambda_.1} parent=11 // pred_check
          %p526 = pneg %p284
        $region54: #{_lambda_.1} parent=11 // pred_check_branch
          %528 = sbr.rel (%p526) target = $region56
        $region55: #{_lambda_.1} parent=11 // pred_region
          _
        $region56: #{_lambda_.1} parent=11 // pred_fallthru
          _
        // Predicated region
        $region57: #{_lambda_.1} parent=11 // pred_check
          %p529 = pneg %p305
        $region58: #{_lambda_.1} parent=11 // pred_check_branch
          %531 = sbr.rel (%p529) target = $region60
        $region59: #{_lambda_.1} parent=11 // pred_region
          _
        $region60: #{_lambda_.1} parent=11 // pred_fallthru
          _
        // Predicated region
        $region61: #{_lambda_.1} parent=11 // pred_check
          %p532 = pneg %p326
        $region62: #{_lambda_.1} parent=11 // pred_check_branch
          %534 = sbr.rel (%p532) target = $region64
        $region63: #{_lambda_.1} parent=11 // pred_region
          _
        $region64: #{_lambda_.1} parent=11 // pred_fallthru
          _
        // Predicated region
        $region65: #{_lambda_.1} parent=11 // pred_check
          %p535 = pneg %p347
        $region66: #{_lambda_.1} parent=11 // pred_check_branch
          %537 = sbr.rel (%p535) target = $region68
        $region67: #{_lambda_.1} parent=11 // pred_region
          _
        $region68: #{_lambda_.1} parent=11 // pred_fallthru
          _
        // Predicated region
        $region69: #{_lambda_.1} parent=11 // pred_check
          %p538 = pneg %p368
        $region70: #{_lambda_.1} parent=11 // pred_check_branch
          %540 = sbr.rel (%p538) target = $region72
        $region71: #{_lambda_.1} parent=11 // pred_region
          _
        $region72: #{_lambda_.1} parent=11 // pred_fallthru
          _
        // Predicated region
        $region73: #{_lambda_.1} parent=11 // pred_check
          %p541 = pneg %p389
        $region74: #{_lambda_.1} parent=11 // pred_check_branch
          %543 = sbr.rel (%p541) target = $region76
        $region75: #{_lambda_.1} parent=11 // pred_region
          _
        $region76: #{_lambda_.1} parent=11 // pred_fallthru
          _
      $region12: #{_lambda_.1} parent=5 // pred_fallthru
        _
      %p544 = scmp.lt.s32.totalorder %s27, 2
      // Predicated region
      $region77: #{_lambda_.1} parent=5 // pred_check
        %p545 = pneg %p544
      $region78: #{_lambda_.1} parent=5 // pred_check_branch
        %547 = sbr.rel (%p545) target = $region80
      $region79: #{_lambda_.1} parent=5 // pred_region
        // Predicated region
        $region81: #{_lambda_.1} parent=79 // pred_check
          %p548 = pneg %p47
        $region82: #{_lambda_.1} parent=79 // pred_check_branch
          %550 = sbr.rel (%p548) target = $region84
        $region83: #{_lambda_.1} parent=79 // pred_region
          %p551 = scmp.lt.s32.totalorder %s27, 1
          %s552 = scalar_select %p551, %s27, 1
          %s553 = smul.addr %s552, 3
          %s554 = smul.addr %s553, 4
          %s555 = scalar_lea.vmem %s0, %s554
        $region84: #{_lambda_.1} parent=79 // pred_fallthru
          _
      $region80: #{_lambda_.1} parent=5 // pred_fallthru
        _
      %p556 = scmp.le.s32.totalorder 1, %s27
      %p557 = scmp.lt.s32.totalorder %s27, 3
      %p558 = pnand %p556, %p557
      %p559 = pneg %p558
      // Predicated region
      $region85: #{_lambda_.1} parent=5 // pred_check
        _
      $region86: #{_lambda_.1} parent=5 // pred_check_branch
        %561 = sbr.rel (%p558) target = $region88
      $region87: #{_lambda_.1} parent=5 // pred_region
        %s562 = ssub.s32 %s27, 1
        // Predicated region
        $region89: #{_lambda_.1} parent=87 // pred_check
          %p563 = pneg %p74
        $region90: #{_lambda_.1} parent=87 // pred_check_branch
          %565 = sbr.rel (%p563) target = $region92
        $region91: #{_lambda_.1} parent=87 // pred_region
          %567 = dma.done [#allocation10], 3072
        $region92: #{_lambda_.1} parent=87 // pred_fallthru
          _
        // Predicated region
        $region93: #{_lambda_.1} parent=87 // pred_check
          %p568 = pneg %p95
        $region94: #{_lambda_.1} parent=87 // pred_check_branch
          %570 = sbr.rel (%p568) target = $region96
        $region95: #{_lambda_.1} parent=87 // pred_region
          %572 = dma.done [#allocation12], 3072
        $region96: #{_lambda_.1} parent=87 // pred_fallthru
          _
        // Predicated region
        $region97: #{_lambda_.1} parent=87 // pred_check
          %p573 = pneg %p116
        $region98: #{_lambda_.1} parent=87 // pred_check_branch
          %575 = sbr.rel (%p573) target = $region100
        $region99: #{_lambda_.1} parent=87 // pred_region
          %577 = dma.done [#allocation12], 5120
        $region100: #{_lambda_.1} parent=87 // pred_fallthru
          _
        // Predicated region
        $region101: #{_lambda_.1} parent=87 // pred_check
          %p578 = pneg %p137
        $region102: #{_lambda_.1} parent=87 // pred_check_branch
          %580 = sbr.rel (%p578) target = $region104
        $region103: #{_lambda_.1} parent=87 // pred_region
          %582 = dma.done [#allocation15], 3072
        $region104: #{_lambda_.1} parent=87 // pred_fallthru
          _
        // Predicated region
        $region105: #{_lambda_.1} parent=87 // pred_check
          %p583 = pneg %p158
        $region106: #{_lambda_.1} parent=87 // pred_check_branch
          %585 = sbr.rel (%p583) target = $region108
        $region107: #{_lambda_.1} parent=87 // pred_region
          %587 = dma.done [#allocation15], 3072
        $region108: #{_lambda_.1} parent=87 // pred_fallthru
          _
        // Predicated region
        $region109: #{_lambda_.1} parent=87 // pred_check
          %p588 = pneg %p200
        $region110: #{_lambda_.1} parent=87 // pred_check_branch
          %590 = sbr.rel (%p588) target = $region112
        $region111: #{_lambda_.1} parent=87 // pred_region
          %592 = dma.done [#allocation18], 3072
        $region112: #{_lambda_.1} parent=87 // pred_fallthru
          _
        %p593 = scmp.lt.s32.totalorder %s32, 1
        %s594 = scalar_select %p593, %s32, 1
        %s595 = smul.addr %s594, 3
        %s596 = smul.addr %s595, 4
        %s597 = scalar_lea.vmem %s0, %s596
        %p598 = pneg %p53
        %p599 = pneg %p50
        %p600 = pneg %p74
        %p601 = pneg %p71
        %p602 = pneg %p95
        %p603 = pneg %p92
        %p604 = pneg %p116
        %p605 = pneg %p113
        %p606 = pneg %p137
        %p607 = pneg %p134
        %p608 = pneg %p158
        %p609 = pneg %p155
        %p610 = pneg %p179
        %p611 = pneg %p176
        %p612 = pneg %p200
        %p613 = pneg %p197
        %p614 = pneg %p221
        %p615 = pneg %p218
        %p616 = pneg %p242
        %p617 = pneg %p239
        %p618 = pneg %p263
        %p619 = pneg %p260
        %p620 = pneg %p284
        %p621 = pneg %p281
        %p622 = pneg %p305
        %p623 = pneg %p302
        %p624 = pneg %p326
        %p625 = pneg %p323
        %p626 = pneg %p347
        %p627 = pneg %p344
        %p628 = pneg %p368
        %p629 = pneg %p365
        %p630 = pneg %p389
        %p631 = pneg %p386
        %p632 = pneg %p415
        %p633 = pneg %p412
        %p634 = scmp.lt.s32.totalorder %s32, 1
        %s635 = scalar_select %p634, %s32, 1
        %s636 = smul.addr %s635, 4
        %s637 = scalar_lea.vmem %s17, %s636
        %p638 = scmp.lt.s32.totalorder %s32, 1
        %s639 = scalar_select %p638, %s32, 1
        %s640 = smul.addr %s639, 3
        %s641 = smul.addr %s640, 4
        %s642 = scalar_lea.vmem %s0, %s641
        %p643 = scmp.lt.s32.totalorder %s32, 1
        %s644 = scalar_select %p643, %s32, 1
        %s645 = smul.addr %s644, 4
        %s646 = scalar_lea.vmem %s17, %s645
        %vm648 = vcmask 1040384
        %vm649 = vsmask.f32 256
        %vm650 = vmand %vm648, %vm649
        %v651 = vld [vmem:[#allocation2] sm:$0x1]
        %v652 = vsel %vm650, 0, %v651
        %653 = vst [vmem:[#allocation2] sm:$0x1] %v652
        %vm654 = vsmask.f32 7938
        %vm655 = vmand %vm648, %vm654
        %v656 = vld [vmem:[#allocation2 + $0x8] sm:$0x1]
        %v657 = vsel %vm655, 0, %v656
        %658 = vst [vmem:[#allocation2 + $0x8] sm:$0x1] %v657
        %659 = vst [vmem:[#allocation3] sm:$0x1] 0
        %660 = vst [vmem:[#allocation3 + $0x8] sm:$0x2] 0
        %v661 = vld [vmem:[#allocation4] sm:$0x1]
        %v662 = vsel %vm650, 0, %v661
        %663 = vst [vmem:[#allocation4] sm:$0x1] %v662
        %v664 = vld [vmem:[#allocation4 + $0x4] sm:$0x1]
        %v665 = vsel %vm655, 0, %v664
        %666 = vst [vmem:[#allocation4 + $0x4] sm:$0x1] %v665
        %v667 = vld [vmem:[#allocation5] sm:$0x1]
        %v668 = vsel %vm650, 0, %v667
        %669 = vst [vmem:[#allocation5] sm:$0x1] %v668
        %v670 = vld [vmem:[#allocation5 + $0x4] sm:$0x1]
        %v671 = vsel %vm655, 0, %v670
        %672 = vst [vmem:[#allocation5 + $0x4] sm:$0x1] %v671
        %673 = vst [vmem:[#allocation6] sm:$0x1] 0
        %674 = vst [vmem:[#allocation6 + $0x4] sm:$0x2] 0
        %v675 = vld [vmem:[#allocation7] sm:$0x1]
        %v676 = vsel %vm650, 0, %v675
        %677 = vst [vmem:[#allocation7] sm:$0x1] %v676
        %vm678 = vcmask 1042434
        %vm679 = vsmask.f32 7946
        %vm680 = vmand %vm678, %vm679
        %v681 = vld [vmem:[#allocation7] sm:$0x4]
        %v682 = vsel %vm680, 0, %v681
        %683 = vst [vmem:[#allocation7] sm:$0x4] %v682
        %v684 = vld [vmem:[#allocation8] sm:$0x1]
        %v685 = vsel %vm650, 0, %v684
        %686 = vst [vmem:[#allocation8] sm:$0x1] %v685
        %v687 = vld [vmem:[#allocation8] sm:$0x4]
        %v688 = vsel %vm680, 0, %v687
        %689 = vst [vmem:[#allocation8] sm:$0x4] %v688
        %v690 = vld [vmem:[%s9] sm:$0x1]
        %v691 = vld [vmem:[%s642] sm:$0xf]
        %v692 = vld [vmem:[%s642 + $0x4] sm:$0xf]
        %v693 = vld [vmem:[#allocation9] sm:$0xf]
        %v694 = vld [vmem:[#allocation9 + $0x4] sm:$0xf]
        %v695 = vld [vmem:[#allocation9 + $0x8] sm:$0xf]
        %v696 = vld [vmem:[#allocation9 + $0xc] sm:$0xf]
        %v697 = vld [vmem:[#allocation9 + $0x10] sm:$0xf]
        %v698 = vld [vmem:[#allocation9 + $0x14] sm:$0xf]
        %v699 = vld [vmem:[#allocation9 + $0x18] sm:$0xf]
        %v700 = vld [vmem:[#allocation9 + $0x1c] sm:$0xf]
        %v701 = vld [vmem:[#allocation9 + $0x20] sm:$0xf]
        %v702 = vld [vmem:[#allocation9 + $0x24] sm:$0xf]
        %v703 = vld [vmem:[#allocation9 + $0x28] sm:$0xf]
        %v704 = vld [vmem:[#allocation9 + $0x2c] sm:$0xf]
        %v705 = vld [vmem:[#allocation9 + $0x30] sm:$0xf]
        %v706 = vld [vmem:[#allocation9 + $0x34] sm:$0xf]
        %v707 = vld [vmem:[#allocation9 + $0x38] sm:$0xf]
        %v708 = vld [vmem:[#allocation9 + $0x3c] sm:$0xf]
        %v709 = vld [vmem:[%s642 + $0x8] sm:$0x1]
        %s710 = scalar_lea.vmem [#allocation9], 64
        %v711 = vld [vmem:[%s710] sm:$0xf]
        %v712 = vld [vmem:[%s710 + $0x4] sm:$0xf]
        %v713 = vld [vmem:[%s710 + $0x8] sm:$0xf]
        %v714 = vld [vmem:[%s710 + $0xc] sm:$0xf]
        %v715 = vld [vmem:[%s710 + $0x10] sm:$0xf]
        %v716 = vld [vmem:[%s710 + $0x14] sm:$0xf]
        %v717 = vld [vmem:[%s710 + $0x18] sm:$0xf]
        %v718 = vld [vmem:[%s710 + $0x1c] sm:$0xf]
        %v719 = vld [vmem:[%s710 + $0x20] sm:$0xf]
        %v720 = vld [vmem:[%s710 + $0x24] sm:$0xf]
        %v721 = vld [vmem:[%s710 + $0x28] sm:$0xf]
        %v722 = vld [vmem:[%s710 + $0x2c] sm:$0xf]
        %v723 = vld [vmem:[%s710 + $0x30] sm:$0xf]
        %v724 = vld [vmem:[%s710 + $0x34] sm:$0xf]
        %v725 = vld [vmem:[%s710 + $0x38] sm:$0xf]
        %v726 = vld [vmem:[%s710 + $0x3c] sm:$0xf]
        %v730 = vunpack.c.l.b16 %v691
        %v731 = vunpack.c.l.b16 %v692
        %v732 = vunpack.c.l.b16 %v709
        %v733 = vpack.c.b16 %v731, %v730
        %v734 = vpack.c.b16 %v732, %v732
        %vm735 = vsmask.f32 7424
        %v737 = vshrl.u32 %v733, 16
        %v739 = vshll.u32 %v733, 16
        %v741 = vrot.slane %v739, 1
        %v742 = vor.u32 %v737, %v741
        %v744 = vshll.u32 %v734, 16
        %v746 = vrot.slane %v744, 1
        %v747 = vsel %vm735, %v742, %v746
        %v765 = vunpack.c.l.b16 %v711
        %v766 = vunpack.c.l.b16 %v712
        %v767 = vunpack.c.l.b16 %v713
        %v768 = vunpack.c.l.b16 %v714
        %v769 = vunpack.c.l.b16 %v715
        %v770 = vunpack.c.l.b16 %v716
        %v771 = vunpack.c.l.b16 %v717
        %v772 = vunpack.c.l.b16 %v718
        %v773 = vunpack.c.l.b16 %v719
        %v774 = vunpack.c.l.b16 %v720
        %v775 = vunpack.c.l.b16 %v721
        %v776 = vunpack.c.l.b16 %v722
        %v777 = vunpack.c.l.b16 %v723
        %v778 = vunpack.c.l.b16 %v724
        %v779 = vunpack.c.l.b16 %v725
        %v780 = vunpack.c.l.b16 %v726
        %v781 = vpack.c.b16 %v766, %v765
        %v782 = vpack.c.b16 %v768, %v767
        %v783 = vpack.c.b16 %v770, %v769
        %v784 = vpack.c.b16 %v772, %v771
        %v785 = vpack.c.b16 %v774, %v773
        %v786 = vpack.c.b16 %v776, %v775
        %v787 = vpack.c.b16 %v778, %v777
        %v788 = vpack.c.b16 %v780, %v779
        %797 = vmatpush.bf16.msra.mxu0 %v788
        %798 = vmatpush.bf16.msra.mxu0 %v787
        %799 = vmatpush.bf16.msra.mxu0 %v786
        %800 = vmatpush.bf16.msra.mxu0 %v785
        %801 = vmatpush.bf16.msra.mxu0 %v784
        %802 = vmatpush.bf16.msra.mxu0 %v783
        %803 = vmatpush.bf16.msra.mxu0 %v782
        %804 = vmatpush.bf16.msra.mxu0 %v781
        %805 = vmatmul.bf16.gmra.mxu0 %v747
        %v806 = vpop.f32.mrf.mxu0
        %v807 = vadd.f32 0.0, %v806
        %v808 = vpop.f32.mrf.mxu0
        %v809 = vadd.f32 0.0, %v808
        %810 = vdwg.mxu0
        %v828 = vunpack.c.l.b16 %v693
        %v829 = vunpack.c.l.b16 %v694
        %v830 = vunpack.c.l.b16 %v695
        %v831 = vunpack.c.l.b16 %v696
        %v832 = vunpack.c.l.b16 %v697
        %v833 = vunpack.c.l.b16 %v698
        %v834 = vunpack.c.l.b16 %v699
        %v835 = vunpack.c.l.b16 %v700
        %v836 = vunpack.c.l.b16 %v701
        %v837 = vunpack.c.l.b16 %v702
        %v838 = vunpack.c.l.b16 %v703
        %v839 = vunpack.c.l.b16 %v704
        %v840 = vunpack.c.l.b16 %v705
        %v841 = vunpack.c.l.b16 %v706
        %v842 = vunpack.c.l.b16 %v707
        %v843 = vunpack.c.l.b16 %v708
        %v844 = vpack.c.b16 %v829, %v828
        %v845 = vpack.c.b16 %v831, %v830
        %v846 = vpack.c.b16 %v833, %v832
        %v847 = vpack.c.b16 %v835, %v834
        %v848 = vpack.c.b16 %v837, %v836
        %v849 = vpack.c.b16 %v839, %v838
        %v850 = vpack.c.b16 %v841, %v840
        %v851 = vpack.c.b16 %v843, %v842
        %860 = vmatpush.bf16.msra.mxu0 %v851
        %861 = vmatpush.bf16.msra.mxu0 %v850
        %862 = vmatpush.bf16.msra.mxu0 %v849
        %863 = vmatpush.bf16.msra.mxu0 %v848
        %864 = vmatpush.bf16.msra.mxu0 %v847
        %865 = vmatpush.bf16.msra.mxu0 %v846
        %866 = vmatpush.bf16.msra.mxu0 %v845
        %867 = vmatpush.bf16.msra.mxu0 %v844
        %868 = vmatmul.bf16.gmra.mxu0 %v733
        %v869 = vpop.f32.mrf.mxu0
        %v870 = vadd.f32 %v807, %v869
        %v871 = vpop.f32.mrf.mxu0
        %v872 = vadd.f32 %v809, %v871
        %873 = vdwg.mxu0
        %v874 = vld [vmem:[%s642] sm:$0xe]
        %s875 = scalar_lea.vmem [#allocation9], 128
        %v876 = vld [vmem:[%s875] sm:$0xf]
        %v877 = vld [vmem:[%s875 + $0x4] sm:$0xf]
        %v878 = vld [vmem:[%s875 + $0x8] sm:$0xf]
        %v879 = vld [vmem:[%s875 + $0xc] sm:$0xf]
        %v880 = vld [vmem:[%s875 + $0x10] sm:$0xf]
        %v881 = vld [vmem:[%s875 + $0x14] sm:$0xf]
        %v882 = vld [vmem:[%s875 + $0x18] sm:$0xf]
        %v883 = vld [vmem:[%s875 + $0x1c] sm:$0xf]
        %v884 = vld [vmem:[%s875 + $0x20] sm:$0xf]
        %v885 = vld [vmem:[%s875 + $0x24] sm:$0xf]
        %v886 = vld [vmem:[%s875 + $0x28] sm:$0xf]
        %v887 = vld [vmem:[%s875 + $0x2c] sm:$0xf]
        %v888 = vld [vmem:[%s875 + $0x30] sm:$0xf]
        %v889 = vld [vmem:[%s875 + $0x34] sm:$0xf]
        %v890 = vld [vmem:[%s875 + $0x38] sm:$0xf]
        %v891 = vld [vmem:[%s875 + $0x3c] sm:$0xf]
        %v893 = vunpack.c.l.b16 %v874
        %v894 = vpack.c.b16 %v731, %v893
        %vm895 = vcmask 1046528
        %v896 = vrot.slane %v894, 1
        %v897 = vrot.slane %v734, 1
        %v898 = vsel %vm895, %v896, %v897
        %v916 = vunpack.c.l.b16 %v876
        %v917 = vunpack.c.l.b16 %v877
        %v918 = vunpack.c.l.b16 %v878
        %v919 = vunpack.c.l.b16 %v879
        %v920 = vunpack.c.l.b16 %v880
        %v921 = vunpack.c.l.b16 %v881
        %v922 = vunpack.c.l.b16 %v882
        %v923 = vunpack.c.l.b16 %v883
        %v924 = vunpack.c.l.b16 %v884
        %v925 = vunpack.c.l.b16 %v885
        %v926 = vunpack.c.l.b16 %v886
        %v927 = vunpack.c.l.b16 %v887
        %v928 = vunpack.c.l.b16 %v888
        %v929 = vunpack.c.l.b16 %v889
        %v930 = vunpack.c.l.b16 %v890
        %v931 = vunpack.c.l.b16 %v891
        %v932 = vpack.c.b16 %v917, %v916
        %v933 = vpack.c.b16 %v919, %v918
        %v934 = vpack.c.b16 %v921, %v920
        %v935 = vpack.c.b16 %v923, %v922
        %v936 = vpack.c.b16 %v925, %v924
        %v937 = vpack.c.b16 %v927, %v926
        %v938 = vpack.c.b16 %v929, %v928
        %v939 = vpack.c.b16 %v931, %v930
        %948 = vmatpush.bf16.msra.mxu0 %v939
        %949 = vmatpush.bf16.msra.mxu0 %v938
        %950 = vmatpush.bf16.msra.mxu0 %v937
        %951 = vmatpush.bf16.msra.mxu0 %v936
        %952 = vmatpush.bf16.msra.mxu0 %v935
        %953 = vmatpush.bf16.msra.mxu0 %v934
        %954 = vmatpush.bf16.msra.mxu0 %v933
        %955 = vmatpush.bf16.msra.mxu0 %v932
        %956 = vmatmul.bf16.gmra.mxu0 %v898
        %v957 = vpop.f32.mrf.mxu0
        %v958 = vadd.f32 0.0, %v957
        %v959 = vpop.f32.mrf.mxu0
        %v960 = vadd.f32 0.0, %v959
        %961 = vdwg.mxu0
        %v962 = vadd.f32 %v870, %v958
        %v963 = vadd.f32 %v872, %v960
        %v965 = vperm.slane %v690, 0
        %v967 = vadd.f32 %v962, %v965
        %v968 = vadd.f32 %v963, %v965
        %v969 = vmax.f32 %v967, 0.0
        %v970 = vmax.f32 %v968, 0.0
        %v971 = vpack.c.bf16 %v969, %v969
        %v972 = vpack.c.bf16 %v970, %v970
        %vm973 = vsmask.f32 4368
        %vm974 = vmor %vm649, %vm973
        %v976 = vshrl.u32 %v971, 16
        %v978 = vrot.slane %v976, 7
        %v979 = vshll.u32 %v971, 16
        %v981 = vor.u32 %v978, %v979
        %v982 = vrot.slane %v978, 4
        %v984 = vshrl.u32 %v972, 16
        %v986 = vrot.slane %v984, 7
        %v987 = vshll.u32 %v972, 16
        %v989 = vor.u32 %v986, %v987
        %v990 = vsel %vm974, %v982, %v989
        %v991 = vrot.slane %v986, 4
        %vm995 = vcmask 1043456
        %vm996 = vmand %vm995, %vm654
        %v997 = vld [vmem:[#allocation2] sm:$0xf]
        %v998 = vsel %vm996, %v981, %v997
        %999 = vst [vmem:[#allocation2] sm:$0xf] %v998
        %1000 = vst [vmem:[#allocation2 + $0x4] sm:$0xf] %v990
        %v1001 = vld [vmem:[#allocation2 + $0x8] sm:$0x1]
        %v1002 = vsel %vm650, %v991, %v1001
        %1003 = vst [vmem:[#allocation2 + $0x8] sm:$0x1] %v1002
        %v1004 = vld [vmem:[%s10] sm:$0x1]
        %v1005 = vld [vmem:[#allocation2] sm:$0xf]
        %v1006 = vld [vmem:[#allocation2 + $0x4] sm:$0xf]
        %v1007 = vld [vmem:[#allocation11] sm:$0xf]
        %v1008 = vld [vmem:[#allocation11 + $0x4] sm:$0xf]
        %v1009 = vld [vmem:[#allocation11 + $0x8] sm:$0xf]
        %v1010 = vld [vmem:[#allocation11 + $0xc] sm:$0xf]
        %v1011 = vld [vmem:[#allocation11 + $0x10] sm:$0xf]
        %v1012 = vld [vmem:[#allocation11 + $0x14] sm:$0xf]
        %v1013 = vld [vmem:[#allocation11 + $0x18] sm:$0xf]
        %v1014 = vld [vmem:[#allocation11 + $0x1c] sm:$0xf]
        %v1015 = vld [vmem:[#allocation11 + $0x20] sm:$0xf]
        %v1016 = vld [vmem:[#allocation11 + $0x24] sm:$0xf]
        %v1017 = vld [vmem:[#allocation11 + $0x28] sm:$0xf]
        %v1018 = vld [vmem:[#allocation11 + $0x2c] sm:$0xf]
        %v1019 = vld [vmem:[#allocation11 + $0x30] sm:$0xf]
        %v1020 = vld [vmem:[#allocation11 + $0x34] sm:$0xf]
        %v1021 = vld [vmem:[#allocation11 + $0x38] sm:$0xf]
        %v1022 = vld [vmem:[#allocation11 + $0x3c] sm:$0xf]
        %v1023 = vld [vmem:[#allocation2 + $0x8] sm:$0x1]
        %s1024 = scalar_lea.vmem [#allocation11], 64
        %v1025 = vld [vmem:[%s1024] sm:$0xf]
        %v1026 = vld [vmem:[%s1024 + $0x4] sm:$0xf]
        %v1027 = vld [vmem:[%s1024 + $0x8] sm:$0xf]
        %v1028 = vld [vmem:[%s1024 + $0xc] sm:$0xf]
        %v1029 = vld [vmem:[%s1024 + $0x10] sm:$0xf]
        %v1030 = vld [vmem:[%s1024 + $0x14] sm:$0xf]
        %v1031 = vld [vmem:[%s1024 + $0x18] sm:$0xf]
        %v1032 = vld [vmem:[%s1024 + $0x1c] sm:$0xf]
        %v1033 = vld [vmem:[%s1024 + $0x20] sm:$0xf]
        %v1034 = vld [vmem:[%s1024 + $0x24] sm:$0xf]
        %v1035 = vld [vmem:[%s1024 + $0x28] sm:$0xf]
        %v1036 = vld [vmem:[%s1024 + $0x2c] sm:$0xf]
        %v1037 = vld [vmem:[%s1024 + $0x30] sm:$0xf]
        %v1038 = vld [vmem:[%s1024 + $0x34] sm:$0xf]
        %v1039 = vld [vmem:[%s1024 + $0x38] sm:$0xf]
        %v1040 = vld [vmem:[%s1024 + $0x3c] sm:$0xf]
        %v1044 = vunpack.c.l.b16 %v1005
        %v1045 = vunpack.c.l.b16 %v1006
        %v1046 = vunpack.c.l.b16 %v1023
        %v1047 = vpack.c.b16 %v1045, %v1044
        %v1048 = vpack.c.b16 %v1046, %v1046
        %v1050 = vshrl.u32 %v1047, 16
        %v1052 = vshll.u32 %v1047, 16
        %v1054 = vrot.slane %v1052, 1
        %v1055 = vor.u32 %v1050, %v1054
        %v1057 = vshll.u32 %v1048, 16
        %v1059 = vrot.slane %v1057, 1
        %v1060 = vsel %vm735, %v1055, %v1059
        %v1078 = vunpack.c.l.b16 %v1025
        %v1079 = vunpack.c.l.b16 %v1026
        %v1080 = vunpack.c.l.b16 %v1027
        %v1081 = vunpack.c.l.b16 %v1028
        %v1082 = vunpack.c.l.b16 %v1029
        %v1083 = vunpack.c.l.b16 %v1030
        %v1084 = vunpack.c.l.b16 %v1031
        %v1085 = vunpack.c.l.b16 %v1032
        %v1086 = vunpack.c.l.b16 %v1033
        %v1087 = vunpack.c.l.b16 %v1034
        %v1088 = vunpack.c.l.b16 %v1035
        %v1089 = vunpack.c.l.b16 %v1036
        %v1090 = vunpack.c.l.b16 %v1037
        %v1091 = vunpack.c.l.b16 %v1038
        %v1092 = vunpack.c.l.b16 %v1039
        %v1093 = vunpack.c.l.b16 %v1040
        %v1094 = vpack.c.b16 %v1079, %v1078
        %v1095 = vpack.c.b16 %v1081, %v1080
        %v1096 = vpack.c.b16 %v1083, %v1082
        %v1097 = vpack.c.b16 %v1085, %v1084
        %v1098 = vpack.c.b16 %v1087, %v1086
        %v1099 = vpack.c.b16 %v1089, %v1088
        %v1100 = vpack.c.b16 %v1091, %v1090
        %v1101 = vpack.c.b16 %v1093, %v1092
        %1110 = vmatpush.bf16.msra.mxu0 %v1101
        %1111 = vmatpush.bf16.msra.mxu0 %v1100
        %1112 = vmatpush.bf16.msra.mxu0 %v1099
        %1113 = vmatpush.bf16.msra.mxu0 %v1098
        %1114 = vmatpush.bf16.msra.mxu0 %v1097
        %1115 = vmatpush.bf16.msra.mxu0 %v1096
        %1116 = vmatpush.bf16.msra.mxu0 %v1095
        %1117 = vmatpush.bf16.msra.mxu0 %v1094
        %1118 = vmatmul.bf16.gmra.mxu0 %v1060
        %v1119 = vpop.f32.mrf.mxu0
        %v1120 = vadd.f32 0.0, %v1119
        %v1121 = vpop.f32.mrf.mxu0
        %v1122 = vadd.f32 0.0, %v1121
        %1123 = vdwg.mxu0
        %v1141 = vunpack.c.l.b16 %v1007
        %v1142 = vunpack.c.l.b16 %v1008
        %v1143 = vunpack.c.l.b16 %v1009
        %v1144 = vunpack.c.l.b16 %v1010
        %v1145 = vunpack.c.l.b16 %v1011
        %v1146 = vunpack.c.l.b16 %v1012
        %v1147 = vunpack.c.l.b16 %v1013
        %v1148 = vunpack.c.l.b16 %v1014
        %v1149 = vunpack.c.l.b16 %v1015
        %v1150 = vunpack.c.l.b16 %v1016
        %v1151 = vunpack.c.l.b16 %v1017
        %v1152 = vunpack.c.l.b16 %v1018
        %v1153 = vunpack.c.l.b16 %v1019
        %v1154 = vunpack.c.l.b16 %v1020
        %v1155 = vunpack.c.l.b16 %v1021
        %v1156 = vunpack.c.l.b16 %v1022
        %v1157 = vpack.c.b16 %v1142, %v1141
        %v1158 = vpack.c.b16 %v1144, %v1143
        %v1159 = vpack.c.b16 %v1146, %v1145
        %v1160 = vpack.c.b16 %v1148, %v1147
        %v1161 = vpack.c.b16 %v1150, %v1149
        %v1162 = vpack.c.b16 %v1152, %v1151
        %v1163 = vpack.c.b16 %v1154, %v1153
        %v1164 = vpack.c.b16 %v1156, %v1155
        %1173 = vmatpush.bf16.msra.mxu0 %v1164
        %1174 = vmatpush.bf16.msra.mxu0 %v1163
        %1175 = vmatpush.bf16.msra.mxu0 %v1162
        %1176 = vmatpush.bf16.msra.mxu0 %v1161
        %1177 = vmatpush.bf16.msra.mxu0 %v1160
        %1178 = vmatpush.bf16.msra.mxu0 %v1159
        %1179 = vmatpush.bf16.msra.mxu0 %v1158
        %1180 = vmatpush.bf16.msra.mxu0 %v1157
        %1181 = vmatmul.bf16.gmra.mxu0 %v1047
        %v1182 = vpop.f32.mrf.mxu0
        %v1183 = vadd.f32 %v1120, %v1182
        %v1184 = vpop.f32.mrf.mxu0
        %v1185 = vadd.f32 %v1122, %v1184
        %1186 = vdwg.mxu0
        %v1187 = vld [vmem:[#allocation2] sm:$0xe]
        %s1188 = scalar_lea.vmem [#allocation11], 128
        %v1189 = vld [vmem:[%s1188] sm:$0xf]
        %v1190 = vld [vmem:[%s1188 + $0x4] sm:$0xf]
        %v1191 = vld [vmem:[%s1188 + $0x8] sm:$0xf]
        %v1192 = vld [vmem:[%s1188 + $0xc] sm:$0xf]
        %v1193 = vld [vmem:[%s1188 + $0x10] sm:$0xf]
        %v1194 = vld [vmem:[%s1188 + $0x14] sm:$0xf]
        %v1195 = vld [vmem:[%s1188 + $0x18] sm:$0xf]
        %v1196 = vld [vmem:[%s1188 + $0x1c] sm:$0xf]
        %v1197 = vld [vmem:[%s1188 + $0x20] sm:$0xf]
        %v1198 = vld [vmem:[%s1188 + $0x24] sm:$0xf]
        %v1199 = vld [vmem:[%s1188 + $0x28] sm:$0xf]
        %v1200 = vld [vmem:[%s1188 + $0x2c] sm:$0xf]
        %v1201 = vld [vmem:[%s1188 + $0x30] sm:$0xf]
        %v1202 = vld [vmem:[%s1188 + $0x34] sm:$0xf]
        %v1203 = vld [vmem:[%s1188 + $0x38] sm:$0xf]
        %v1204 = vld [vmem:[%s1188 + $0x3c] sm:$0xf]
        %v1206 = vunpack.c.l.b16 %v1187
        %v1207 = vpack.c.b16 %v1045, %v1206
        %v1208 = vrot.slane %v1207, 1
        %v1209 = vrot.slane %v1048, 1
        %v1210 = vsel %vm895, %v1208, %v1209
        %v1228 = vunpack.c.l.b16 %v1189
        %v1229 = vunpack.c.l.b16 %v1190
        %v1230 = vunpack.c.l.b16 %v1191
        %v1231 = vunpack.c.l.b16 %v1192
        %v1232 = vunpack.c.l.b16 %v1193
        %v1233 = vunpack.c.l.b16 %v1194
        %v1234 = vunpack.c.l.b16 %v1195
        %v1235 = vunpack.c.l.b16 %v1196
        %v1236 = vunpack.c.l.b16 %v1197
        %v1237 = vunpack.c.l.b16 %v1198
        %v1238 = vunpack.c.l.b16 %v1199
        %v1239 = vunpack.c.l.b16 %v1200
        %v1240 = vunpack.c.l.b16 %v1201
        %v1241 = vunpack.c.l.b16 %v1202
        %v1242 = vunpack.c.l.b16 %v1203
        %v1243 = vunpack.c.l.b16 %v1204
        %v1244 = vpack.c.b16 %v1229, %v1228
        %v1245 = vpack.c.b16 %v1231, %v1230
        %v1246 = vpack.c.b16 %v1233, %v1232
        %v1247 = vpack.c.b16 %v1235, %v1234
        %v1248 = vpack.c.b16 %v1237, %v1236
        %v1249 = vpack.c.b16 %v1239, %v1238
        %v1250 = vpack.c.b16 %v1241, %v1240
        %v1251 = vpack.c.b16 %v1243, %v1242
        %1260 = vmatpush.bf16.msra.mxu0 %v1251
        %1261 = vmatpush.bf16.msra.mxu0 %v1250
        %1262 = vmatpush.bf16.msra.mxu0 %v1249
        %1263 = vmatpush.bf16.msra.mxu0 %v1248
        %1264 = vmatpush.bf16.msra.mxu0 %v1247
        %1265 = vmatpush.bf16.msra.mxu0 %v1246
        %1266 = vmatpush.bf16.msra.mxu0 %v1245
        %1267 = vmatpush.bf16.msra.mxu0 %v1244
        %1268 = vmatmul.bf16.gmra.mxu0 %v1210
        %v1269 = vpop.f32.mrf.mxu0
        %v1270 = vadd.f32 0.0, %v1269
        %v1271 = vpop.f32.mrf.mxu0
        %v1272 = vadd.f32 0.0, %v1271
        %1273 = vdwg.mxu0
        %v1274 = vadd.f32 %v1183, %v1270
        %v1275 = vadd.f32 %v1185, %v1272
        %v1277 = vperm.slane %v1004, 0
        %v1279 = vadd.f32 %v1274, %v1277
        %v1280 = vadd.f32 %v1275, %v1277
        %v1281 = vmax.f32 %v1279, 0.0
        %v1282 = vmax.f32 %v1280, 0.0
        %v1283 = vpack.c.bf16 %v1281, %v1281
        %v1284 = vpack.c.bf16 %v1282, %v1282
        %vm1287 = vcmask 1044484
        %vm1288 = vmor %vm648, %vm1287
        %v1289 = vrot.slane %v1283, 7
        %v1290 = vrot.slane %v1289, 4
        %v1291 = vrot.slane %v1284, 7
        %v1292 = vsel %vm1288, %v1290, %v1291
        %v1293 = vrot.slane %v1291, 4
        %1297 = vst [vmem:[#allocation3] sm:$0xe] %v1289
        %1298 = vst [vmem:[#allocation3 + $0x4] sm:$0xf] %v1292
        %1299 = vst [vmem:[#allocation3 + $0x8] sm:$0x1] %v1293
        %v1300 = vld [vmem:[%s11] sm:$0x1]
        %v1301 = vld [vmem:[#allocation3] sm:$0xf]
        %v1302 = vld [vmem:[#allocation3 + $0x4] sm:$0xf]
        %v1303 = vld [vmem:[#allocation13] sm:$0xf]
        %v1304 = vld [vmem:[#allocation13 + $0x4] sm:$0xf]
        %v1305 = vld [vmem:[#allocation13 + $0x8] sm:$0xf]
        %v1306 = vld [vmem:[#allocation13 + $0xc] sm:$0xf]
        %v1307 = vld [vmem:[#allocation13 + $0x10] sm:$0xf]
        %v1308 = vld [vmem:[#allocation13 + $0x14] sm:$0xf]
        %v1309 = vld [vmem:[#allocation13 + $0x18] sm:$0xf]
        %v1310 = vld [vmem:[#allocation13 + $0x1c] sm:$0xf]
        %v1311 = vld [vmem:[#allocation13 + $0x20] sm:$0xf]
        %v1312 = vld [vmem:[#allocation13 + $0x24] sm:$0xf]
        %v1313 = vld [vmem:[#allocation13 + $0x28] sm:$0xf]
        %v1314 = vld [vmem:[#allocation13 + $0x2c] sm:$0xf]
        %v1315 = vld [vmem:[#allocation13 + $0x30] sm:$0xf]
        %v1316 = vld [vmem:[#allocation13 + $0x34] sm:$0xf]
        %v1317 = vld [vmem:[#allocation13 + $0x38] sm:$0xf]
        %v1318 = vld [vmem:[#allocation13 + $0x3c] sm:$0xf]
        %v1319 = vld [vmem:[#allocation3 + $0x8] sm:$0x1]
        %s1320 = scalar_lea.vmem [#allocation13], 64
        %v1321 = vld [vmem:[%s1320] sm:$0xf]
        %v1322 = vld [vmem:[%s1320 + $0x4] sm:$0xf]
        %v1323 = vld [vmem:[%s1320 + $0x8] sm:$0xf]
        %v1324 = vld [vmem:[%s1320 + $0xc] sm:$0xf]
        %v1325 = vld [vmem:[%s1320 + $0x10] sm:$0xf]
        %v1326 = vld [vmem:[%s1320 + $0x14] sm:$0xf]
        %v1327 = vld [vmem:[%s1320 + $0x18] sm:$0xf]
        %v1328 = vld [vmem:[%s1320 + $0x1c] sm:$0xf]
        %v1329 = vld [vmem:[%s1320 + $0x20] sm:$0xf]
        %v1330 = vld [vmem:[%s1320 + $0x24] sm:$0xf]
        %v1331 = vld [vmem:[%s1320 + $0x28] sm:$0xf]
        %v1332 = vld [vmem:[%s1320 + $0x2c] sm:$0xf]
        %v1333 = vld [vmem:[%s1320 + $0x30] sm:$0xf]
        %v1334 = vld [vmem:[%s1320 + $0x34] sm:$0xf]
        %v1335 = vld [vmem:[%s1320 + $0x38] sm:$0xf]
        %v1336 = vld [vmem:[%s1320 + $0x3c] sm:$0xf]
        %v1340 = vunpack.c.l.b16 %v1301
        %v1341 = vunpack.c.l.b16 %v1302
        %v1342 = vunpack.c.l.b16 %v1319
        %v1343 = vpack.c.b16 %v1341, %v1340
        %v1344 = vpack.c.b16 %v1342, %v1342
        %v1346 = vshrl.u32 %v1343, 16
        %v1348 = vshll.u32 %v1343, 16
        %v1350 = vrot.slane %v1348, 1
        %v1351 = vor.u32 %v1346, %v1350
        %v1353 = vshll.u32 %v1344, 16
        %v1355 = vrot.slane %v1353, 1
        %v1356 = vsel %vm735, %v1351, %v1355
        %v1374 = vunpack.c.l.b16 %v1321
        %v1375 = vunpack.c.l.b16 %v1322
        %v1376 = vunpack.c.l.b16 %v1323
        %v1377 = vunpack.c.l.b16 %v1324
        %v1378 = vunpack.c.l.b16 %v1325
        %v1379 = vunpack.c.l.b16 %v1326
        %v1380 = vunpack.c.l.b16 %v1327
        %v1381 = vunpack.c.l.b16 %v1328
        %v1382 = vunpack.c.l.b16 %v1329
        %v1383 = vunpack.c.l.b16 %v1330
        %v1384 = vunpack.c.l.b16 %v1331
        %v1385 = vunpack.c.l.b16 %v1332
        %v1386 = vunpack.c.l.b16 %v1333
        %v1387 = vunpack.c.l.b16 %v1334
        %v1388 = vunpack.c.l.b16 %v1335
        %v1389 = vunpack.c.l.b16 %v1336
        %v1390 = vpack.c.b16 %v1375, %v1374
        %v1391 = vpack.c.b16 %v1377, %v1376
        %v1392 = vpack.c.b16 %v1379, %v1378
        %v1393 = vpack.c.b16 %v1381, %v1380
        %v1394 = vpack.c.b16 %v1383, %v1382
        %v1395 = vpack.c.b16 %v1385, %v1384
        %v1396 = vpack.c.b16 %v1387, %v1386
        %v1397 = vpack.c.b16 %v1389, %v1388
        %1406 = vmatpush.bf16.msra.mxu0 %v1397
        %1407 = vmatpush.bf16.msra.mxu0 %v1396
        %1408 = vmatpush.bf16.msra.mxu0 %v1395
        %1409 = vmatpush.bf16.msra.mxu0 %v1394
        %1410 = vmatpush.bf16.msra.mxu0 %v1393
        %1411 = vmatpush.bf16.msra.mxu0 %v1392
        %1412 = vmatpush.bf16.msra.mxu0 %v1391
        %1413 = vmatpush.bf16.msra.mxu0 %v1390
        %1414 = vmatmul.bf16.gmra.mxu0 %v1356
        %v1415 = vpop.f32.mrf.mxu0
        %v1416 = vadd.f32 0.0, %v1415
        %v1417 = vpop.f32.mrf.mxu0
        %v1418 = vadd.f32 0.0, %v1417
        %1419 = vdwg.mxu0
        %v1437 = vunpack.c.l.b16 %v1303
        %v1438 = vunpack.c.l.b16 %v1304
        %v1439 = vunpack.c.l.b16 %v1305
        %v1440 = vunpack.c.l.b16 %v1306
        %v1441 = vunpack.c.l.b16 %v1307
        %v1442 = vunpack.c.l.b16 %v1308
        %v1443 = vunpack.c.l.b16 %v1309
        %v1444 = vunpack.c.l.b16 %v1310
        %v1445 = vunpack.c.l.b16 %v1311
        %v1446 = vunpack.c.l.b16 %v1312
        %v1447 = vunpack.c.l.b16 %v1313
        %v1448 = vunpack.c.l.b16 %v1314
        %v1449 = vunpack.c.l.b16 %v1315
        %v1450 = vunpack.c.l.b16 %v1316
        %v1451 = vunpack.c.l.b16 %v1317
        %v1452 = vunpack.c.l.b16 %v1318
        %v1453 = vpack.c.b16 %v1438, %v1437
        %v1454 = vpack.c.b16 %v1440, %v1439
        %v1455 = vpack.c.b16 %v1442, %v1441
        %v1456 = vpack.c.b16 %v1444, %v1443
        %v1457 = vpack.c.b16 %v1446, %v1445
        %v1458 = vpack.c.b16 %v1448, %v1447
        %v1459 = vpack.c.b16 %v1450, %v1449
        %v1460 = vpack.c.b16 %v1452, %v1451
        %1469 = vmatpush.bf16.msra.mxu0 %v1460
        %1470 = vmatpush.bf16.msra.mxu0 %v1459
        %1471 = vmatpush.bf16.msra.mxu0 %v1458
        %1472 = vmatpush.bf16.msra.mxu0 %v1457
        %1473 = vmatpush.bf16.msra.mxu0 %v1456
        %1474 = vmatpush.bf16.msra.mxu0 %v1455
        %1475 = vmatpush.bf16.msra.mxu0 %v1454
        %1476 = vmatpush.bf16.msra.mxu0 %v1453
        %1477 = vmatmul.bf16.gmra.mxu0 %v1343
        %v1478 = vpop.f32.mrf.mxu0
        %v1479 = vadd.f32 %v1416, %v1478
        %v1480 = vpop.f32.mrf.mxu0
        %v1481 = vadd.f32 %v1418, %v1480
        %1482 = vdwg.mxu0
        %v1483 = vld [vmem:[#allocation3] sm:$0xe]
        %s1484 = scalar_lea.vmem [#allocation13], 128
        %v1485 = vld [vmem:[%s1484] sm:$0xf]
        %v1486 = vld [vmem:[%s1484 + $0x4] sm:$0xf]
        %v1487 = vld [vmem:[%s1484 + $0x8] sm:$0xf]
        %v1488 = vld [vmem:[%s1484 + $0xc] sm:$0xf]
        %v1489 = vld [vmem:[%s1484 + $0x10] sm:$0xf]
        %v1490 = vld [vmem:[%s1484 + $0x14] sm:$0xf]
        %v1491 = vld [vmem:[%s1484 + $0x18] sm:$0xf]
        %v1492 = vld [vmem:[%s1484 + $0x1c] sm:$0xf]
        %v1493 = vld [vmem:[%s1484 + $0x20] sm:$0xf]
        %v1494 = vld [vmem:[%s1484 + $0x24] sm:$0xf]
        %v1495 = vld [vmem:[%s1484 + $0x28] sm:$0xf]
        %v1496 = vld [vmem:[%s1484 + $0x2c] sm:$0xf]
        %v1497 = vld [vmem:[%s1484 + $0x30] sm:$0xf]
        %v1498 = vld [vmem:[%s1484 + $0x34] sm:$0xf]
        %v1499 = vld [vmem:[%s1484 + $0x38] sm:$0xf]
        %v1500 = vld [vmem:[%s1484 + $0x3c] sm:$0xf]
        %v1502 = vunpack.c.l.b16 %v1483
        %v1503 = vpack.c.b16 %v1341, %v1502
        %v1504 = vrot.slane %v1503, 1
        %v1505 = vrot.slane %v1344, 1
        %v1506 = vsel %vm895, %v1504, %v1505
        %v1524 = vunpack.c.l.b16 %v1485
        %v1525 = vunpack.c.l.b16 %v1486
        %v1526 = vunpack.c.l.b16 %v1487
        %v1527 = vunpack.c.l.b16 %v1488
        %v1528 = vunpack.c.l.b16 %v1489
        %v1529 = vunpack.c.l.b16 %v1490
        %v1530 = vunpack.c.l.b16 %v1491
        %v1531 = vunpack.c.l.b16 %v1492
        %v1532 = vunpack.c.l.b16 %v1493
        %v1533 = vunpack.c.l.b16 %v1494
        %v1534 = vunpack.c.l.b16 %v1495
        %v1535 = vunpack.c.l.b16 %v1496
        %v1536 = vunpack.c.l.b16 %v1497
        %v1537 = vunpack.c.l.b16 %v1498
        %v1538 = vunpack.c.l.b16 %v1499
        %v1539 = vunpack.c.l.b16 %v1500
        %v1540 = vpack.c.b16 %v1525, %v1524
        %v1541 = vpack.c.b16 %v1527, %v1526
        %v1542 = vpack.c.b16 %v1529, %v1528
        %v1543 = vpack.c.b16 %v1531, %v1530
        %v1544 = vpack.c.b16 %v1533, %v1532
        %v1545 = vpack.c.b16 %v1535, %v1534
        %v1546 = vpack.c.b16 %v1537, %v1536
        %v1547 = vpack.c.b16 %v1539, %v1538
        %1556 = vmatpush.bf16.msra.mxu0 %v1547
        %1557 = vmatpush.bf16.msra.mxu0 %v1546
        %1558 = vmatpush.bf16.msra.mxu0 %v1545
        %1559 = vmatpush.bf16.msra.mxu0 %v1544
        %1560 = vmatpush.bf16.msra.mxu0 %v1543
        %1561 = vmatpush.bf16.msra.mxu0 %v1542
        %1562 = vmatpush.bf16.msra.mxu0 %v1541
        %1563 = vmatpush.bf16.msra.mxu0 %v1540
        %1564 = vmatmul.bf16.gmra.mxu0 %v1506
        %v1565 = vpop.f32.mrf.mxu0
        %v1566 = vadd.f32 0.0, %v1565
        %v1567 = vpop.f32.mrf.mxu0
        %v1568 = vadd.f32 0.0, %v1567
        %1569 = vdwg.mxu0
        %v1570 = vadd.f32 %v1479, %v1566
        %v1571 = vadd.f32 %v1481, %v1568
        %v1572 = vld [vmem:[#allocation3 + $0x8] sm:$0x3]
        %s1573 = scalar_lea.vmem [#allocation13], 192
        %v1574 = vld [vmem:[%s1573] sm:$0xf]
        %v1575 = vld [vmem:[%s1573 + $0x4] sm:$0xf]
        %v1576 = vld [vmem:[%s1573 + $0x8] sm:$0xf]
        %v1577 = vld [vmem:[%s1573 + $0xc] sm:$0xf]
        %v1578 = vld [vmem:[%s1573 + $0x10] sm:$0xf]
        %v1579 = vld [vmem:[%s1573 + $0x14] sm:$0xf]
        %v1580 = vld [vmem:[%s1573 + $0x18] sm:$0xf]
        %v1581 = vld [vmem:[%s1573 + $0x1c] sm:$0xf]
        %v1582 = vld [vmem:[%s1573 + $0x20] sm:$0xf]
        %v1583 = vld [vmem:[%s1573 + $0x24] sm:$0xf]
        %v1584 = vld [vmem:[%s1573 + $0x28] sm:$0xf]
        %v1585 = vld [vmem:[%s1573 + $0x2c] sm:$0xf]
        %v1586 = vld [vmem:[%s1573 + $0x30] sm:$0xf]
        %v1587 = vld [vmem:[%s1573 + $0x34] sm:$0xf]
        %v1588 = vld [vmem:[%s1573 + $0x38] sm:$0xf]
        %v1589 = vld [vmem:[%s1573 + $0x3c] sm:$0xf]
        %v1591 = vunpack.c.l.b16 %v1572
        %v1592 = vpack.c.b16 %v1591, %v1591
        %vm1593 = vsmask.f32 6400
        %v1595 = vshrl.u32 %v1503, 16
        %v1597 = vrot.slane %v1595, 1
        %v1598 = vshll.u32 %v1503, 16
        %v1600 = vrot.slane %v1598, 2
        %v1601 = vor.u32 %v1597, %v1600
        %v1603 = vshrl.u32 %v1592, 16
        %v1605 = vrot.slane %v1603, 1
        %v1606 = vshll.u32 %v1592, 16
        %v1608 = vrot.slane %v1606, 2
        %v1609 = vor.u32 %v1605, %v1608
        %v1610 = vsel %vm1593, %v1601, %v1609
        %v1628 = vunpack.c.l.b16 %v1574
        %v1629 = vunpack.c.l.b16 %v1575
        %v1630 = vunpack.c.l.b16 %v1576
        %v1631 = vunpack.c.l.b16 %v1577
        %v1632 = vunpack.c.l.b16 %v1578
        %v1633 = vunpack.c.l.b16 %v1579
        %v1634 = vunpack.c.l.b16 %v1580
        %v1635 = vunpack.c.l.b16 %v1581
        %v1636 = vunpack.c.l.b16 %v1582
        %v1637 = vunpack.c.l.b16 %v1583
        %v1638 = vunpack.c.l.b16 %v1584
        %v1639 = vunpack.c.l.b16 %v1585
        %v1640 = vunpack.c.l.b16 %v1586
        %v1641 = vunpack.c.l.b16 %v1587
        %v1642 = vunpack.c.l.b16 %v1588
        %v1643 = vunpack.c.l.b16 %v1589
        %v1644 = vpack.c.b16 %v1629, %v1628
        %v1645 = vpack.c.b16 %v1631, %v1630
        %v1646 = vpack.c.b16 %v1633, %v1632
        %v1647 = vpack.c.b16 %v1635, %v1634
        %v1648 = vpack.c.b16 %v1637, %v1636
        %v1649 = vpack.c.b16 %v1639, %v1638
        %v1650 = vpack.c.b16 %v1641, %v1640
        %v1651 = vpack.c.b16 %v1643, %v1642
        %1660 = vmatpush.bf16.msra.mxu0 %v1651
        %1661 = vmatpush.bf16.msra.mxu0 %v1650
        %1662 = vmatpush.bf16.msra.mxu0 %v1649
        %1663 = vmatpush.bf16.msra.mxu0 %v1648
        %1664 = vmatpush.bf16.msra.mxu0 %v1647
        %1665 = vmatpush.bf16.msra.mxu0 %v1646
        %1666 = vmatpush.bf16.msra.mxu0 %v1645
        %1667 = vmatpush.bf16.msra.mxu0 %v1644
        %1668 = vmatmul.bf16.gmra.mxu0 %v1610
        %v1669 = vpop.f32.mrf.mxu0
        %v1670 = vadd.f32 0.0, %v1669
        %v1671 = vpop.f32.mrf.mxu0
        %v1672 = vadd.f32 0.0, %v1671
        %1673 = vdwg.mxu0
        %v1674 = vadd.f32 %v1570, %v1670
        %v1675 = vadd.f32 %v1571, %v1672
        %v1676 = vld [vmem:[#allocation3] sm:$0xc]
        %s1677 = scalar_lea.vmem [#allocation13], 256
        %v1678 = vld [vmem:[%s1677] sm:$0xf]
        %v1679 = vld [vmem:[%s1677 + $0x4] sm:$0xf]
        %v1680 = vld [vmem:[%s1677 + $0x8] sm:$0xf]
        %v1681 = vld [vmem:[%s1677 + $0xc] sm:$0xf]
        %v1682 = vld [vmem:[%s1677 + $0x10] sm:$0xf]
        %v1683 = vld [vmem:[%s1677 + $0x14] sm:$0xf]
        %v1684 = vld [vmem:[%s1677 + $0x18] sm:$0xf]
        %v1685 = vld [vmem:[%s1677 + $0x1c] sm:$0xf]
        %v1686 = vld [vmem:[%s1677 + $0x20] sm:$0xf]
        %v1687 = vld [vmem:[%s1677 + $0x24] sm:$0xf]
        %v1688 = vld [vmem:[%s1677 + $0x28] sm:$0xf]
        %v1689 = vld [vmem:[%s1677 + $0x2c] sm:$0xf]
        %v1690 = vld [vmem:[%s1677 + $0x30] sm:$0xf]
        %v1691 = vld [vmem:[%s1677 + $0x34] sm:$0xf]
        %v1692 = vld [vmem:[%s1677 + $0x38] sm:$0xf]
        %v1693 = vld [vmem:[%s1677 + $0x3c] sm:$0xf]
        %v1695 = vunpack.c.l.b16 %v1676
        %v1696 = vpack.c.b16 %v1341, %v1695
        %vm1697 = vcmask 1045504
        %v1698 = vrot.slane %v1696, 2
        %v1699 = vrot.slane %v1592, 2
        %v1700 = vsel %vm1697, %v1698, %v1699
        %v1718 = vunpack.c.l.b16 %v1678
        %v1719 = vunpack.c.l.b16 %v1679
        %v1720 = vunpack.c.l.b16 %v1680
        %v1721 = vunpack.c.l.b16 %v1681
        %v1722 = vunpack.c.l.b16 %v1682
        %v1723 = vunpack.c.l.b16 %v1683
        %v1724 = vunpack.c.l.b16 %v1684
        %v1725 = vunpack.c.l.b16 %v1685
        %v1726 = vunpack.c.l.b16 %v1686
        %v1727 = vunpack.c.l.b16 %v1687
        %v1728 = vunpack.c.l.b16 %v1688
        %v1729 = vunpack.c.l.b16 %v1689
        %v1730 = vunpack.c.l.b16 %v1690
        %v1731 = vunpack.c.l.b16 %v1691
        %v1732 = vunpack.c.l.b16 %v1692
        %v1733 = vunpack.c.l.b16 %v1693
        %v1734 = vpack.c.b16 %v1719, %v1718
        %v1735 = vpack.c.b16 %v1721, %v1720
        %v1736 = vpack.c.b16 %v1723, %v1722
        %v1737 = vpack.c.b16 %v1725, %v1724
        %v1738 = vpack.c.b16 %v1727, %v1726
        %v1739 = vpack.c.b16 %v1729, %v1728
        %v1740 = vpack.c.b16 %v1731, %v1730
        %v1741 = vpack.c.b16 %v1733, %v1732
        %1750 = vmatpush.bf16.msra.mxu0 %v1741
        %1751 = vmatpush.bf16.msra.mxu0 %v1740
        %1752 = vmatpush.bf16.msra.mxu0 %v1739
        %1753 = vmatpush.bf16.msra.mxu0 %v1738
        %1754 = vmatpush.bf16.msra.mxu0 %v1737
        %1755 = vmatpush.bf16.msra.mxu0 %v1736
        %1756 = vmatpush.bf16.msra.mxu0 %v1735
        %1757 = vmatpush.bf16.msra.mxu0 %v1734
        %1758 = vmatmul.bf16.gmra.mxu0 %v1700
        %v1759 = vpop.f32.mrf.mxu0
        %v1760 = vadd.f32 0.0, %v1759
        %v1761 = vpop.f32.mrf.mxu0
        %v1762 = vadd.f32 0.0, %v1761
        %1763 = vdwg.mxu0
        %v1764 = vadd.f32 %v1674, %v1760
        %v1765 = vadd.f32 %v1675, %v1762
        %v1767 = vperm.slane %v1300, 0
        %v1769 = vadd.f32 %v1764, %v1767
        %v1770 = vadd.f32 %v1765, %v1767
        %v1771 = vmax.f32 %v1769, 0.0
        %v1772 = vmax.f32 %v1770, 0.0
        %v1773 = vpack.c.bf16 %v1771, %v1771
        %v1775 = vshll.u32 %v1773, 16
        %v1778 = vld [vmem:[#allocation4] sm:$0x1]
        %v1779 = vsel %vm655, %v1775, %v1778
        %1780 = vst [vmem:[#allocation4] sm:$0x1] %v1779
        %vm1781 = vcmask 1041409
        %vm1782 = vsmask.f32 1280
        %vm1783 = vmand %vm1781, %vm1782
        %v1784 = vld [vmem:[#allocation4] sm:$0x2]
        %v1785 = vsel %vm1783, %v1773, %v1784
        %1786 = vst [vmem:[#allocation4] sm:$0x2] %v1785
        %v1787 = vrot.slane %v1775, 5
        %v1788 = vrot.slane %v1787, 4
        %vm1790 = vsmask.f32 7942
        %vm1791 = vmand %vm1781, %vm1790
        %v1792 = vld [vmem:[#allocation4] sm:$0x2]
        %v1793 = vsel %vm1791, %v1788, %v1792
        %1794 = vst [vmem:[#allocation4] sm:$0x2] %v1793
        %v1796 = vrot.slane %v1773, 5
        %v1797 = vrot.slane %v1796, 4
        %vm1799 = vsmask.f32 2304
        %vm1800 = vmand %vm678, %vm1799
        %v1801 = vld [vmem:[#allocation4] sm:$0x4]
        %v1802 = vsel %vm1800, %v1797, %v1801
        %1803 = vst [vmem:[#allocation4] sm:$0x4] %v1802
        %v1804 = vpack.c.bf16 %v1772, %v1772
        %v1806 = vshll.u32 %v1804, 16
        %v1808 = vrot.slane %v1806, 6
        %v1810 = vld [vmem:[#allocation4] sm:$0x4]
        %v1811 = vsel %vm680, %v1808, %v1810
        %1812 = vst [vmem:[#allocation4] sm:$0x4] %v1811
        %v1814 = vrot.slane %v1804, 6
        %vm1816 = vcmask 1043459
        %vm1817 = vsmask.f32 3328
        %vm1818 = vmand %vm1816, %vm1817
        %v1819 = vld [vmem:[#allocation4] sm:$0x8]
        %v1820 = vsel %vm1818, %v1814, %v1819
        %1821 = vst [vmem:[#allocation4] sm:$0x8] %v1820
        %v1822 = vrot.slane %v1806, 7
        %vm1824 = vsmask.f32 7950
        %vm1825 = vmand %vm1816, %vm1824
        %v1826 = vld [vmem:[#allocation4] sm:$0x8]
        %v1827 = vsel %vm1825, %v1822, %v1826
        %1828 = vst [vmem:[#allocation4] sm:$0x8] %v1827
        %v1829 = vrot.slane %v1804, 7
        %v1830 = vrot.slane %v1829, 4
        %v1832 = vld [vmem:[#allocation4 + $0x4] sm:$0x1]
        %v1833 = vsel %vm650, %v1830, %v1832
        %1834 = vst [vmem:[#allocation4 + $0x4] sm:$0x1] %v1833
        %v1835 = vld [vmem:[%s12] sm:$0x1]
        %v1836 = vld [vmem:[#allocation4] sm:$0xf]
        %v1837 = vld [vmem:[#allocation14] sm:$0xf]
        %v1838 = vld [vmem:[#allocation14 + $0x4] sm:$0xf]
        %v1839 = vld [vmem:[#allocation14 + $0x8] sm:$0xf]
        %v1840 = vld [vmem:[#allocation14 + $0xc] sm:$0xf]
        %v1841 = vld [vmem:[#allocation14 + $0x10] sm:$0xf]
        %v1842 = vld [vmem:[#allocation14 + $0x14] sm:$0xf]
        %v1843 = vld [vmem:[#allocation14 + $0x18] sm:$0xf]
        %v1844 = vld [vmem:[#allocation14 + $0x1c] sm:$0xf]
        %v1845 = vld [vmem:[#allocation14 + $0x20] sm:$0xf]
        %v1846 = vld [vmem:[#allocation14 + $0x24] sm:$0xf]
        %v1847 = vld [vmem:[#allocation14 + $0x28] sm:$0xf]
        %v1848 = vld [vmem:[#allocation14 + $0x2c] sm:$0xf]
        %v1849 = vld [vmem:[#allocation14 + $0x30] sm:$0xf]
        %v1850 = vld [vmem:[#allocation14 + $0x34] sm:$0xf]
        %v1851 = vld [vmem:[#allocation14 + $0x38] sm:$0xf]
        %v1852 = vld [vmem:[#allocation14 + $0x3c] sm:$0xf]
        %v1853 = vld [vmem:[#allocation4 + $0x4] sm:$0x1]
        %s1854 = scalar_lea.vmem [#allocation14], 64
        %v1855 = vld [vmem:[%s1854] sm:$0xf]
        %v1856 = vld [vmem:[%s1854 + $0x4] sm:$0xf]
        %v1857 = vld [vmem:[%s1854 + $0x8] sm:$0xf]
        %v1858 = vld [vmem:[%s1854 + $0xc] sm:$0xf]
        %v1859 = vld [vmem:[%s1854 + $0x10] sm:$0xf]
        %v1860 = vld [vmem:[%s1854 + $0x14] sm:$0xf]
        %v1861 = vld [vmem:[%s1854 + $0x18] sm:$0xf]
        %v1862 = vld [vmem:[%s1854 + $0x1c] sm:$0xf]
        %v1863 = vld [vmem:[%s1854 + $0x20] sm:$0xf]
        %v1864 = vld [vmem:[%s1854 + $0x24] sm:$0xf]
        %v1865 = vld [vmem:[%s1854 + $0x28] sm:$0xf]
        %v1866 = vld [vmem:[%s1854 + $0x2c] sm:$0xf]
        %v1867 = vld [vmem:[%s1854 + $0x30] sm:$0xf]
        %v1868 = vld [vmem:[%s1854 + $0x34] sm:$0xf]
        %v1869 = vld [vmem:[%s1854 + $0x38] sm:$0xf]
        %v1870 = vld [vmem:[%s1854 + $0x3c] sm:$0xf]
        %v1873 = vunpack.c.l.b16 %v1836
        %v1874 = vunpack.c.l.b16 %v1853
        %v1875 = vpack.c.b16 %v1874, %v1873
        %v1877 = vshrl.u32 %v1875, 16
        %v1879 = vshll.u32 %v1875, 16
        %v1881 = vrot.slane %v1879, 1
        %v1882 = vor.u32 %v1877, %v1881
        %v1900 = vunpack.c.l.b16 %v1855
        %v1901 = vunpack.c.l.b16 %v1856
        %v1902 = vunpack.c.l.b16 %v1857
        %v1903 = vunpack.c.l.b16 %v1858
        %v1904 = vunpack.c.l.b16 %v1859
        %v1905 = vunpack.c.l.b16 %v1860
        %v1906 = vunpack.c.l.b16 %v1861
        %v1907 = vunpack.c.l.b16 %v1862
        %v1908 = vunpack.c.l.b16 %v1863
        %v1909 = vunpack.c.l.b16 %v1864
        %v1910 = vunpack.c.l.b16 %v1865
        %v1911 = vunpack.c.l.b16 %v1866
        %v1912 = vunpack.c.l.b16 %v1867
        %v1913 = vunpack.c.l.b16 %v1868
        %v1914 = vunpack.c.l.b16 %v1869
        %v1915 = vunpack.c.l.b16 %v1870
        %v1916 = vpack.c.b16 %v1901, %v1900
        %v1917 = vpack.c.b16 %v1903, %v1902
        %v1918 = vpack.c.b16 %v1905, %v1904
        %v1919 = vpack.c.b16 %v1907, %v1906
        %v1920 = vpack.c.b16 %v1909, %v1908
        %v1921 = vpack.c.b16 %v1911, %v1910
        %v1922 = vpack.c.b16 %v1913, %v1912
        %v1923 = vpack.c.b16 %v1915, %v1914
        %1932 = vmatpush.bf16.msra.mxu0 %v1923
        %1933 = vmatpush.bf16.msra.mxu0 %v1922
        %1934 = vmatpush.bf16.msra.mxu0 %v1921
        %1935 = vmatpush.bf16.msra.mxu0 %v1920
        %1936 = vmatpush.bf16.msra.mxu0 %v1919
        %1937 = vmatpush.bf16.msra.mxu0 %v1918
        %1938 = vmatpush.bf16.msra.mxu0 %v1917
        %1939 = vmatpush.bf16.msra.mxu0 %v1916
        %1940 = vmatmul.bf16.gmra.mxu0 %v1882
        %v1941 = vpop.f32.mrf.mxu0
        %v1942 = vadd.f32 0.0, %v1941
        %v1943 = vpop.f32.mrf.mxu0
        %1944 = vdwg.mxu0
        %v1961 = vunpack.c.l.b16 %v1837
        %v1962 = vunpack.c.l.b16 %v1838
        %v1963 = vunpack.c.l.b16 %v1839
        %v1964 = vunpack.c.l.b16 %v1840
        %v1965 = vunpack.c.l.b16 %v1841
        %v1966 = vunpack.c.l.b16 %v1842
        %v1967 = vunpack.c.l.b16 %v1843
        %v1968 = vunpack.c.l.b16 %v1844
        %v1969 = vunpack.c.l.b16 %v1845
        %v1970 = vunpack.c.l.b16 %v1846
        %v1971 = vunpack.c.l.b16 %v1847
        %v1972 = vunpack.c.l.b16 %v1848
        %v1973 = vunpack.c.l.b16 %v1849
        %v1974 = vunpack.c.l.b16 %v1850
        %v1975 = vunpack.c.l.b16 %v1851
        %v1976 = vunpack.c.l.b16 %v1852
        %v1977 = vpack.c.b16 %v1962, %v1961
        %v1978 = vpack.c.b16 %v1964, %v1963
        %v1979 = vpack.c.b16 %v1966, %v1965
        %v1980 = vpack.c.b16 %v1968, %v1967
        %v1981 = vpack.c.b16 %v1970, %v1969
        %v1982 = vpack.c.b16 %v1972, %v1971
        %v1983 = vpack.c.b16 %v1974, %v1973
        %v1984 = vpack.c.b16 %v1976, %v1975
        %1993 = vmatpush.bf16.msra.mxu0 %v1984
        %1994 = vmatpush.bf16.msra.mxu0 %v1983
        %1995 = vmatpush.bf16.msra.mxu0 %v1982
        %1996 = vmatpush.bf16.msra.mxu0 %v1981
        %1997 = vmatpush.bf16.msra.mxu0 %v1980
        %1998 = vmatpush.bf16.msra.mxu0 %v1979
        %1999 = vmatpush.bf16.msra.mxu0 %v1978
        %2000 = vmatpush.bf16.msra.mxu0 %v1977
        %2001 = vmatmul.bf16.gmra.mxu0 %v1836
        %v2002 = vpop.f32.mrf.mxu0
        %v2003 = vadd.f32 %v1942, %v2002
        %v2004 = vpop.f32.mrf.mxu0
        %2005 = vdwg.mxu0
        %v2006 = vld [vmem:[#allocation4] sm:$0xe]
        %s2007 = scalar_lea.vmem [#allocation14], 128
        %v2008 = vld [vmem:[%s2007] sm:$0xf]
        %v2009 = vld [vmem:[%s2007 + $0x4] sm:$0xf]
        %v2010 = vld [vmem:[%s2007 + $0x8] sm:$0xf]
        %v2011 = vld [vmem:[%s2007 + $0xc] sm:$0xf]
        %v2012 = vld [vmem:[%s2007 + $0x10] sm:$0xf]
        %v2013 = vld [vmem:[%s2007 + $0x14] sm:$0xf]
        %v2014 = vld [vmem:[%s2007 + $0x18] sm:$0xf]
        %v2015 = vld [vmem:[%s2007 + $0x1c] sm:$0xf]
        %v2016 = vld [vmem:[%s2007 + $0x20] sm:$0xf]
        %v2017 = vld [vmem:[%s2007 + $0x24] sm:$0xf]
        %v2018 = vld [vmem:[%s2007 + $0x28] sm:$0xf]
        %v2019 = vld [vmem:[%s2007 + $0x2c] sm:$0xf]
        %v2020 = vld [vmem:[%s2007 + $0x30] sm:$0xf]
        %v2021 = vld [vmem:[%s2007 + $0x34] sm:$0xf]
        %v2022 = vld [vmem:[%s2007 + $0x38] sm:$0xf]
        %v2023 = vld [vmem:[%s2007 + $0x3c] sm:$0xf]
        %v2025 = vunpack.c.l.b16 %v2006
        %v2026 = vpack.c.b16 %v1874, %v2025
        %v2027 = vrot.slane %v2026, 1
        %v2045 = vunpack.c.l.b16 %v2008
        %v2046 = vunpack.c.l.b16 %v2009
        %v2047 = vunpack.c.l.b16 %v2010
        %v2048 = vunpack.c.l.b16 %v2011
        %v2049 = vunpack.c.l.b16 %v2012
        %v2050 = vunpack.c.l.b16 %v2013
        %v2051 = vunpack.c.l.b16 %v2014
        %v2052 = vunpack.c.l.b16 %v2015
        %v2053 = vunpack.c.l.b16 %v2016
        %v2054 = vunpack.c.l.b16 %v2017
        %v2055 = vunpack.c.l.b16 %v2018
        %v2056 = vunpack.c.l.b16 %v2019
        %v2057 = vunpack.c.l.b16 %v2020
        %v2058 = vunpack.c.l.b16 %v2021
        %v2059 = vunpack.c.l.b16 %v2022
        %v2060 = vunpack.c.l.b16 %v2023
        %v2061 = vpack.c.b16 %v2046, %v2045
        %v2062 = vpack.c.b16 %v2048, %v2047
        %v2063 = vpack.c.b16 %v2050, %v2049
        %v2064 = vpack.c.b16 %v2052, %v2051
        %v2065 = vpack.c.b16 %v2054, %v2053
        %v2066 = vpack.c.b16 %v2056, %v2055
        %v2067 = vpack.c.b16 %v2058, %v2057
        %v2068 = vpack.c.b16 %v2060, %v2059
        %2077 = vmatpush.bf16.msra.mxu0 %v2068
        %2078 = vmatpush.bf16.msra.mxu0 %v2067
        %2079 = vmatpush.bf16.msra.mxu0 %v2066
        %2080 = vmatpush.bf16.msra.mxu0 %v2065
        %2081 = vmatpush.bf16.msra.mxu0 %v2064
        %2082 = vmatpush.bf16.msra.mxu0 %v2063
        %2083 = vmatpush.bf16.msra.mxu0 %v2062
        %2084 = vmatpush.bf16.msra.mxu0 %v2061
        %2085 = vmatmul.bf16.gmra.mxu0 %v2027
        %v2086 = vpop.f32.mrf.mxu0
        %v2087 = vadd.f32 0.0, %v2086
        %v2088 = vpop.f32.mrf.mxu0
        %2089 = vdwg.mxu0
        %v2090 = vadd.f32 %v2003, %v2087
        %v2092 = vperm.slane %v1835, 0
        %v2094 = vadd.f32 %v2090, %v2092
        %v2095 = vmax.f32 %v2094, 0.0
        %v2096 = vpack.c.bf16 %v2095, %v2095
        %v2098 = vshrl.u32 %v2096, 16
        %v2100 = vrot.slane %v2098, 7
        %v2101 = vshll.u32 %v2096, 16
        %v2103 = vor.u32 %v2100, %v2101
        %v2104 = vrot.slane %v2100, 4
        %v2107 = vld [vmem:[#allocation5] sm:$0xf]
        %v2108 = vsel %vm996, %v2103, %v2107
        %2109 = vst [vmem:[#allocation5] sm:$0xf] %v2108
        %v2110 = vld [vmem:[#allocation5 + $0x4] sm:$0x1]
        %v2111 = vsel %vm650, %v2104, %v2110
        %2112 = vst [vmem:[#allocation5 + $0x4] sm:$0x1] %v2111
        %v2113 = vld [vmem:[%s13] sm:$0x1]
        %v2114 = vld [vmem:[#allocation5] sm:$0xf]
        %v2115 = vld [vmem:[#allocation16] sm:$0xf]
        %v2116 = vld [vmem:[#allocation16 + $0x4] sm:$0xf]
        %v2117 = vld [vmem:[#allocation16 + $0x8] sm:$0xf]
        %v2118 = vld [vmem:[#allocation16 + $0xc] sm:$0xf]
        %v2119 = vld [vmem:[#allocation16 + $0x10] sm:$0xf]
        %v2120 = vld [vmem:[#allocation16 + $0x14] sm:$0xf]
        %v2121 = vld [vmem:[#allocation16 + $0x18] sm:$0xf]
        %v2122 = vld [vmem:[#allocation16 + $0x1c] sm:$0xf]
        %v2123 = vld [vmem:[#allocation16 + $0x20] sm:$0xf]
        %v2124 = vld [vmem:[#allocation16 + $0x24] sm:$0xf]
        %v2125 = vld [vmem:[#allocation16 + $0x28] sm:$0xf]
        %v2126 = vld [vmem:[#allocation16 + $0x2c] sm:$0xf]
        %v2127 = vld [vmem:[#allocation16 + $0x30] sm:$0xf]
        %v2128 = vld [vmem:[#allocation16 + $0x34] sm:$0xf]
        %v2129 = vld [vmem:[#allocation16 + $0x38] sm:$0xf]
        %v2130 = vld [vmem:[#allocation16 + $0x3c] sm:$0xf]
        %v2131 = vld [vmem:[#allocation5 + $0x4] sm:$0x1]
        %s2132 = scalar_lea.vmem [#allocation16], 64
        %v2133 = vld [vmem:[%s2132] sm:$0xf]
        %v2134 = vld [vmem:[%s2132 + $0x4] sm:$0xf]
        %v2135 = vld [vmem:[%s2132 + $0x8] sm:$0xf]
        %v2136 = vld [vmem:[%s2132 + $0xc] sm:$0xf]
        %v2137 = vld [vmem:[%s2132 + $0x10] sm:$0xf]
        %v2138 = vld [vmem:[%s2132 + $0x14] sm:$0xf]
        %v2139 = vld [vmem:[%s2132 + $0x18] sm:$0xf]
        %v2140 = vld [vmem:[%s2132 + $0x1c] sm:$0xf]
        %v2141 = vld [vmem:[%s2132 + $0x20] sm:$0xf]
        %v2142 = vld [vmem:[%s2132 + $0x24] sm:$0xf]
        %v2143 = vld [vmem:[%s2132 + $0x28] sm:$0xf]
        %v2144 = vld [vmem:[%s2132 + $0x2c] sm:$0xf]
        %v2145 = vld [vmem:[%s2132 + $0x30] sm:$0xf]
        %v2146 = vld [vmem:[%s2132 + $0x34] sm:$0xf]
        %v2147 = vld [vmem:[%s2132 + $0x38] sm:$0xf]
        %v2148 = vld [vmem:[%s2132 + $0x3c] sm:$0xf]
        %v2151 = vunpack.c.l.b16 %v2114
        %v2152 = vunpack.c.l.b16 %v2131
        %v2153 = vpack.c.b16 %v2152, %v2151
        %v2155 = vshrl.u32 %v2153, 16
        %v2157 = vshll.u32 %v2153, 16
        %v2159 = vrot.slane %v2157, 1
        %v2160 = vor.u32 %v2155, %v2159
        %v2178 = vunpack.c.l.b16 %v2133
        %v2179 = vunpack.c.l.b16 %v2134
        %v2180 = vunpack.c.l.b16 %v2135
        %v2181 = vunpack.c.l.b16 %v2136
        %v2182 = vunpack.c.l.b16 %v2137
        %v2183 = vunpack.c.l.b16 %v2138
        %v2184 = vunpack.c.l.b16 %v2139
        %v2185 = vunpack.c.l.b16 %v2140
        %v2186 = vunpack.c.l.b16 %v2141
        %v2187 = vunpack.c.l.b16 %v2142
        %v2188 = vunpack.c.l.b16 %v2143
        %v2189 = vunpack.c.l.b16 %v2144
        %v2190 = vunpack.c.l.b16 %v2145
        %v2191 = vunpack.c.l.b16 %v2146
        %v2192 = vunpack.c.l.b16 %v2147
        %v2193 = vunpack.c.l.b16 %v2148
        %v2194 = vpack.c.b16 %v2179, %v2178
        %v2195 = vpack.c.b16 %v2181, %v2180
        %v2196 = vpack.c.b16 %v2183, %v2182
        %v2197 = vpack.c.b16 %v2185, %v2184
        %v2198 = vpack.c.b16 %v2187, %v2186
        %v2199 = vpack.c.b16 %v2189, %v2188
        %v2200 = vpack.c.b16 %v2191, %v2190
        %v2201 = vpack.c.b16 %v2193, %v2192
        %2210 = vmatpush.bf16.msra.mxu0 %v2201
        %2211 = vmatpush.bf16.msra.mxu0 %v2200
        %2212 = vmatpush.bf16.msra.mxu0 %v2199
        %2213 = vmatpush.bf16.msra.mxu0 %v2198
        %2214 = vmatpush.bf16.msra.mxu0 %v2197
        %2215 = vmatpush.bf16.msra.mxu0 %v2196
        %2216 = vmatpush.bf16.msra.mxu0 %v2195
        %2217 = vmatpush.bf16.msra.mxu0 %v2194
        %2218 = vmatmul.bf16.gmra.mxu0 %v2160
        %v2219 = vpop.f32.mrf.mxu0
        %v2220 = vadd.f32 0.0, %v2219
        %v2221 = vpop.f32.mrf.mxu0
        %2222 = vdwg.mxu0
        %v2239 = vunpack.c.l.b16 %v2115
        %v2240 = vunpack.c.l.b16 %v2116
        %v2241 = vunpack.c.l.b16 %v2117
        %v2242 = vunpack.c.l.b16 %v2118
        %v2243 = vunpack.c.l.b16 %v2119
        %v2244 = vunpack.c.l.b16 %v2120
        %v2245 = vunpack.c.l.b16 %v2121
        %v2246 = vunpack.c.l.b16 %v2122
        %v2247 = vunpack.c.l.b16 %v2123
        %v2248 = vunpack.c.l.b16 %v2124
        %v2249 = vunpack.c.l.b16 %v2125
        %v2250 = vunpack.c.l.b16 %v2126
        %v2251 = vunpack.c.l.b16 %v2127
        %v2252 = vunpack.c.l.b16 %v2128
        %v2253 = vunpack.c.l.b16 %v2129
        %v2254 = vunpack.c.l.b16 %v2130
        %v2255 = vpack.c.b16 %v2240, %v2239
        %v2256 = vpack.c.b16 %v2242, %v2241
        %v2257 = vpack.c.b16 %v2244, %v2243
        %v2258 = vpack.c.b16 %v2246, %v2245
        %v2259 = vpack.c.b16 %v2248, %v2247
        %v2260 = vpack.c.b16 %v2250, %v2249
        %v2261 = vpack.c.b16 %v2252, %v2251
        %v2262 = vpack.c.b16 %v2254, %v2253
        %2271 = vmatpush.bf16.msra.mxu0 %v2262
        %2272 = vmatpush.bf16.msra.mxu0 %v2261
        %2273 = vmatpush.bf16.msra.mxu0 %v2260
        %2274 = vmatpush.bf16.msra.mxu0 %v2259
        %2275 = vmatpush.bf16.msra.mxu0 %v2258
        %2276 = vmatpush.bf16.msra.mxu0 %v2257
        %2277 = vmatpush.bf16.msra.mxu0 %v2256
        %2278 = vmatpush.bf16.msra.mxu0 %v2255
        %2279 = vmatmul.bf16.gmra.mxu0 %v2114
        %v2280 = vpop.f32.mrf.mxu0
        %v2281 = vadd.f32 %v2220, %v2280
        %v2282 = vpop.f32.mrf.mxu0
        %2283 = vdwg.mxu0
        %v2284 = vld [vmem:[#allocation5] sm:$0xe]
        %s2285 = scalar_lea.vmem [#allocation16], 128
        %v2286 = vld [vmem:[%s2285] sm:$0xf]
        %v2287 = vld [vmem:[%s2285 + $0x4] sm:$0xf]
        %v2288 = vld [vmem:[%s2285 + $0x8] sm:$0xf]
        %v2289 = vld [vmem:[%s2285 + $0xc] sm:$0xf]
        %v2290 = vld [vmem:[%s2285 + $0x10] sm:$0xf]
        %v2291 = vld [vmem:[%s2285 + $0x14] sm:$0xf]
        %v2292 = vld [vmem:[%s2285 + $0x18] sm:$0xf]
        %v2293 = vld [vmem:[%s2285 + $0x1c] sm:$0xf]
        %v2294 = vld [vmem:[%s2285 + $0x20] sm:$0xf]
        %v2295 = vld [vmem:[%s2285 + $0x24] sm:$0xf]
        %v2296 = vld [vmem:[%s2285 + $0x28] sm:$0xf]
        %v2297 = vld [vmem:[%s2285 + $0x2c] sm:$0xf]
        %v2298 = vld [vmem:[%s2285 + $0x30] sm:$0xf]
        %v2299 = vld [vmem:[%s2285 + $0x34] sm:$0xf]
        %v2300 = vld [vmem:[%s2285 + $0x38] sm:$0xf]
        %v2301 = vld [vmem:[%s2285 + $0x3c] sm:$0xf]
        %v2303 = vunpack.c.l.b16 %v2284
        %v2304 = vpack.c.b16 %v2152, %v2303
        %v2305 = vrot.slane %v2304, 1
        %v2323 = vunpack.c.l.b16 %v2286
        %v2324 = vunpack.c.l.b16 %v2287
        %v2325 = vunpack.c.l.b16 %v2288
        %v2326 = vunpack.c.l.b16 %v2289
        %v2327 = vunpack.c.l.b16 %v2290
        %v2328 = vunpack.c.l.b16 %v2291
        %v2329 = vunpack.c.l.b16 %v2292
        %v2330 = vunpack.c.l.b16 %v2293
        %v2331 = vunpack.c.l.b16 %v2294
        %v2332 = vunpack.c.l.b16 %v2295
        %v2333 = vunpack.c.l.b16 %v2296
        %v2334 = vunpack.c.l.b16 %v2297
        %v2335 = vunpack.c.l.b16 %v2298
        %v2336 = vunpack.c.l.b16 %v2299
        %v2337 = vunpack.c.l.b16 %v2300
        %v2338 = vunpack.c.l.b16 %v2301
        %v2339 = vpack.c.b16 %v2324, %v2323
        %v2340 = vpack.c.b16 %v2326, %v2325
        %v2341 = vpack.c.b16 %v2328, %v2327
        %v2342 = vpack.c.b16 %v2330, %v2329
        %v2343 = vpack.c.b16 %v2332, %v2331
        %v2344 = vpack.c.b16 %v2334, %v2333
        %v2345 = vpack.c.b16 %v2336, %v2335
        %v2346 = vpack.c.b16 %v2338, %v2337
        %2355 = vmatpush.bf16.msra.mxu0 %v2346
        %2356 = vmatpush.bf16.msra.mxu0 %v2345
        %2357 = vmatpush.bf16.msra.mxu0 %v2344
        %2358 = vmatpush.bf16.msra.mxu0 %v2343
        %2359 = vmatpush.bf16.msra.mxu0 %v2342
        %2360 = vmatpush.bf16.msra.mxu0 %v2341
        %2361 = vmatpush.bf16.msra.mxu0 %v2340
        %2362 = vmatpush.bf16.msra.mxu0 %v2339
        %2363 = vmatmul.bf16.gmra.mxu0 %v2305
        %v2364 = vpop.f32.mrf.mxu0
        %v2365 = vadd.f32 0.0, %v2364
        %v2366 = vpop.f32.mrf.mxu0
        %2367 = vdwg.mxu0
        %v2368 = vadd.f32 %v2281, %v2365
        %v2370 = vperm.slane %v2113, 0
        %v2372 = vadd.f32 %v2368, %v2370
        %v2373 = vmax.f32 %v2372, 0.0
        %v2374 = vpack.c.bf16 %v2373, %v2373
        %v2376 = vrot.slane %v2374, 7
        %v2377 = vrot.slane %v2376, 4
        %2380 = vst [vmem:[#allocation6] sm:$0xe] %v2376
        %2381 = vst [vmem:[#allocation6 + $0x4] sm:$0x1] %v2377
        %v2382 = vld [vmem:[%s14] sm:$0x1]
        %v2383 = vld [vmem:[#allocation6] sm:$0xf]
        %v2384 = vld [vmem:[%s6] sm:$0xf]
        %v2385 = vld [vmem:[%s6 + $0x4] sm:$0xf]
        %v2386 = vld [vmem:[%s6 + $0x8] sm:$0xf]
        %v2387 = vld [vmem:[%s6 + $0xc] sm:$0xf]
        %v2388 = vld [vmem:[%s6 + $0x10] sm:$0xf]
        %v2389 = vld [vmem:[%s6 + $0x14] sm:$0xf]
        %v2390 = vld [vmem:[%s6 + $0x18] sm:$0xf]
        %v2391 = vld [vmem:[%s6 + $0x1c] sm:$0xf]
        %v2392 = vld [vmem:[%s6 + $0x20] sm:$0xf]
        %v2393 = vld [vmem:[%s6 + $0x24] sm:$0xf]
        %v2394 = vld [vmem:[%s6 + $0x28] sm:$0xf]
        %v2395 = vld [vmem:[%s6 + $0x2c] sm:$0xf]
        %v2396 = vld [vmem:[%s6 + $0x30] sm:$0xf]
        %v2397 = vld [vmem:[%s6 + $0x34] sm:$0xf]
        %v2398 = vld [vmem:[%s6 + $0x38] sm:$0xf]
        %v2399 = vld [vmem:[%s6 + $0x3c] sm:$0xf]
        %v2400 = vld [vmem:[#allocation6 + $0x4] sm:$0x1]
        %s2401 = scalar_lea.vmem %s6, 64
        %v2402 = vld [vmem:[%s2401] sm:$0xf]
        %v2403 = vld [vmem:[%s2401 + $0x4] sm:$0xf]
        %v2404 = vld [vmem:[%s2401 + $0x8] sm:$0xf]
        %v2405 = vld [vmem:[%s2401 + $0xc] sm:$0xf]
        %v2406 = vld [vmem:[%s2401 + $0x10] sm:$0xf]
        %v2407 = vld [vmem:[%s2401 + $0x14] sm:$0xf]
        %v2408 = vld [vmem:[%s2401 + $0x18] sm:$0xf]
        %v2409 = vld [vmem:[%s2401 + $0x1c] sm:$0xf]
        %v2410 = vld [vmem:[%s2401 + $0x20] sm:$0xf]
        %v2411 = vld [vmem:[%s2401 + $0x24] sm:$0xf]
        %v2412 = vld [vmem:[%s2401 + $0x28] sm:$0xf]
        %v2413 = vld [vmem:[%s2401 + $0x2c] sm:$0xf]
        %v2414 = vld [vmem:[%s2401 + $0x30] sm:$0xf]
        %v2415 = vld [vmem:[%s2401 + $0x34] sm:$0xf]
        %v2416 = vld [vmem:[%s2401 + $0x38] sm:$0xf]
        %v2417 = vld [vmem:[%s2401 + $0x3c] sm:$0xf]
        %v2420 = vunpack.c.l.b16 %v2383
        %v2421 = vunpack.c.l.b16 %v2400
        %v2422 = vpack.c.b16 %v2421, %v2420
        %v2424 = vshrl.u32 %v2422, 16
        %v2426 = vshll.u32 %v2422, 16
        %v2428 = vrot.slane %v2426, 1
        %v2429 = vor.u32 %v2424, %v2428
        %v2447 = vunpack.c.l.b16 %v2402
        %v2448 = vunpack.c.l.b16 %v2403
        %v2449 = vunpack.c.l.b16 %v2404
        %v2450 = vunpack.c.l.b16 %v2405
        %v2451 = vunpack.c.l.b16 %v2406
        %v2452 = vunpack.c.l.b16 %v2407
        %v2453 = vunpack.c.l.b16 %v2408
        %v2454 = vunpack.c.l.b16 %v2409
        %v2455 = vunpack.c.l.b16 %v2410
        %v2456 = vunpack.c.l.b16 %v2411
        %v2457 = vunpack.c.l.b16 %v2412
        %v2458 = vunpack.c.l.b16 %v2413
        %v2459 = vunpack.c.l.b16 %v2414
        %v2460 = vunpack.c.l.b16 %v2415
        %v2461 = vunpack.c.l.b16 %v2416
        %v2462 = vunpack.c.l.b16 %v2417
        %v2463 = vpack.c.b16 %v2448, %v2447
        %v2464 = vpack.c.b16 %v2450, %v2449
        %v2465 = vpack.c.b16 %v2452, %v2451
        %v2466 = vpack.c.b16 %v2454, %v2453
        %v2467 = vpack.c.b16 %v2456, %v2455
        %v2468 = vpack.c.b16 %v2458, %v2457
        %v2469 = vpack.c.b16 %v2460, %v2459
        %v2470 = vpack.c.b16 %v2462, %v2461
        %2479 = vmatpush.bf16.msra.mxu0 %v2470
        %2480 = vmatpush.bf16.msra.mxu0 %v2469
        %2481 = vmatpush.bf16.msra.mxu0 %v2468
        %2482 = vmatpush.bf16.msra.mxu0 %v2467
        %2483 = vmatpush.bf16.msra.mxu0 %v2466
        %2484 = vmatpush.bf16.msra.mxu0 %v2465
        %2485 = vmatpush.bf16.msra.mxu0 %v2464
        %2486 = vmatpush.bf16.msra.mxu0 %v2463
        %2487 = vmatmul.bf16.gmra.mxu0 %v2429
        %v2488 = vpop.f32.mrf.mxu0
        %v2489 = vadd.f32 0.0, %v2488
        %v2490 = vpop.f32.mrf.mxu0
        %2491 = vdwg.mxu0
        %v2508 = vunpack.c.l.b16 %v2384
        %v2509 = vunpack.c.l.b16 %v2385
        %v2510 = vunpack.c.l.b16 %v2386
        %v2511 = vunpack.c.l.b16 %v2387
        %v2512 = vunpack.c.l.b16 %v2388
        %v2513 = vunpack.c.l.b16 %v2389
        %v2514 = vunpack.c.l.b16 %v2390
        %v2515 = vunpack.c.l.b16 %v2391
        %v2516 = vunpack.c.l.b16 %v2392
        %v2517 = vunpack.c.l.b16 %v2393
        %v2518 = vunpack.c.l.b16 %v2394
        %v2519 = vunpack.c.l.b16 %v2395
        %v2520 = vunpack.c.l.b16 %v2396
        %v2521 = vunpack.c.l.b16 %v2397
        %v2522 = vunpack.c.l.b16 %v2398
        %v2523 = vunpack.c.l.b16 %v2399
        %v2524 = vpack.c.b16 %v2509, %v2508
        %v2525 = vpack.c.b16 %v2511, %v2510
        %v2526 = vpack.c.b16 %v2513, %v2512
        %v2527 = vpack.c.b16 %v2515, %v2514
        %v2528 = vpack.c.b16 %v2517, %v2516
        %v2529 = vpack.c.b16 %v2519, %v2518
        %v2530 = vpack.c.b16 %v2521, %v2520
        %v2531 = vpack.c.b16 %v2523, %v2522
        %2540 = vmatpush.bf16.msra.mxu0 %v2531
        %2541 = vmatpush.bf16.msra.mxu0 %v2530
        %2542 = vmatpush.bf16.msra.mxu0 %v2529
        %2543 = vmatpush.bf16.msra.mxu0 %v2528
        %2544 = vmatpush.bf16.msra.mxu0 %v2527
        %2545 = vmatpush.bf16.msra.mxu0 %v2526
        %2546 = vmatpush.bf16.msra.mxu0 %v2525
        %2547 = vmatpush.bf16.msra.mxu0 %v2524
        %2548 = vmatmul.bf16.gmra.mxu0 %v2383
        %v2549 = vpop.f32.mrf.mxu0
        %v2550 = vadd.f32 %v2489, %v2549
        %v2551 = vpop.f32.mrf.mxu0
        %2552 = vdwg.mxu0
        %v2553 = vld [vmem:[#allocation6] sm:$0xe]
        %s2554 = scalar_lea.vmem %s6, 128
        %v2555 = vld [vmem:[%s2554] sm:$0xf]
        %v2556 = vld [vmem:[%s2554 + $0x4] sm:$0xf]
        %v2557 = vld [vmem:[%s2554 + $0x8] sm:$0xf]
        %v2558 = vld [vmem:[%s2554 + $0xc] sm:$0xf]
        %v2559 = vld [vmem:[%s2554 + $0x10] sm:$0xf]
        %v2560 = vld [vmem:[%s2554 + $0x14] sm:$0xf]
        %v2561 = vld [vmem:[%s2554 + $0x18] sm:$0xf]
        %v2562 = vld [vmem:[%s2554 + $0x1c] sm:$0xf]
        %v2563 = vld [vmem:[%s2554 + $0x20] sm:$0xf]
        %v2564 = vld [vmem:[%s2554 + $0x24] sm:$0xf]
        %v2565 = vld [vmem:[%s2554 + $0x28] sm:$0xf]
        %v2566 = vld [vmem:[%s2554 + $0x2c] sm:$0xf]
        %v2567 = vld [vmem:[%s2554 + $0x30] sm:$0xf]
        %v2568 = vld [vmem:[%s2554 + $0x34] sm:$0xf]
        %v2569 = vld [vmem:[%s2554 + $0x38] sm:$0xf]
        %v2570 = vld [vmem:[%s2554 + $0x3c] sm:$0xf]
        %v2572 = vunpack.c.l.b16 %v2553
        %v2573 = vpack.c.b16 %v2421, %v2572
        %v2574 = vrot.slane %v2573, 1
        %v2592 = vunpack.c.l.b16 %v2555
        %v2593 = vunpack.c.l.b16 %v2556
        %v2594 = vunpack.c.l.b16 %v2557
        %v2595 = vunpack.c.l.b16 %v2558
        %v2596 = vunpack.c.l.b16 %v2559
        %v2597 = vunpack.c.l.b16 %v2560
        %v2598 = vunpack.c.l.b16 %v2561
        %v2599 = vunpack.c.l.b16 %v2562
        %v2600 = vunpack.c.l.b16 %v2563
        %v2601 = vunpack.c.l.b16 %v2564
        %v2602 = vunpack.c.l.b16 %v2565
        %v2603 = vunpack.c.l.b16 %v2566
        %v2604 = vunpack.c.l.b16 %v2567
        %v2605 = vunpack.c.l.b16 %v2568
        %v2606 = vunpack.c.l.b16 %v2569
        %v2607 = vunpack.c.l.b16 %v2570
        %v2608 = vpack.c.b16 %v2593, %v2592
        %v2609 = vpack.c.b16 %v2595, %v2594
        %v2610 = vpack.c.b16 %v2597, %v2596
        %v2611 = vpack.c.b16 %v2599, %v2598
        %v2612 = vpack.c.b16 %v2601, %v2600
        %v2613 = vpack.c.b16 %v2603, %v2602
        %v2614 = vpack.c.b16 %v2605, %v2604
        %v2615 = vpack.c.b16 %v2607, %v2606
        %2624 = vmatpush.bf16.msra.mxu0 %v2615
        %2625 = vmatpush.bf16.msra.mxu0 %v2614
        %2626 = vmatpush.bf16.msra.mxu0 %v2613
        %2627 = vmatpush.bf16.msra.mxu0 %v2612
        %2628 = vmatpush.bf16.msra.mxu0 %v2611
        %2629 = vmatpush.bf16.msra.mxu0 %v2610
        %2630 = vmatpush.bf16.msra.mxu0 %v2609
        %2631 = vmatpush.bf16.msra.mxu0 %v2608
        %2632 = vmatmul.bf16.gmra.mxu0 %v2574
        %v2633 = vpop.f32.mrf.mxu0
        %v2634 = vadd.f32 0.0, %v2633
        %v2635 = vpop.f32.mrf.mxu0
        %2636 = vdwg.mxu0
        %v2637 = vadd.f32 %v2550, %v2634
        %v2638 = vld [vmem:[#allocation6 + $0x4] sm:$0x3]
        %s2639 = scalar_lea.vmem %s6, 192
        %v2640 = vld [vmem:[%s2639] sm:$0xf]
        %v2641 = vld [vmem:[%s2639 + $0x4] sm:$0xf]
        %v2642 = vld [vmem:[%s2639 + $0x8] sm:$0xf]
        %v2643 = vld [vmem:[%s2639 + $0xc] sm:$0xf]
        %v2644 = vld [vmem:[%s2639 + $0x10] sm:$0xf]
        %v2645 = vld [vmem:[%s2639 + $0x14] sm:$0xf]
        %v2646 = vld [vmem:[%s2639 + $0x18] sm:$0xf]
        %v2647 = vld [vmem:[%s2639 + $0x1c] sm:$0xf]
        %v2648 = vld [vmem:[%s2639 + $0x20] sm:$0xf]
        %v2649 = vld [vmem:[%s2639 + $0x24] sm:$0xf]
        %v2650 = vld [vmem:[%s2639 + $0x28] sm:$0xf]
        %v2651 = vld [vmem:[%s2639 + $0x2c] sm:$0xf]
        %v2652 = vld [vmem:[%s2639 + $0x30] sm:$0xf]
        %v2653 = vld [vmem:[%s2639 + $0x34] sm:$0xf]
        %v2654 = vld [vmem:[%s2639 + $0x38] sm:$0xf]
        %v2655 = vld [vmem:[%s2639 + $0x3c] sm:$0xf]
        %v2657 = vunpack.c.l.b16 %v2638
        %v2658 = vpack.c.b16 %v2657, %v2572
        %v2660 = vshrl.u32 %v2658, 16
        %v2662 = vrot.slane %v2660, 1
        %v2663 = vshll.u32 %v2658, 16
        %v2665 = vrot.slane %v2663, 2
        %v2666 = vor.u32 %v2662, %v2665
        %v2684 = vunpack.c.l.b16 %v2640
        %v2685 = vunpack.c.l.b16 %v2641
        %v2686 = vunpack.c.l.b16 %v2642
        %v2687 = vunpack.c.l.b16 %v2643
        %v2688 = vunpack.c.l.b16 %v2644
        %v2689 = vunpack.c.l.b16 %v2645
        %v2690 = vunpack.c.l.b16 %v2646
        %v2691 = vunpack.c.l.b16 %v2647
        %v2692 = vunpack.c.l.b16 %v2648
        %v2693 = vunpack.c.l.b16 %v2649
        %v2694 = vunpack.c.l.b16 %v2650
        %v2695 = vunpack.c.l.b16 %v2651
        %v2696 = vunpack.c.l.b16 %v2652
        %v2697 = vunpack.c.l.b16 %v2653
        %v2698 = vunpack.c.l.b16 %v2654
        %v2699 = vunpack.c.l.b16 %v2655
        %v2700 = vpack.c.b16 %v2685, %v2684
        %v2701 = vpack.c.b16 %v2687, %v2686
        %v2702 = vpack.c.b16 %v2689, %v2688
        %v2703 = vpack.c.b16 %v2691, %v2690
        %v2704 = vpack.c.b16 %v2693, %v2692
        %v2705 = vpack.c.b16 %v2695, %v2694
        %v2706 = vpack.c.b16 %v2697, %v2696
        %v2707 = vpack.c.b16 %v2699, %v2698
        %2716 = vmatpush.bf16.msra.mxu0 %v2707
        %2717 = vmatpush.bf16.msra.mxu0 %v2706
        %2718 = vmatpush.bf16.msra.mxu0 %v2705
        %2719 = vmatpush.bf16.msra.mxu0 %v2704
        %2720 = vmatpush.bf16.msra.mxu0 %v2703
        %2721 = vmatpush.bf16.msra.mxu0 %v2702
        %2722 = vmatpush.bf16.msra.mxu0 %v2701
        %2723 = vmatpush.bf16.msra.mxu0 %v2700
        %2724 = vmatmul.bf16.gmra.mxu0 %v2666
        %v2725 = vpop.f32.mrf.mxu0
        %v2726 = vadd.f32 0.0, %v2725
        %v2727 = vpop.f32.mrf.mxu0
        %2728 = vdwg.mxu0
        %v2729 = vadd.f32 %v2637, %v2726
        %v2730 = vld [vmem:[#allocation6] sm:$0xc]
        %s2731 = scalar_lea.vmem %s6, 256
        %v2732 = vld [vmem:[%s2731] sm:$0xf]
        %v2733 = vld [vmem:[%s2731 + $0x4] sm:$0xf]
        %v2734 = vld [vmem:[%s2731 + $0x8] sm:$0xf]
        %v2735 = vld [vmem:[%s2731 + $0xc] sm:$0xf]
        %v2736 = vld [vmem:[%s2731 + $0x10] sm:$0xf]
        %v2737 = vld [vmem:[%s2731 + $0x14] sm:$0xf]
        %v2738 = vld [vmem:[%s2731 + $0x18] sm:$0xf]
        %v2739 = vld [vmem:[%s2731 + $0x1c] sm:$0xf]
        %v2740 = vld [vmem:[%s2731 + $0x20] sm:$0xf]
        %v2741 = vld [vmem:[%s2731 + $0x24] sm:$0xf]
        %v2742 = vld [vmem:[%s2731 + $0x28] sm:$0xf]
        %v2743 = vld [vmem:[%s2731 + $0x2c] sm:$0xf]
        %v2744 = vld [vmem:[%s2731 + $0x30] sm:$0xf]
        %v2745 = vld [vmem:[%s2731 + $0x34] sm:$0xf]
        %v2746 = vld [vmem:[%s2731 + $0x38] sm:$0xf]
        %v2747 = vld [vmem:[%s2731 + $0x3c] sm:$0xf]
        %v2749 = vunpack.c.l.b16 %v2730
        %v2750 = vpack.c.b16 %v2657, %v2749
        %v2751 = vrot.slane %v2750, 2
        %v2769 = vunpack.c.l.b16 %v2732
        %v2770 = vunpack.c.l.b16 %v2733
        %v2771 = vunpack.c.l.b16 %v2734
        %v2772 = vunpack.c.l.b16 %v2735
        %v2773 = vunpack.c.l.b16 %v2736
        %v2774 = vunpack.c.l.b16 %v2737
        %v2775 = vunpack.c.l.b16 %v2738
        %v2776 = vunpack.c.l.b16 %v2739
        %v2777 = vunpack.c.l.b16 %v2740
        %v2778 = vunpack.c.l.b16 %v2741
        %v2779 = vunpack.c.l.b16 %v2742
        %v2780 = vunpack.c.l.b16 %v2743
        %v2781 = vunpack.c.l.b16 %v2744
        %v2782 = vunpack.c.l.b16 %v2745
        %v2783 = vunpack.c.l.b16 %v2746
        %v2784 = vunpack.c.l.b16 %v2747
        %v2785 = vpack.c.b16 %v2770, %v2769
        %v2786 = vpack.c.b16 %v2772, %v2771
        %v2787 = vpack.c.b16 %v2774, %v2773
        %v2788 = vpack.c.b16 %v2776, %v2775
        %v2789 = vpack.c.b16 %v2778, %v2777
        %v2790 = vpack.c.b16 %v2780, %v2779
        %v2791 = vpack.c.b16 %v2782, %v2781
        %v2792 = vpack.c.b16 %v2784, %v2783
        %2801 = vmatpush.bf16.msra.mxu0 %v2792
        %2802 = vmatpush.bf16.msra.mxu0 %v2791
        %2803 = vmatpush.bf16.msra.mxu0 %v2790
        %2804 = vmatpush.bf16.msra.mxu0 %v2789
        %2805 = vmatpush.bf16.msra.mxu0 %v2788
        %2806 = vmatpush.bf16.msra.mxu0 %v2787
        %2807 = vmatpush.bf16.msra.mxu0 %v2786
        %2808 = vmatpush.bf16.msra.mxu0 %v2785
        %2809 = vmatmul.bf16.gmra.mxu0 %v2751
        %v2810 = vpop.f32.mrf.mxu0
        %v2811 = vadd.f32 0.0, %v2810
        %v2812 = vpop.f32.mrf.mxu0
        %2813 = vdwg.mxu0
        %v2814 = vadd.f32 %v2729, %v2811
        %v2816 = vperm.slane %v2382, 0
        %v2818 = vadd.f32 %v2814, %v2816
        %v2819 = vmax.f32 %v2818, 0.0
        %v2820 = vpack.c.bf16 %v2819, %v2819
        %v2822 = vshll.u32 %v2820, 16
        %v2825 = vld [vmem:[#allocation7] sm:$0x1]
        %v2826 = vsel %vm655, %v2822, %v2825
        %2827 = vst [vmem:[#allocation7] sm:$0x1] %v2826
        %v2828 = vld [vmem:[#allocation7] sm:$0x2]
        %v2829 = vsel %vm1783, %v2820, %v2828
        %2830 = vst [vmem:[#allocation7] sm:$0x2] %v2829
        %v2831 = vrot.slane %v2822, 5
        %v2832 = vrot.slane %v2831, 4
        %v2834 = vld [vmem:[#allocation7] sm:$0x2]
        %v2835 = vsel %vm1791, %v2832, %v2834
        %2836 = vst [vmem:[#allocation7] sm:$0x2] %v2835
        %v2838 = vrot.slane %v2820, 5
        %v2839 = vrot.slane %v2838, 4
        %v2841 = vld [vmem:[#allocation7] sm:$0x4]
        %v2842 = vsel %vm1800, %v2839, %v2841
        %2843 = vst [vmem:[#allocation7] sm:$0x4] %v2842
        %v2844 = vld [vmem:[%s15] sm:$0x1]
        %v2845 = vld [vmem:[#allocation7] sm:$0x3]
        %v2846 = vld [vmem:[#allocation17] sm:$0xf]
        %v2847 = vld [vmem:[#allocation17 + $0x4] sm:$0xf]
        %v2848 = vld [vmem:[#allocation17 + $0x8] sm:$0xf]
        %v2849 = vld [vmem:[#allocation17 + $0xc] sm:$0xf]
        %v2850 = vld [vmem:[#allocation17 + $0x10] sm:$0xf]
        %v2851 = vld [vmem:[#allocation17 + $0x14] sm:$0xf]
        %v2852 = vld [vmem:[#allocation17 + $0x18] sm:$0xf]
        %v2853 = vld [vmem:[#allocation17 + $0x1c] sm:$0xf]
        %v2854 = vld [vmem:[#allocation17 + $0x20] sm:$0xf]
        %v2855 = vld [vmem:[#allocation17 + $0x24] sm:$0xf]
        %v2856 = vld [vmem:[#allocation17 + $0x28] sm:$0xf]
        %v2857 = vld [vmem:[#allocation17 + $0x2c] sm:$0xf]
        %v2858 = vld [vmem:[#allocation17 + $0x30] sm:$0xf]
        %v2859 = vld [vmem:[#allocation17 + $0x34] sm:$0xf]
        %v2860 = vld [vmem:[#allocation17 + $0x38] sm:$0xf]
        %v2861 = vld [vmem:[#allocation17 + $0x3c] sm:$0xf]
        %v2862 = vld [vmem:[#allocation7] sm:$0x7]
        %s2863 = scalar_lea.vmem [#allocation17], 64
        %v2864 = vld [vmem:[%s2863] sm:$0xf]
        %v2865 = vld [vmem:[%s2863 + $0x4] sm:$0xf]
        %v2866 = vld [vmem:[%s2863 + $0x8] sm:$0xf]
        %v2867 = vld [vmem:[%s2863 + $0xc] sm:$0xf]
        %v2868 = vld [vmem:[%s2863 + $0x10] sm:$0xf]
        %v2869 = vld [vmem:[%s2863 + $0x14] sm:$0xf]
        %v2870 = vld [vmem:[%s2863 + $0x18] sm:$0xf]
        %v2871 = vld [vmem:[%s2863 + $0x1c] sm:$0xf]
        %v2872 = vld [vmem:[%s2863 + $0x20] sm:$0xf]
        %v2873 = vld [vmem:[%s2863 + $0x24] sm:$0xf]
        %v2874 = vld [vmem:[%s2863 + $0x28] sm:$0xf]
        %v2875 = vld [vmem:[%s2863 + $0x2c] sm:$0xf]
        %v2876 = vld [vmem:[%s2863 + $0x30] sm:$0xf]
        %v2877 = vld [vmem:[%s2863 + $0x34] sm:$0xf]
        %v2878 = vld [vmem:[%s2863 + $0x38] sm:$0xf]
        %v2879 = vld [vmem:[%s2863 + $0x3c] sm:$0xf]
        %v2881 = vunpack.c.l.b16 %v2862
        %v2882 = vpack.c.b16 %v2881, %v2881
        %v2884 = vshrl.u32 %v2882, 16
        %v2886 = vshll.u32 %v2882, 16
        %v2888 = vrot.slane %v2886, 1
        %v2889 = vor.u32 %v2884, %v2888
        %v2907 = vunpack.c.l.b16 %v2864
        %v2908 = vunpack.c.l.b16 %v2865
        %v2909 = vunpack.c.l.b16 %v2866
        %v2910 = vunpack.c.l.b16 %v2867
        %v2911 = vunpack.c.l.b16 %v2868
        %v2912 = vunpack.c.l.b16 %v2869
        %v2913 = vunpack.c.l.b16 %v2870
        %v2914 = vunpack.c.l.b16 %v2871
        %v2915 = vunpack.c.l.b16 %v2872
        %v2916 = vunpack.c.l.b16 %v2873
        %v2917 = vunpack.c.l.b16 %v2874
        %v2918 = vunpack.c.l.b16 %v2875
        %v2919 = vunpack.c.l.b16 %v2876
        %v2920 = vunpack.c.l.b16 %v2877
        %v2921 = vunpack.c.l.b16 %v2878
        %v2922 = vunpack.c.l.b16 %v2879
        %v2923 = vpack.c.b16 %v2908, %v2907
        %v2924 = vpack.c.b16 %v2910, %v2909
        %v2925 = vpack.c.b16 %v2912, %v2911
        %v2926 = vpack.c.b16 %v2914, %v2913
        %v2927 = vpack.c.b16 %v2916, %v2915
        %v2928 = vpack.c.b16 %v2918, %v2917
        %v2929 = vpack.c.b16 %v2920, %v2919
        %v2930 = vpack.c.b16 %v2922, %v2921
        %2939 = vmatpush.bf16.msra.mxu0 %v2930
        %2940 = vmatpush.bf16.msra.mxu0 %v2929
        %2941 = vmatpush.bf16.msra.mxu0 %v2928
        %2942 = vmatpush.bf16.msra.mxu0 %v2927
        %2943 = vmatpush.bf16.msra.mxu0 %v2926
        %2944 = vmatpush.bf16.msra.mxu0 %v2925
        %2945 = vmatpush.bf16.msra.mxu0 %v2924
        %2946 = vmatpush.bf16.msra.mxu0 %v2923
        %2947 = vmatmul.bf16.gmra.mxu0 %v2889
        %v2948 = vpop.f32.mrf.mxu0
        %v2949 = vadd.f32 0.0, %v2948
        %v2950 = vpop.f32.mrf.mxu0
        %2951 = vdwg.mxu0
        %v2968 = vunpack.c.l.b16 %v2846
        %v2969 = vunpack.c.l.b16 %v2847
        %v2970 = vunpack.c.l.b16 %v2848
        %v2971 = vunpack.c.l.b16 %v2849
        %v2972 = vunpack.c.l.b16 %v2850
        %v2973 = vunpack.c.l.b16 %v2851
        %v2974 = vunpack.c.l.b16 %v2852
        %v2975 = vunpack.c.l.b16 %v2853
        %v2976 = vunpack.c.l.b16 %v2854
        %v2977 = vunpack.c.l.b16 %v2855
        %v2978 = vunpack.c.l.b16 %v2856
        %v2979 = vunpack.c.l.b16 %v2857
        %v2980 = vunpack.c.l.b16 %v2858
        %v2981 = vunpack.c.l.b16 %v2859
        %v2982 = vunpack.c.l.b16 %v2860
        %v2983 = vunpack.c.l.b16 %v2861
        %v2984 = vpack.c.b16 %v2969, %v2968
        %v2985 = vpack.c.b16 %v2971, %v2970
        %v2986 = vpack.c.b16 %v2973, %v2972
        %v2987 = vpack.c.b16 %v2975, %v2974
        %v2988 = vpack.c.b16 %v2977, %v2976
        %v2989 = vpack.c.b16 %v2979, %v2978
        %v2990 = vpack.c.b16 %v2981, %v2980
        %v2991 = vpack.c.b16 %v2983, %v2982
        %3000 = vmatpush.bf16.msra.mxu0 %v2991
        %3001 = vmatpush.bf16.msra.mxu0 %v2990
        %3002 = vmatpush.bf16.msra.mxu0 %v2989
        %3003 = vmatpush.bf16.msra.mxu0 %v2988
        %3004 = vmatpush.bf16.msra.mxu0 %v2987
        %3005 = vmatpush.bf16.msra.mxu0 %v2986
        %3006 = vmatpush.bf16.msra.mxu0 %v2985
        %3007 = vmatpush.bf16.msra.mxu0 %v2984
        %3008 = vmatmul.bf16.gmra.mxu0 %v2845
        %v3009 = vpop.f32.mrf.mxu0
        %v3010 = vadd.f32 %v2949, %v3009
        %v3011 = vpop.f32.mrf.mxu0
        %3012 = vdwg.mxu0
        %v3013 = vld [vmem:[#allocation7] sm:$0x6]
        %s3014 = scalar_lea.vmem [#allocation17], 128
        %v3015 = vld [vmem:[%s3014] sm:$0xf]
        %v3016 = vld [vmem:[%s3014 + $0x4] sm:$0xf]
        %v3017 = vld [vmem:[%s3014 + $0x8] sm:$0xf]
        %v3018 = vld [vmem:[%s3014 + $0xc] sm:$0xf]
        %v3019 = vld [vmem:[%s3014 + $0x10] sm:$0xf]
        %v3020 = vld [vmem:[%s3014 + $0x14] sm:$0xf]
        %v3021 = vld [vmem:[%s3014 + $0x18] sm:$0xf]
        %v3022 = vld [vmem:[%s3014 + $0x1c] sm:$0xf]
        %v3023 = vld [vmem:[%s3014 + $0x20] sm:$0xf]
        %v3024 = vld [vmem:[%s3014 + $0x24] sm:$0xf]
        %v3025 = vld [vmem:[%s3014 + $0x28] sm:$0xf]
        %v3026 = vld [vmem:[%s3014 + $0x2c] sm:$0xf]
        %v3027 = vld [vmem:[%s3014 + $0x30] sm:$0xf]
        %v3028 = vld [vmem:[%s3014 + $0x34] sm:$0xf]
        %v3029 = vld [vmem:[%s3014 + $0x38] sm:$0xf]
        %v3030 = vld [vmem:[%s3014 + $0x3c] sm:$0xf]
        %v3032 = vunpack.c.l.b16 %v3013
        %v3033 = vpack.c.b16 %v3032, %v3032
        %v3034 = vrot.slane %v3033, 1
        %v3052 = vunpack.c.l.b16 %v3015
        %v3053 = vunpack.c.l.b16 %v3016
        %v3054 = vunpack.c.l.b16 %v3017
        %v3055 = vunpack.c.l.b16 %v3018
        %v3056 = vunpack.c.l.b16 %v3019
        %v3057 = vunpack.c.l.b16 %v3020
        %v3058 = vunpack.c.l.b16 %v3021
        %v3059 = vunpack.c.l.b16 %v3022
        %v3060 = vunpack.c.l.b16 %v3023
        %v3061 = vunpack.c.l.b16 %v3024
        %v3062 = vunpack.c.l.b16 %v3025
        %v3063 = vunpack.c.l.b16 %v3026
        %v3064 = vunpack.c.l.b16 %v3027
        %v3065 = vunpack.c.l.b16 %v3028
        %v3066 = vunpack.c.l.b16 %v3029
        %v3067 = vunpack.c.l.b16 %v3030
        %v3068 = vpack.c.b16 %v3053, %v3052
        %v3069 = vpack.c.b16 %v3055, %v3054
        %v3070 = vpack.c.b16 %v3057, %v3056
        %v3071 = vpack.c.b16 %v3059, %v3058
        %v3072 = vpack.c.b16 %v3061, %v3060
        %v3073 = vpack.c.b16 %v3063, %v3062
        %v3074 = vpack.c.b16 %v3065, %v3064
        %v3075 = vpack.c.b16 %v3067, %v3066
        %3084 = vmatpush.bf16.msra.mxu0 %v3075
        %3085 = vmatpush.bf16.msra.mxu0 %v3074
        %3086 = vmatpush.bf16.msra.mxu0 %v3073
        %3087 = vmatpush.bf16.msra.mxu0 %v3072
        %3088 = vmatpush.bf16.msra.mxu0 %v3071
        %3089 = vmatpush.bf16.msra.mxu0 %v3070
        %3090 = vmatpush.bf16.msra.mxu0 %v3069
        %3091 = vmatpush.bf16.msra.mxu0 %v3068
        %3092 = vmatmul.bf16.gmra.mxu0 %v3034
        %v3093 = vpop.f32.mrf.mxu0
        %v3094 = vadd.f32 0.0, %v3093
        %v3095 = vpop.f32.mrf.mxu0
        %3096 = vdwg.mxu0
        %v3097 = vadd.f32 %v3010, %v3094
        %v3099 = vperm.slane %v2844, 0
        %v3101 = vadd.f32 %v3097, %v3099
        %v3102 = vmax.f32 %v3101, 0.0
        %v3103 = vpack.c.bf16 %v3102, %v3102
        %v3105 = vshrl.u32 %v3103, 16
        %v3107 = vrot.slane %v3105, 7
        %v3108 = vshll.u32 %v3103, 16
        %v3110 = vor.u32 %v3107, %v3108
        %vm3112 = vcmask 1042432
        %vm3113 = vsmask.f32 2306
        %vm3114 = vmand %vm3112, %vm3113
        %v3115 = vld [vmem:[#allocation8] sm:$0x7]
        %v3116 = vsel %vm3114, %v3110, %v3115
        %3117 = vst [vmem:[#allocation8] sm:$0x7] %v3116
        %v3118 = vld [vmem:[%s16] sm:$0x1]
        %v3119 = vld [vmem:[#allocation8] sm:$0x3]
        %v3120 = vld [vmem:[%s8] sm:$0xf]
        %v3121 = vld [vmem:[%s8 + $0x4] sm:$0xf]
        %v3122 = vld [vmem:[%s8 + $0x8] sm:$0xf]
        %v3123 = vld [vmem:[%s8 + $0xc] sm:$0xf]
        %v3124 = vld [vmem:[%s8 + $0x10] sm:$0xf]
        %v3125 = vld [vmem:[%s8 + $0x14] sm:$0xf]
        %v3126 = vld [vmem:[%s8 + $0x18] sm:$0xf]
        %v3127 = vld [vmem:[%s8 + $0x1c] sm:$0xf]
        %v3128 = vld [vmem:[%s8 + $0x20] sm:$0xf]
        %v3129 = vld [vmem:[%s8 + $0x24] sm:$0xf]
        %v3130 = vld [vmem:[%s8 + $0x28] sm:$0xf]
        %v3131 = vld [vmem:[%s8 + $0x2c] sm:$0xf]
        %v3132 = vld [vmem:[%s8 + $0x30] sm:$0xf]
        %v3133 = vld [vmem:[%s8 + $0x34] sm:$0xf]
        %v3134 = vld [vmem:[%s8 + $0x38] sm:$0xf]
        %v3135 = vld [vmem:[%s8 + $0x3c] sm:$0xf]
        %v3136 = vld [vmem:[#allocation8] sm:$0x7]
        %s3137 = scalar_lea.vmem %s8, 64
        %v3138 = vld [vmem:[%s3137] sm:$0xf]
        %v3139 = vld [vmem:[%s3137 + $0x4] sm:$0xf]
        %v3140 = vld [vmem:[%s3137 + $0x8] sm:$0xf]
        %v3141 = vld [vmem:[%s3137 + $0xc] sm:$0xf]
        %v3142 = vld [vmem:[%s3137 + $0x10] sm:$0xf]
        %v3143 = vld [vmem:[%s3137 + $0x14] sm:$0xf]
        %v3144 = vld [vmem:[%s3137 + $0x18] sm:$0xf]
        %v3145 = vld [vmem:[%s3137 + $0x1c] sm:$0xf]
        %v3146 = vld [vmem:[%s3137 + $0x20] sm:$0xf]
        %v3147 = vld [vmem:[%s3137 + $0x24] sm:$0xf]
        %v3148 = vld [vmem:[%s3137 + $0x28] sm:$0xf]
        %v3149 = vld [vmem:[%s3137 + $0x2c] sm:$0xf]
        %v3150 = vld [vmem:[%s3137 + $0x30] sm:$0xf]
        %v3151 = vld [vmem:[%s3137 + $0x34] sm:$0xf]
        %v3152 = vld [vmem:[%s3137 + $0x38] sm:$0xf]
        %v3153 = vld [vmem:[%s3137 + $0x3c] sm:$0xf]
        %v3155 = vunpack.c.l.b16 %v3136
        %v3156 = vpack.c.b16 %v3155, %v3155
        %v3158 = vshrl.u32 %v3156, 16
        %v3160 = vshll.u32 %v3156, 16
        %v3162 = vrot.slane %v3160, 1
        %v3163 = vor.u32 %v3158, %v3162
        %v3181 = vunpack.c.l.b16 %v3138
        %v3182 = vunpack.c.l.b16 %v3139
        %v3183 = vunpack.c.l.b16 %v3140
        %v3184 = vunpack.c.l.b16 %v3141
        %v3185 = vunpack.c.l.b16 %v3142
        %v3186 = vunpack.c.l.b16 %v3143
        %v3187 = vunpack.c.l.b16 %v3144
        %v3188 = vunpack.c.l.b16 %v3145
        %v3189 = vunpack.c.l.b16 %v3146
        %v3190 = vunpack.c.l.b16 %v3147
        %v3191 = vunpack.c.l.b16 %v3148
        %v3192 = vunpack.c.l.b16 %v3149
        %v3193 = vunpack.c.l.b16 %v3150
        %v3194 = vunpack.c.l.b16 %v3151
        %v3195 = vunpack.c.l.b16 %v3152
        %v3196 = vunpack.c.l.b16 %v3153
        %v3197 = vpack.c.b16 %v3182, %v3181
        %v3198 = vpack.c.b16 %v3184, %v3183
        %v3199 = vpack.c.b16 %v3186, %v3185
        %v3200 = vpack.c.b16 %v3188, %v3187
        %v3201 = vpack.c.b16 %v3190, %v3189
        %v3202 = vpack.c.b16 %v3192, %v3191
        %v3203 = vpack.c.b16 %v3194, %v3193
        %v3204 = vpack.c.b16 %v3196, %v3195
        %3213 = vmatpush.bf16.msra.mxu0 %v3204
        %3214 = vmatpush.bf16.msra.mxu0 %v3203
        %3215 = vmatpush.bf16.msra.mxu0 %v3202
        %3216 = vmatpush.bf16.msra.mxu0 %v3201
        %3217 = vmatpush.bf16.msra.mxu0 %v3200
        %3218 = vmatpush.bf16.msra.mxu0 %v3199
        %3219 = vmatpush.bf16.msra.mxu0 %v3198
        %3220 = vmatpush.bf16.msra.mxu0 %v3197
        %3221 = vmatmul.bf16.gmra.mxu0 %v3163
        %v3222 = vpop.f32.mrf.mxu0
        %v3223 = vadd.f32 0.0, %v3222
        %v3224 = vpop.f32.mrf.mxu0
        %3225 = vdwg.mxu0
        %v3242 = vunpack.c.l.b16 %v3120
        %v3243 = vunpack.c.l.b16 %v3121
        %v3244 = vunpack.c.l.b16 %v3122
        %v3245 = vunpack.c.l.b16 %v3123
        %v3246 = vunpack.c.l.b16 %v3124
        %v3247 = vunpack.c.l.b16 %v3125
        %v3248 = vunpack.c.l.b16 %v3126
        %v3249 = vunpack.c.l.b16 %v3127
        %v3250 = vunpack.c.l.b16 %v3128
        %v3251 = vunpack.c.l.b16 %v3129
        %v3252 = vunpack.c.l.b16 %v3130
        %v3253 = vunpack.c.l.b16 %v3131
        %v3254 = vunpack.c.l.b16 %v3132
        %v3255 = vunpack.c.l.b16 %v3133
        %v3256 = vunpack.c.l.b16 %v3134
        %v3257 = vunpack.c.l.b16 %v3135
        %v3258 = vpack.c.b16 %v3243, %v3242
        %v3259 = vpack.c.b16 %v3245, %v3244
        %v3260 = vpack.c.b16 %v3247, %v3246
        %v3261 = vpack.c.b16 %v3249, %v3248
        %v3262 = vpack.c.b16 %v3251, %v3250
        %v3263 = vpack.c.b16 %v3253, %v3252
        %v3264 = vpack.c.b16 %v3255, %v3254
        %v3265 = vpack.c.b16 %v3257, %v3256
        %3274 = vmatpush.bf16.msra.mxu0 %v3265
        %3275 = vmatpush.bf16.msra.mxu0 %v3264
        %3276 = vmatpush.bf16.msra.mxu0 %v3263
        %3277 = vmatpush.bf16.msra.mxu0 %v3262
        %3278 = vmatpush.bf16.msra.mxu0 %v3261
        %3279 = vmatpush.bf16.msra.mxu0 %v3260
        %3280 = vmatpush.bf16.msra.mxu0 %v3259
        %3281 = vmatpush.bf16.msra.mxu0 %v3258
        %3282 = vmatmul.bf16.gmra.mxu0 %v3119
        %v3283 = vpop.f32.mrf.mxu0
        %v3284 = vadd.f32 %v3223, %v3283
        %v3285 = vpop.f32.mrf.mxu0
        %3286 = vdwg.mxu0
        %v3287 = vld [vmem:[#allocation8] sm:$0x6]
        %s3288 = scalar_lea.vmem %s8, 128
        %v3289 = vld [vmem:[%s3288] sm:$0xf]
        %v3290 = vld [vmem:[%s3288 + $0x4] sm:$0xf]
        %v3291 = vld [vmem:[%s3288 + $0x8] sm:$0xf]
        %v3292 = vld [vmem:[%s3288 + $0xc] sm:$0xf]
        %v3293 = vld [vmem:[%s3288 + $0x10] sm:$0xf]
        %v3294 = vld [vmem:[%s3288 + $0x14] sm:$0xf]
        %v3295 = vld [vmem:[%s3288 + $0x18] sm:$0xf]
        %v3296 = vld [vmem:[%s3288 + $0x1c] sm:$0xf]
        %v3297 = vld [vmem:[%s3288 + $0x20] sm:$0xf]
        %v3298 = vld [vmem:[%s3288 + $0x24] sm:$0xf]
        %v3299 = vld [vmem:[%s3288 + $0x28] sm:$0xf]
        %v3300 = vld [vmem:[%s3288 + $0x2c] sm:$0xf]
        %v3301 = vld [vmem:[%s3288 + $0x30] sm:$0xf]
        %v3302 = vld [vmem:[%s3288 + $0x34] sm:$0xf]
        %v3303 = vld [vmem:[%s3288 + $0x38] sm:$0xf]
        %v3304 = vld [vmem:[%s3288 + $0x3c] sm:$0xf]
        %v3306 = vunpack.c.l.b16 %v3287
        %v3307 = vpack.c.b16 %v3306, %v3306
        %v3308 = vrot.slane %v3307, 1
        %v3326 = vunpack.c.l.b16 %v3289
        %v3327 = vunpack.c.l.b16 %v3290
        %v3328 = vunpack.c.l.b16 %v3291
        %v3329 = vunpack.c.l.b16 %v3292
        %v3330 = vunpack.c.l.b16 %v3293
        %v3331 = vunpack.c.l.b16 %v3294
        %v3332 = vunpack.c.l.b16 %v3295
        %v3333 = vunpack.c.l.b16 %v3296
        %v3334 = vunpack.c.l.b16 %v3297
        %v3335 = vunpack.c.l.b16 %v3298
        %v3336 = vunpack.c.l.b16 %v3299
        %v3337 = vunpack.c.l.b16 %v3300
        %v3338 = vunpack.c.l.b16 %v3301
        %v3339 = vunpack.c.l.b16 %v3302
        %v3340 = vunpack.c.l.b16 %v3303
        %v3341 = vunpack.c.l.b16 %v3304
        %v3342 = vpack.c.b16 %v3327, %v3326
        %v3343 = vpack.c.b16 %v3329, %v3328
        %v3344 = vpack.c.b16 %v3331, %v3330
        %v3345 = vpack.c.b16 %v3333, %v3332
        %v3346 = vpack.c.b16 %v3335, %v3334
        %v3347 = vpack.c.b16 %v3337, %v3336
        %v3348 = vpack.c.b16 %v3339, %v3338
        %v3349 = vpack.c.b16 %v3341, %v3340
        %3358 = vmatpush.bf16.msra.mxu0 %v3349
        %3359 = vmatpush.bf16.msra.mxu0 %v3348
        %3360 = vmatpush.bf16.msra.mxu0 %v3347
        %3361 = vmatpush.bf16.msra.mxu0 %v3346
        %3362 = vmatpush.bf16.msra.mxu0 %v3345
        %3363 = vmatpush.bf16.msra.mxu0 %v3344
        %3364 = vmatpush.bf16.msra.mxu0 %v3343
        %3365 = vmatpush.bf16.msra.mxu0 %v3342
        %3366 = vmatmul.bf16.gmra.mxu0 %v3308
        %v3367 = vpop.f32.mrf.mxu0
        %v3368 = vadd.f32 0.0, %v3367
        %v3369 = vpop.f32.mrf.mxu0
        %3370 = vdwg.mxu0
        %v3371 = vadd.f32 %v3284, %v3368
        %v3373 = vperm.slane %v3118, 0
        %v3375 = vadd.f32 %v3371, %v3373
        %3376 = vst [vmem:[%s646] sm:$0xf] %v3375
        %p3377 = scmp.lt.s32.totalorder %s32, 1
        %s3378 = scalar_select %p3377, %s32, 1
        %s3379 = smul.addr %s3378, 4
        %s3380 = scalar_lea.vmem %s17, %s3379
        // Predicated region
        $region113: #{_lambda_.1} parent=87 // pred_check
          %p3381 = pneg %p412
        $region114: #{_lambda_.1} parent=87 // pred_check_branch
          %3383 = sbr.rel (%p3381) target = $region116
        $region115: #{_lambda_.1} parent=87 // pred_region
          _
        $region116: #{_lambda_.1} parent=87 // pred_fallthru
          _
      $region88: #{_lambda_.1} parent=5 // pred_fallthru
        _
      %p3384 = scmp.le.s32.totalorder 2, %s27
      // Predicated region
      $region117: #{_lambda_.1} parent=5 // pred_check
        %p3385 = pneg %p3384
      $region118: #{_lambda_.1} parent=5 // pred_check_branch
        %3387 = sbr.rel (%p3385) target = $region120
      $region119: #{_lambda_.1} parent=5 // pred_region
        %s3388 = ssub.s32 %s27, 2
        // Predicated region
        $region121: #{_lambda_.1} parent=119 // pred_check
          %p3389 = pneg %p418
        $region122: #{_lambda_.1} parent=119 // pred_check_branch
          %3391 = sbr.rel (%p3389) target = $region124
        $region123: #{_lambda_.1} parent=119 // pred_region
          %p3392 = scmp.lt.s32.totalorder %s33, 1
          %s3393 = scalar_select %p3392, %s33, 1
          %s3394 = smul.addr %s3393, 4
          %s3395 = scalar_lea.vmem %s17, %s3394
        $region124: #{_lambda_.1} parent=119 // pred_fallthru
          _
      $region120: #{_lambda_.1} parent=5 // pred_fallthru
        _
    $region6: #{_lambda_.1} parent=1 // loop_footer
      %s31 = sadd.s32 1, %s27
    $region7: #{_lambda_.1} parent=1 // loop_footer_branch
      %26 = sbr.rel target = $region3
    $region8: #{_lambda_.1} parent=1 // loop_exit
      _
    %3396 = vsyncpa [#allocation10], 1
    %s3397 = scalar_lea.sflag [#allocation10], 1
    %3398 = vsyncpa %s3397, 1
    %3399 = vsyncpa [#allocation12], 1
    %3400 = vsyncpa [#allocation15], 1
    %3401 = vsyncpa [#allocation18], 1

</llo_original>
